<compile_context>
chip_gen: v6e
topology: v6e:2x2x1
jax: 0.10.0
libtpu: 0.0.40
codegen_flags: <defaults>
</compile_context>

<pallas_src>
import jax
import jax.numpy as jnp
from jax.experimental import pallas as pl
from jax.experimental.pallas import tpu as pltpu

EPS = 1e-5  # nn.InstanceNorm2d default (affine=False, biased variance)

# Transposed-conv phase decomposition (stride 2, pad 1, k=4):  oh = 2*ih - 1 + kh.
# h-axis taps per output row-phase py (input row shift dh, kernel row kh):
_DH = {0: (0, -1), 1: (1, 0)}
_KH = {0: (1, 3), 1: (0, 2)}
# w-axis taps per output col-phase px; the two dw slabs for a px are pre-concatenated
# along channels in the wrapper, in exactly this (dw, kw) order:
_DW = {0: (0, -1), 1: (1, 0)}
_KW = {0: (1, 3), 1: (0, 2)}


def _round_up(v, m):
    return (v + m - 1) // m * m


def _tpu_params(cout):
    """Generation-dependent Cout tile and VMEM cap (75% of physical VMEM)."""
    vmem_cap = 64 * 2 ** 20  # safe default if the query is unavailable
    try:
        vmem_cap = int(getattr(pltpu.get_tpu_info(), "vmem_capacity_bytes", vmem_cap))
    except Exception:
        pass
    kind = ""
    try:
        kind = jax.devices()[0].device_kind.lower()
    except Exception:
        pass
    wide_mxu = any(t in kind for t in ("v6", "v7", "7x"))   # 2x256^2 MXU generations
    # Use a 256-wide Cout tile only when it does not add extra channel padding.
    cout_tile = 256 if (wide_mxu and _round_up(cout, 256) == _round_up(cout, 128)) else 128
    return cout_tile, vmem_cap * 3 // 4


def _vmem_need(NB, H, W, K2, CT):
    """Rough VMEM bytes for one grid step (double-buffered blocks + scratch + live)."""
    HW = H * W
    xb = 2 * NB * (H + 2) * W * K2 * 2     # two dw-slab inputs, bf16
    wb = 8 * K2 * CT * 2                   # folded tap weights, bf16
    ob = 4 * NB * HW * CT * 2              # bf16 output block
    scr = 4 * NB * HW * CT * 4             # f32 staging scratch (single-buffered)
    live = 2 * NB * HW * CT * 4 + NB * HW * K2 * 2
    return 2 * (xb + wb + ob) + scr + live + (2 << 20)


# ----------------------------------------------------------------------------
# Kernel: 4 phases x 2 folded-K MXU matmuls + fused single-pass InstanceNorm + ReLU
# ----------------------------------------------------------------------------
def _make_kernel(NB, H, W):
    HW = H * W
    inv_m = 1.0 / (4.0 * HW)

    def kernel(x0_ref, x1_ref, w_ref, o_ref, raw_ref):
        # x0_ref/x1_ref: (NB, H+2, W, K2) bf16  -- dw-slab pairs for px=0 / px=1
        # w_ref:         (8, K2, CT)      bf16  -- index = (py*2+px)*2 + t
        # o_ref:         (4, NB, H, W, CT) bf16 -- normalized+ReLU, phase-major
        # raw_ref:       (4, NB, HW, CT)  f32   -- raw conv staging (scratch)
        k2 = x0_ref.shape[-1]
        ct = o_ref.shape[-1]
        x_by_px = (x0_ref, x1_ref)

        ch_sum = jnp.zeros((NB, ct), jnp.float32)
        ch_sqs = jnp.zeros((NB, ct), jnp.float32)
        for py in range(2):
            for px in range(2):
                p = py * 2 + px
                x_ref = x_by_px[px]
                acc = None
                for t, dh in enumerate(_DH[py]):
                    # full-row static slice (untiled -3 dim) -> reshape is a view
                    lhs = x_ref[:, 1 + dh:1 + dh + H, :, :].reshape(NB * HW, k2)
                    d = jnp.dot(lhs, w_ref[p * 2 + t],
                                preferred_element_type=jnp.float32)   # MXU, f32 acc
                    acc = d if acc is None else acc + d
                acc = acc.reshape(NB, HW, ct)
                raw_ref[p] = acc                                      # stage raw conv
                ch_sum = ch_sum + jnp.sum(acc, axis=1)                # (NB, CT)
                ch_sqs = ch_sqs + jnp.sum(acc * acc, axis=1)

        # InstanceNorm2d over the full 2H x 2W output == reduce over (phase, HW).
        mean = ch_sum * inv_m
        var = ch_sqs * inv_m - mean * mean                            # biased variance
        inv_std = jax.lax.rsqrt(var + EPS)                            # EUP slot
        mean_b = mean[:, None, :]
        istd_b = inv_std[:, None, :]

        for p in range(4):
            v = raw_ref[p]                                            # (NB, HW, CT) f32
            y = jnp.maximum((v - mean_b) * istd_b, 0.0)
            o_ref[p] = y.reshape(NB, H, W, ct).astype(o_ref.dtype)

    return kernel


# ----------------------------------------------------------------------------
# Forward wrapper (NCHW in / NCHW out, matching the PyTorch module)
# ----------------------------------------------------------------------------
def unet_up_forward(x, weight, skip):
    # x: (N, Cin, H, W); weight: (Cin, Cout, 4, 4); skip: (N, Cskip, 2H, 2W)
    N, Cin, H, W = x.shape
    Cout = weight.shape[1]
    HW = H * W
    K2 = _round_up(2 * Cin, 128)            # folded contraction dim (2 dw taps)
    CT, vmem_cap = _tpu_params(Cout)
    Cout_p = _round_up(Cout, CT)
    J = Cout_p // CT

    # --- inputs: channels-last, +1 spatial zero pad, two px slab-pairs folded into K ---
    x_nhwc = jnp.transpose(x, (0, 2, 3, 1))
    x_pad = jnp.pad(x_nhwc, ((0, 0), (1, 1), (1, 1), (0, 0)))        # (N, H+2, W+2, Cin)

    def slab_pair(px):
        z = jnp.concatenate(
            [x_pad[:, :, 1 + dw:1 + dw + W, :] for dw in _DW[px]], axis=-1)
        z = jnp.pad(z, ((0, 0), (0, 0), (0, 0), (0, K2 - 2 * Cin)))
        return z.astype(jnp.bfloat16)                                 # (N, H+2, W, K2)

    x_px0 = slab_pair(0)
    x_px1 = slab_pair(1)

    # --- weights: 8 folded tap matrices (K2, Cout_p), index = (py*2+px)*2 + t ---
    w_list = []
    for py in range(2):
        for px in range(2):
            for t in range(2):
                kh = _KH[py][t]
                w_list.append(jnp.concatenate(
                    [weight[:, :, kh, kw] for kw in _KW[px]], axis=0))   # (2Cin, Cout)
    w_taps = jnp.stack(w_list, axis=0)
    w_taps = jnp.pad(w_taps, ((0, 0), (0, K2 - 2 * Cin), (0, Cout_p - Cout)))
    w_taps = w_taps.astype(jnp.bfloat16)

    # --- batch fold: largest NB (divisor of N) whose blocks fit the VMEM budget ---
    divisors = [d for d in range(N, 0, -1) if N % d == 0]
    NB = 1
    for d in divisors:
        if _vmem_need(d, H, W, K2, CT) <= int(vmem_cap * 0.9):
            NB = d
            break
    # keep >= 2 grid steps (v7x megacore) when splitting does not starve the MXU M dim
    if J * (N // NB) == 1 and N > 1 and HW >= 128:
        NB = next(d for d in divisors if d < NB)

    vmem_limit = int(min(vmem_cap, max(32 * 2 ** 20, _vmem_need(NB, H, W, K2, CT))))

    grid = (J, N // NB)   # weight tile outermost -> fetched once, reused across batch
    y = pl.pallas_call(
        _make_kernel(NB, H, W),
        out_shape=jax.ShapeDtypeStruct((4, N, H, W, Cout_p), jnp.bfloat16),
        grid=grid,
        in_specs=[
            pl.BlockSpec((NB, H + 2, W, K2), lambda j, n: (n, 0, 0, 0)),
            pl.BlockSpec((NB, H + 2, W, K2), lambda j, n: (n, 0, 0, 0)),
            pl.BlockSpec((8, K2, CT), lambda j, n: (0, 0, j)),
        ],
        out_specs=pl.BlockSpec((4, NB, H, W, CT), lambda j, n: (0, n, 0, 0, j)),
        scratch_shapes=[pltpu.VMEM((4, NB, HW, CT), jnp.float32)],
        compiler_params=pltpu.CompilerParams(
            dimension_semantics=("parallel", "parallel"),
            vmem_limit_bytes=vmem_limit,
        ),
    )(x_px0, x_px1, w_taps)

    # One XLA pass: drop Cout padding, interleave phases, convert to NCHW.
    y = y[..., :Cout].reshape(2, 2, N, H, W, Cout)
    y = y.transpose(2, 5, 3, 0, 4, 1).reshape(N, Cout, 2 * H, 2 * W)
    # skip is passed through bit-exact; conv branch is bf16 (cast up for the concat)
    return jnp.concatenate([y.astype(skip.dtype), skip], axis=1)


# ----------------------------------------------------------------------------
# Pure-JAX reference (for correctness verification)
# ----------------------------------------------------------------------------
def unet_up_reference(x, weight, skip):
    # equivalent standard conv: flip kernel, swap in/out channels, lhs_dilation=2
    w_conv = jnp.flip(weight, axis=(2, 3)).transpose(1, 0, 2, 3)     # (Cout, Cin, 4, 4)
    y = jax.lax.conv_general_dilated(
        x, w_conv, window_strides=(1, 1), padding=[(2, 2), (2, 2)],
        lhs_dilation=(2, 2), dimension_numbers=('NCHW', 'OIHW', 'NCHW'))
    mean = y.mean(axis=(2, 3), keepdims=True)
    var = jnp.square(y - mean).mean(axis=(2, 3), keepdims=True)
    y = jnp.maximum((y - mean) * jax.lax.rsqrt(var + EPS), 0.0)
    return jnp.concatenate([y, skip], axis=1)


if __name__ == "__main__":
    key = jax.random.PRNGKey(0)
    k1, k2, k3 = jax.random.split(key, 3)

    N, Cin, Cout, H, W = 2, 4, 8, 16, 16
    x = jax.random.normal(k1, (N, Cin, H, W), jnp.float32)
    # ConvTranspose2d(in_size, out_size, 4, 2, 1, bias=False) weight: (in, out, 4, 4)
    weight = jax.random.normal(k2, (Cin, Cout, 4, 4), jnp.float32) * 0.1
    skip = jax.random.normal(k3, (N, Cout, 2 * H, 2 * W), jnp.float32)

    out = jax.block_until_ready(unet_up_forward(x, weight, skip))
    ref = jax.block_until_ready(unet_up_reference(x, weight, skip))

    assert out.shape == (N, 2 * Cout, 2 * H, 2 * W), out.shape
    # bf16 MXU operands / bf16 output -> looser tolerance than pure f32
    max_err = float(jnp.max(jnp.abs(out - ref)))
    assert jnp.allclose(out, ref, atol=5e-2, rtol=5e-2), max_err
    print("KERNEL_OK")
</pallas_src>

<mosaic_0001>
module attributes {stable_mosaic.version = 11 : i64} {
  func.func @kernel(%arg0: i32, %arg1: i32, %arg2: memref<1x18x16x128xbf16, #tpu.memory_space<vmem>>, %arg3: memref<1x18x16x128xbf16, #tpu.memory_space<vmem>>, %arg4: memref<8x128x128xbf16, #tpu.memory_space<vmem>>, %arg5: memref<4x1x16x16x128xbf16, #tpu.memory_space<vmem>>, %arg6: memref<4x1x256x128xf32, #tpu.memory_space<vmem>>) attributes {dimension_semantics = [#tpu.dimension_semantics<parallel>, #tpu.dimension_semantics<parallel>], iteration_bounds = array<i64: 1, 2>, scalar_prefetch = 0 : i64, scratch_operands = 1 : i64, tpu.core_type = #tpu.core_type<tc>, window_params = [{transform_indices = @transform_0, window_bounds = array<i64: 1, 18, 16, 128>}, {transform_indices = @transform_1, window_bounds = array<i64: 1, 18, 16, 128>}, {transform_indices = @transform_2, window_bounds = array<i64: 8, 128, 128>}, {transform_indices = @transform_3, window_bounds = array<i64: 4, 1, 16, 16, 128>}]} {
    %cst = arith.constant 0.000000e+00 : f32
    %0 = vector.broadcast %cst : f32 to vector<1x128xf32>
    %cst_0 = arith.constant 0.000000e+00 : f32
    %1 = vector.broadcast %cst_0 : f32 to vector<1x128xf32>
    %c0 = arith.constant 0 : index
    %c1 = arith.constant 1 : index
    %c0_1 = arith.constant 0 : index
    %c0_2 = arith.constant 0 : index
    %2 = vector.load %arg2[%c0, %c1, %c0_1, %c0_2] : memref<1x18x16x128xbf16, #tpu.memory_space<vmem>>, vector<1x16x16x128xbf16>
    %3 = vector.shape_cast %2 : vector<1x16x16x128xbf16> to vector<256x128xbf16>
    %c0_3 = arith.constant 0 : index
    %c0_4 = arith.constant 0 : index
    %c0_5 = arith.constant 0 : index
    %4 = vector.load %arg4[%c0_3, %c0_4, %c0_5] : memref<8x128x128xbf16, #tpu.memory_space<vmem>>, vector<1x128x128xbf16>
    %5 = vector.shape_cast %4 : vector<1x128x128xbf16> to vector<128x128xbf16>
    %cst_6 = arith.constant dense<0.000000e+00> : vector<256x128xf32>
    %6 = tpu.matmul %3, %5, %cst_6 {dimension_numbers = #tpu.dot_dimension_numbers<[1], [0], [0], [1], [0, 0, 1, 1], [], []>} : vector<256x128xbf16>, vector<128x128xbf16>, vector<256x128xf32> -> vector<256x128xf32>
    %c0_7 = arith.constant 0 : index
    %c0_8 = arith.constant 0 : index
    %c0_9 = arith.constant 0 : index
    %c0_10 = arith.constant 0 : index
    %7 = vector.load %arg2[%c0_7, %c0_8, %c0_9, %c0_10] : memref<1x18x16x128xbf16, #tpu.memory_space<vmem>>, vector<1x16x16x128xbf16>
    %8 = vector.shape_cast %7 : vector<1x16x16x128xbf16> to vector<256x128xbf16>
    %c1_11 = arith.constant 1 : index
    %c0_12 = arith.constant 0 : index
    %c0_13 = arith.constant 0 : index
    %9 = vector.load %arg4[%c1_11, %c0_12, %c0_13] : memref<8x128x128xbf16, #tpu.memory_space<vmem>>, vector<1x128x128xbf16>
    %10 = vector.shape_cast %9 : vector<1x128x128xbf16> to vector<128x128xbf16>
    %cst_14 = arith.constant dense<0.000000e+00> : vector<256x128xf32>
    %11 = tpu.matmul %8, %10, %cst_14 {dimension_numbers = #tpu.dot_dimension_numbers<[1], [0], [0], [1], [0, 0, 1, 1], [], []>} : vector<256x128xbf16>, vector<128x128xbf16>, vector<256x128xf32> -> vector<256x128xf32>
    %12 = arith.addf %6, %11 : vector<256x128xf32>
    %13 = vector.shape_cast %12 : vector<256x128xf32> to vector<1x256x128xf32>
    %c0_15 = arith.constant 0 : index
    %c0_16 = arith.constant 0 : index
    %c0_17 = arith.constant 0 : index
    %c0_18 = arith.constant 0 : index
    %14 = vector.load %arg6[%c0_15, %c0_16, %c0_17, %c0_18] : memref<4x1x256x128xf32, #tpu.memory_space<vmem>>, vector<1x1x256x128xf32>
    %15 = vector.shape_cast %14 : vector<1x1x256x128xf32> to vector<1x256x128xf32>
    %16 = vector.shape_cast %13 : vector<1x256x128xf32> to vector<1x1x256x128xf32>
    tpu.vector_store %arg6[%c0_15, %c0_16, %c0_17, %c0_18], %16 {strides = array<i32>} : memref<4x1x256x128xf32, #tpu.memory_space<vmem>>, vector<1x1x256x128xf32>,
    %cst_19 = arith.constant dense<0.000000e+00> : vector<1x128xf32>
    %17 = vector.multi_reduction <add>, %13, %cst_19 [1] : vector<1x256x128xf32> to vector<1x128xf32>
    %18 = arith.addf %0, %17 : vector<1x128xf32>
    %19 = arith.mulf %13, %13 : vector<1x256x128xf32>
    %cst_20 = arith.constant dense<0.000000e+00> : vector<1x128xf32>
    %20 = vector.multi_reduction <add>, %19, %cst_20 [1] : vector<1x256x128xf32> to vector<1x128xf32>
    %21 = arith.addf %1, %20 : vector<1x128xf32>
    %c0_21 = arith.constant 0 : index
    %c1_22 = arith.constant 1 : index
    %c0_23 = arith.constant 0 : index
    %c0_24 = arith.constant 0 : index
    %22 = vector.load %arg3[%c0_21, %c1_22, %c0_23, %c0_24] : memref<1x18x16x128xbf16, #tpu.memory_space<vmem>>, vector<1x16x16x128xbf16>
    %23 = vector.shape_cast %22 : vector<1x16x16x128xbf16> to vector<256x128xbf16>
    %c2 = arith.constant 2 : index
    %c0_25 = arith.constant 0 : index
    %c0_26 = arith.constant 0 : index
    %24 = vector.load %arg4[%c2, %c0_25, %c0_26] : memref<8x128x128xbf16, #tpu.memory_space<vmem>>, vector<1x128x128xbf16>
    %25 = vector.shape_cast %24 : vector<1x128x128xbf16> to vector<128x128xbf16>
    %cst_27 = arith.constant dense<0.000000e+00> : vector<256x128xf32>
    %26 = tpu.matmul %23, %25, %cst_27 {dimension_numbers = #tpu.dot_dimension_numbers<[1], [0], [0], [1], [0, 0, 1, 1], [], []>} : vector<256x128xbf16>, vector<128x128xbf16>, vector<256x128xf32> -> vector<256x128xf32>
    %c0_28 = arith.constant 0 : index
    %c0_29 = arith.constant 0 : index
    %c0_30 = arith.constant 0 : index
    %c0_31 = arith.constant 0 : index
    %27 = vector.load %arg3[%c0_28, %c0_29, %c0_30, %c0_31] : memref<1x18x16x128xbf16, #tpu.memory_space<vmem>>, vector<1x16x16x128xbf16>
    %28 = vector.shape_cast %27 : vector<1x16x16x128xbf16> to vector<256x128xbf16>
    %c3 = arith.constant 3 : index
    %c0_32 = arith.constant 0 : index
    %c0_33 = arith.constant 0 : index
    %29 = vector.load %arg4[%c3, %c0_32, %c0_33] : memref<8x128x128xbf16, #tpu.memory_space<vmem>>, vector<1x128x128xbf16>
    %30 = vector.shape_cast %29 : vector<1x128x128xbf16> to vector<128x128xbf16>
    %cst_34 = arith.constant dense<0.000000e+00> : vector<256x128xf32>
    %31 = tpu.matmul %28, %30, %cst_34 {dimension_numbers = #tpu.dot_dimension_numbers<[1], [0], [0], [1], [0, 0, 1, 1], [], []>} : vector<256x128xbf16>, vector<128x128xbf16>, vector<256x128xf32> -> vector<256x128xf32>
    %32 = arith.addf %26, %31 : vector<256x128xf32>
    %33 = vector.shape_cast %32 : vector<256x128xf32> to vector<1x256x128xf32>
    %c1_35 = arith.constant 1 : index
    %c0_36 = arith.constant 0 : index
    %c0_37 = arith.constant 0 : index
    %c0_38 = arith.constant 0 : index
    %34 = vector.load %arg6[%c1_35, %c0_36, %c0_37, %c0_38] : memref<4x1x256x128xf32, #tpu.memory_space<vmem>>, vector<1x1x256x128xf32>
    %35 = vector.shape_cast %34 : vector<1x1x256x128xf32> to vector<1x256x128xf32>
    %36 = vector.shape_cast %33 : vector<1x256x128xf32> to vector<1x1x256x128xf32>
    tpu.vector_store %arg6[%c1_35, %c0_36, %c0_37, %c0_38], %36 {strides = array<i32>} : memref<4x1x256x128xf32, #tpu.memory_space<vmem>>, vector<1x1x256x128xf32>,
    %cst_39 = arith.constant dense<0.000000e+00> : vector<1x128xf32>
    %37 = vector.multi_reduction <add>, %33, %cst_39 [1] : vector<1x256x128xf32> to vector<1x128xf32>
    %38 = arith.addf %18, %37 : vector<1x128xf32>
    %39 = arith.mulf %33, %33 : vector<1x256x128xf32>
    %cst_40 = arith.constant dense<0.000000e+00> : vector<1x128xf32>
    %40 = vector.multi_reduction <add>, %39, %cst_40 [1] : vector<1x256x128xf32> to vector<1x128xf32>
    %41 = arith.addf %21, %40 : vector<1x128xf32>
    %c0_41 = arith.constant 0 : index
    %c2_42 = arith.constant 2 : index
    %c0_43 = arith.constant 0 : index
    %c0_44 = arith.constant 0 : index
    %42 = vector.load %arg2[%c0_41, %c2_42, %c0_43, %c0_44] : memref<1x18x16x128xbf16, #tpu.memory_space<vmem>>, vector<1x16x16x128xbf16>
    %43 = vector.shape_cast %42 : vector<1x16x16x128xbf16> to vector<256x128xbf16>
    %c4 = arith.constant 4 : index
    %c0_45 = arith.constant 0 : index
    %c0_46 = arith.constant 0 : index
    %44 = vector.load %arg4[%c4, %c0_45, %c0_46] : memref<8x128x128xbf16, #tpu.memory_space<vmem>>, vector<1x128x128xbf16>
    %45 = vector.shape_cast %44 : vector<1x128x128xbf16> to vector<128x128xbf16>
    %cst_47 = arith.constant dense<0.000000e+00> : vector<256x128xf32>
    %46 = tpu.matmul %43, %45, %cst_47 {dimension_numbers = #tpu.dot_dimension_numbers<[1], [0], [0], [1], [0, 0, 1, 1], [], []>} : vector<256x128xbf16>, vector<128x128xbf16>, vector<256x128xf32> -> vector<256x128xf32>
    %c0_48 = arith.constant 0 : index
    %c1_49 = arith.constant 1 : index
    %c0_50 = arith.constant 0 : index
    %c0_51 = arith.constant 0 : index
    %47 = vector.load %arg2[%c0_48, %c1_49, %c0_50, %c0_51] : memref<1x18x16x128xbf16, #tpu.memory_space<vmem>>, vector<1x16x16x128xbf16>
    %48 = vector.shape_cast %47 : vector<1x16x16x128xbf16> to vector<256x128xbf16>
    %c5 = arith.constant 5 : index
    %c0_52 = arith.constant 0 : index
    %c0_53 = arith.constant 0 : index
    %49 = vector.load %arg4[%c5, %c0_52, %c0_53] : memref<8x128x128xbf16, #tpu.memory_space<vmem>>, vector<1x128x128xbf16>
    %50 = vector.shape_cast %49 : vector<1x128x128xbf16> to vector<128x128xbf16>
    %cst_54 = arith.constant dense<0.000000e+00> : vector<256x128xf32>
    %51 = tpu.matmul %48, %50, %cst_54 {dimension_numbers = #tpu.dot_dimension_numbers<[1], [0], [0], [1], [0, 0, 1, 1], [], []>} : vector<256x128xbf16>, vector<128x128xbf16>, vector<256x128xf32> -> vector<256x128xf32>
    %52 = arith.addf %46, %51 : vector<256x128xf32>
    %53 = vector.shape_cast %52 : vector<256x128xf32> to vector<1x256x128xf32>
    %c2_55 = arith.constant 2 : index
    %c0_56 = arith.constant 0 : index
    %c0_57 = arith.constant 0 : index
    %c0_58 = arith.constant 0 : index
    %54 = vector.load %arg6[%c2_55, %c0_56, %c0_57, %c0_58] : memref<4x1x256x128xf32, #tpu.memory_space<vmem>>, vector<1x1x256x128xf32>
    %55 = vector.shape_cast %54 : vector<1x1x256x128xf32> to vector<1x256x128xf32>
    %56 = vector.shape_cast %53 : vector<1x256x128xf32> to vector<1x1x256x128xf32>
    tpu.vector_store %arg6[%c2_55, %c0_56, %c0_57, %c0_58], %56 {strides = array<i32>} : memref<4x1x256x128xf32, #tpu.memory_space<vmem>>, vector<1x1x256x128xf32>,
    %cst_59 = arith.constant dense<0.000000e+00> : vector<1x128xf32>
    %57 = vector.multi_reduction <add>, %53, %cst_59 [1] : vector<1x256x128xf32> to vector<1x128xf32>
    %58 = arith.addf %38, %57 : vector<1x128xf32>
    %59 = arith.mulf %53, %53 : vector<1x256x128xf32>
    %cst_60 = arith.constant dense<0.000000e+00> : vector<1x128xf32>
    %60 = vector.multi_reduction <add>, %59, %cst_60 [1] : vector<1x256x128xf32> to vector<1x128xf32>
    %61 = arith.addf %41, %60 : vector<1x128xf32>
    %c0_61 = arith.constant 0 : index
    %c2_62 = arith.constant 2 : index
    %c0_63 = arith.constant 0 : index
    %c0_64 = arith.constant 0 : index
    %62 = vector.load %arg3[%c0_61, %c2_62, %c0_63, %c0_64] : memref<1x18x16x128xbf16, #tpu.memory_space<vmem>>, vector<1x16x16x128xbf16>
    %63 = vector.shape_cast %62 : vector<1x16x16x128xbf16> to vector<256x128xbf16>
    %c6 = arith.constant 6 : index
    %c0_65 = arith.constant 0 : index
    %c0_66 = arith.constant 0 : index
    %64 = vector.load %arg4[%c6, %c0_65, %c0_66] : memref<8x128x128xbf16, #tpu.memory_space<vmem>>, vector<1x128x128xbf16>
    %65 = vector.shape_cast %64 : vector<1x128x128xbf16> to vector<128x128xbf16>
    %cst_67 = arith.constant dense<0.000000e+00> : vector<256x128xf32>
    %66 = tpu.matmul %63, %65, %cst_67 {dimension_numbers = #tpu.dot_dimension_numbers<[1], [0], [0], [1], [0, 0, 1, 1], [], []>} : vector<256x128xbf16>, vector<128x128xbf16>, vector<256x128xf32> -> vector<256x128xf32>
    %c0_68 = arith.constant 0 : index
    %c1_69 = arith.constant 1 : index
    %c0_70 = arith.constant 0 : index
    %c0_71 = arith.constant 0 : index
    %67 = vector.load %arg3[%c0_68, %c1_69, %c0_70, %c0_71] : memref<1x18x16x128xbf16, #tpu.memory_space<vmem>>, vector<1x16x16x128xbf16>
    %68 = vector.shape_cast %67 : vector<1x16x16x128xbf16> to vector<256x128xbf16>
    %c7 = arith.constant 7 : index
    %c0_72 = arith.constant 0 : index
    %c0_73 = arith.constant 0 : index
    %69 = vector.load %arg4[%c7, %c0_72, %c0_73] : memref<8x128x128xbf16, #tpu.memory_space<vmem>>, vector<1x128x128xbf16>
    %70 = vector.shape_cast %69 : vector<1x128x128xbf16> to vector<128x128xbf16>
    %cst_74 = arith.constant dense<0.000000e+00> : vector<256x128xf32>
    %71 = tpu.matmul %68, %70, %cst_74 {dimension_numbers = #tpu.dot_dimension_numbers<[1], [0], [0], [1], [0, 0, 1, 1], [], []>} : vector<256x128xbf16>, vector<128x128xbf16>, vector<256x128xf32> -> vector<256x128xf32>
    %72 = arith.addf %66, %71 : vector<256x128xf32>
    %73 = vector.shape_cast %72 : vector<256x128xf32> to vector<1x256x128xf32>
    %c3_75 = arith.constant 3 : index
    %c0_76 = arith.constant 0 : index
    %c0_77 = arith.constant 0 : index
    %c0_78 = arith.constant 0 : index
    %74 = vector.load %arg6[%c3_75, %c0_76, %c0_77, %c0_78] : memref<4x1x256x128xf32, #tpu.memory_space<vmem>>, vector<1x1x256x128xf32>
    %75 = vector.shape_cast %74 : vector<1x1x256x128xf32> to vector<1x256x128xf32>
    %76 = vector.shape_cast %73 : vector<1x256x128xf32> to vector<1x1x256x128xf32>
    tpu.vector_store %arg6[%c3_75, %c0_76, %c0_77, %c0_78], %76 {strides = array<i32>} : memref<4x1x256x128xf32, #tpu.memory_space<vmem>>, vector<1x1x256x128xf32>,
    %cst_79 = arith.constant dense<0.000000e+00> : vector<1x128xf32>
    %77 = vector.multi_reduction <add>, %73, %cst_79 [1] : vector<1x256x128xf32> to vector<1x128xf32>
    %78 = arith.addf %58, %77 : vector<1x128xf32>
    %79 = arith.mulf %73, %73 : vector<1x256x128xf32>
    %cst_80 = arith.constant dense<0.000000e+00> : vector<1x128xf32>
    %80 = vector.multi_reduction <add>, %79, %cst_80 [1] : vector<1x256x128xf32> to vector<1x128xf32>
    %81 = arith.addf %61, %80 : vector<1x128xf32>
    %cst_81 = arith.constant 9.765625E-4 : f32
    %82 = vector.broadcast %cst_81 : f32 to vector<1x128xf32>
    %83 = arith.mulf %78, %82 : vector<1x128xf32>
    %cst_82 = arith.constant 9.765625E-4 : f32
    %84 = vector.broadcast %cst_82 : f32 to vector<1x128xf32>
    %85 = arith.mulf %81, %84 : vector<1x128xf32>
    %86 = arith.mulf %83, %83 : vector<1x128xf32>
    %87 = arith.subf %85, %86 : vector<1x128xf32>
    %cst_83 = arith.constant 9.99999974E-6 : f32
    %88 = vector.broadcast %cst_83 : f32 to vector<1x128xf32>
    %89 = arith.addf %87, %88 : vector<1x128xf32>
    %90 = math.rsqrt %89 : vector<1x128xf32>
    %91 = vector.shape_cast %83 : vector<1x128xf32> to vector<1x1x128xf32>
    %92 = vector.shape_cast %90 : vector<1x128xf32> to vector<1x1x128xf32>
    %c0_84 = arith.constant 0 : index
    %c0_85 = arith.constant 0 : index
    %c0_86 = arith.constant 0 : index
    %c0_87 = arith.constant 0 : index
    %93 = vector.load %arg6[%c0_84, %c0_85, %c0_86, %c0_87] : memref<4x1x256x128xf32, #tpu.memory_space<vmem>>, vector<1x1x256x128xf32>
    %94 = vector.shape_cast %93 : vector<1x1x256x128xf32> to vector<1x256x128xf32>
    %95 = vector.broadcast %91 : vector<1x1x128xf32> to vector<1x256x128xf32>
    %96 = arith.subf %94, %95 : vector<1x256x128xf32>
    %97 = vector.broadcast %92 : vector<1x1x128xf32> to vector<1x256x128xf32>
    %98 = arith.mulf %96, %97 : vector<1x256x128xf32>
    %cst_88 = arith.constant 0.000000e+00 : f32
    %99 = vector.broadcast %cst_88 : f32 to vector<1x256x128xf32>
    %100 = arith.maximumf %98, %99 : vector<1x256x128xf32>
    %101 = vector.shape_cast %100 : vector<1x256x128xf32> to vector<1x16x16x128xf32>
    %102 = arith.truncf %101 : vector<1x16x16x128xf32> to vector<1x16x16x128xbf16>
    %c0_89 = arith.constant 0 : index
    %c0_90 = arith.constant 0 : index
    %c0_91 = arith.constant 0 : index
    %c0_92 = arith.constant 0 : index
    %c0_93 = arith.constant 0 : index
    %103 = vector.load %arg5[%c0_89, %c0_90, %c0_91, %c0_92, %c0_93] : memref<4x1x16x16x128xbf16, #tpu.memory_space<vmem>>, vector<1x1x16x16x128xbf16>
    %104 = vector.shape_cast %103 : vector<1x1x16x16x128xbf16> to vector<1x16x16x128xbf16>
    %105 = vector.shape_cast %102 : vector<1x16x16x128xbf16> to vector<1x1x16x16x128xbf16>
    tpu.vector_store %arg5[%c0_89, %c0_90, %c0_91, %c0_92, %c0_93], %105 {strides = array<i32>} : memref<4x1x16x16x128xbf16, #tpu.memory_space<vmem>>, vector<1x1x16x16x128xbf16>,
    %c1_94 = arith.constant 1 : index
    %c0_95 = arith.constant 0 : index
    %c0_96 = arith.constant 0 : index
    %c0_97 = arith.constant 0 : index
    %106 = vector.load %arg6[%c1_94, %c0_95, %c0_96, %c0_97] : memref<4x1x256x128xf32, #tpu.memory_space<vmem>>, vector<1x1x256x128xf32>
    %107 = vector.shape_cast %106 : vector<1x1x256x128xf32> to vector<1x256x128xf32>
    %108 = vector.broadcast %91 : vector<1x1x128xf32> to vector<1x256x128xf32>
    %109 = arith.subf %107, %108 : vector<1x256x128xf32>
    %110 = vector.broadcast %92 : vector<1x1x128xf32> to vector<1x256x128xf32>
    %111 = arith.mulf %109, %110 : vector<1x256x128xf32>
    %cst_98 = arith.constant 0.000000e+00 : f32
    %112 = vector.broadcast %cst_98 : f32 to vector<1x256x128xf32>
    %113 = arith.maximumf %111, %112 : vector<1x256x128xf32>
    %114 = vector.shape_cast %113 : vector<1x256x128xf32> to vector<1x16x16x128xf32>
    %115 = arith.truncf %114 : vector<1x16x16x128xf32> to vector<1x16x16x128xbf16>
    %c1_99 = arith.constant 1 : index
    %c0_100 = arith.constant 0 : index
    %c0_101 = arith.constant 0 : index
    %c0_102 = arith.constant 0 : index
    %c0_103 = arith.constant 0 : index
    %116 = vector.load %arg5[%c1_99, %c0_100, %c0_101, %c0_102, %c0_103] : memref<4x1x16x16x128xbf16, #tpu.memory_space<vmem>>, vector<1x1x16x16x128xbf16>
    %117 = vector.shape_cast %116 : vector<1x1x16x16x128xbf16> to vector<1x16x16x128xbf16>
    %118 = vector.shape_cast %115 : vector<1x16x16x128xbf16> to vector<1x1x16x16x128xbf16>
    tpu.vector_store %arg5[%c1_99, %c0_100, %c0_101, %c0_102, %c0_103], %118 {strides = array<i32>} : memref<4x1x16x16x128xbf16, #tpu.memory_space<vmem>>, vector<1x1x16x16x128xbf16>,
    %c2_104 = arith.constant 2 : index
    %c0_105 = arith.constant 0 : index
    %c0_106 = arith.constant 0 : index
    %c0_107 = arith.constant 0 : index
    %119 = vector.load %arg6[%c2_104, %c0_105, %c0_106, %c0_107] : memref<4x1x256x128xf32, #tpu.memory_space<vmem>>, vector<1x1x256x128xf32>
    %120 = vector.shape_cast %119 : vector<1x1x256x128xf32> to vector<1x256x128xf32>
    %121 = vector.broadcast %91 : vector<1x1x128xf32> to vector<1x256x128xf32>
    %122 = arith.subf %120, %121 : vector<1x256x128xf32>
    %123 = vector.broadcast %92 : vector<1x1x128xf32> to vector<1x256x128xf32>
    %124 = arith.mulf %122, %123 : vector<1x256x128xf32>
    %cst_108 = arith.constant 0.000000e+00 : f32
    %125 = vector.broadcast %cst_108 : f32 to vector<1x256x128xf32>
    %126 = arith.maximumf %124, %125 : vector<1x256x128xf32>
    %127 = vector.shape_cast %126 : vector<1x256x128xf32> to vector<1x16x16x128xf32>
    %128 = arith.truncf %127 : vector<1x16x16x128xf32> to vector<1x16x16x128xbf16>
    %c2_109 = arith.constant 2 : index
    %c0_110 = arith.constant 0 : index
    %c0_111 = arith.constant 0 : index
    %c0_112 = arith.constant 0 : index
    %c0_113 = arith.constant 0 : index
    %129 = vector.load %arg5[%c2_109, %c0_110, %c0_111, %c0_112, %c0_113] : memref<4x1x16x16x128xbf16, #tpu.memory_space<vmem>>, vector<1x1x16x16x128xbf16>
    %130 = vector.shape_cast %129 : vector<1x1x16x16x128xbf16> to vector<1x16x16x128xbf16>
    %131 = vector.shape_cast %128 : vector<1x16x16x128xbf16> to vector<1x1x16x16x128xbf16>
    tpu.vector_store %arg5[%c2_109, %c0_110, %c0_111, %c0_112, %c0_113], %131 {strides = array<i32>} : memref<4x1x16x16x128xbf16, #tpu.memory_space<vmem>>, vector<1x1x16x16x128xbf16>,
    %c3_114 = arith.constant 3 : index
    %c0_115 = arith.constant 0 : index
    %c0_116 = arith.constant 0 : index
    %c0_117 = arith.constant 0 : index
    %132 = vector.load %arg6[%c3_114, %c0_115, %c0_116, %c0_117] : memref<4x1x256x128xf32, #tpu.memory_space<vmem>>, vector<1x1x256x128xf32>
    %133 = vector.shape_cast %132 : vector<1x1x256x128xf32> to vector<1x256x128xf32>
    %134 = vector.broadcast %91 : vector<1x1x128xf32> to vector<1x256x128xf32>
    %135 = arith.subf %133, %134 : vector<1x256x128xf32>
    %136 = vector.broadcast %92 : vector<1x1x128xf32> to vector<1x256x128xf32>
    %137 = arith.mulf %135, %136 : vector<1x256x128xf32>
    %cst_118 = arith.constant 0.000000e+00 : f32
    %138 = vector.broadcast %cst_118 : f32 to vector<1x256x128xf32>
    %139 = arith.maximumf %137, %138 : vector<1x256x128xf32>
    %140 = vector.shape_cast %139 : vector<1x256x128xf32> to vector<1x16x16x128xf32>
    %141 = arith.truncf %140 : vector<1x16x16x128xf32> to vector<1x16x16x128xbf16>
    %c3_119 = arith.constant 3 : index
    %c0_120 = arith.constant 0 : index
    %c0_121 = arith.constant 0 : index
    %c0_122 = arith.constant 0 : index
    %c0_123 = arith.constant 0 : index
    %142 = vector.load %arg5[%c3_119, %c0_120, %c0_121, %c0_122, %c0_123] : memref<4x1x16x16x128xbf16, #tpu.memory_space<vmem>>, vector<1x1x16x16x128xbf16>
    %143 = vector.shape_cast %142 : vector<1x1x16x16x128xbf16> to vector<1x16x16x128xbf16>
    %144 = vector.shape_cast %141 : vector<1x16x16x128xbf16> to vector<1x1x16x16x128xbf16>
    tpu.vector_store %arg5[%c3_119, %c0_120, %c0_121, %c0_122, %c0_123], %144 {strides = array<i32>} : memref<4x1x16x16x128xbf16, #tpu.memory_space<vmem>>, vector<1x1x16x16x128xbf16>,
    return
  }
  func.func @transform_0(%arg0: i32, %arg1: i32) -> (i32, i32, i32, i32) {
    %c0_i32 = arith.constant 0 : i32
    %c0_i32_0 = arith.constant 0 : i32
    %c0_i32_1 = arith.constant 0 : i32
    %c0_i32_2 = arith.constant 0 : i32
    return %arg1, %c0_i32, %c0_i32_0, %c0_i32_1 : i32, i32, i32, i32
  }
  func.func @transform_1(%arg0: i32, %arg1: i32) -> (i32, i32, i32, i32) {
    %c0_i32 = arith.constant 0 : i32
    %c0_i32_0 = arith.constant 0 : i32
    %c0_i32_1 = arith.constant 0 : i32
    %c0_i32_2 = arith.constant 0 : i32
    return %arg1, %c0_i32, %c0_i32_0, %c0_i32_1 : i32, i32, i32, i32
  }
  func.func @transform_2(%arg0: i32, %arg1: i32) -> (i32, i32, i32) {
    %c0_i32 = arith.constant 0 : i32
    %c0_i32_0 = arith.constant 0 : i32
    %c0_i32_1 = arith.constant 0 : i32
    return %c0_i32, %c0_i32_0, %arg0 : i32, i32, i32
  }
  func.func @transform_3(%arg0: i32, %arg1: i32) -> (i32, i32, i32, i32, i32) {
    %c0_i32 = arith.constant 0 : i32
    %c0_i32_0 = arith.constant 0 : i32
    %c0_i32_1 = arith.constant 0 : i32
    %c0_i32_2 = arith.constant 0 : i32
    return %c0_i32, %arg1, %c0_i32_0, %c0_i32_1, %arg0 : i32, i32, i32, i32, i32
  }
}

</mosaic_0001>

<llo_original>
// kernel: tpu_custom_call.1
$region0: #{tpu_custom_call.1}
  #allocation0 [shape = 'u32[]', space=smem, size = 0x4, offset = 0x4, fixed_abs, tag = 'smem constant byte address 0x4 - core index']
  #allocation1 [shape = 'u32[144,128]{1,0:T(1,128)}', space=vmem, size = 0x12000, scoped, tag = 'internal scratch']
  #allocation2 [shape = 'f32[4,1,256,128]{3,2,1,0:T(8,128)}', space=vmem, size = 0x80000, scoped, tag = 'scratch operand']
  #allocation10 [shape = 's32[]', space=sflag, size = 0x4, offset = 0, fixed_abs, tag = 'sflag constant byte address 0x0 - dummy sync flag']
  %s0 = inlined_call_operand.hbm [shape: bf16[2,18,16,128], index: 0, kind: input, shape index: {}]
  %s1 = inlined_call_operand.hbm [shape: bf16[2,18,16,128], index: 1, kind: input, shape index: {}]
  %s2 = inlined_call_operand.hbm [shape: bf16[8,128,128], index: 2, kind: input, shape index: {}]
  %s3 = inlined_call_operand.hbm [shape: bf16[4,2,16,16,128], index: 3, kind: output, shape index: {}]
  %s4 = sld [smem:[#allocation0]]
  $region57: #{tpu_custom_call.1} parent=0
    _
  %s6 = ssub.s32 1, %s4
  %s7 = scalar_select 0, %s6, %s4
  $region1: #{tpu_custom_call.1} parent=0
    #allocation3 [shape = 'u8[147456]{0}', space=vmem, size = 0x24000, scoped, tag = 'input window, operand 0']
    #allocation4 [shape = 's32[2]{0}', space=sflag, size = 0x8, scoped, tag = 'scoped memory for tpu_custom_call.1']
    #allocation5 [shape = 's32[2]{0}', space=sflag, size = 0x8, scoped, tag = 'scoped memory for tpu_custom_call.1']
    #allocation6 [shape = 'u8[147456]{0}', space=vmem, size = 0x24000, scoped, tag = 'input window, operand 1']
    #allocation7 [shape = 's32[2]{0}', space=sflag, size = 0x8, scoped, tag = 'scoped memory for tpu_custom_call.1']
    #allocation8 [shape = 'u8[262144]{0}', space=vmem, size = 0x40000, scoped, tag = 'input window, operand 2, single buffered']
    #allocation9 [shape = 'u8[524288]{0}', space=vmem, size = 0x80000, scoped, tag = 'output window, operand 0']
    %8 = vsyncpa [#allocation4], 0
    %s9 = scalar_lea.sflag [#allocation4], 1
    %10 = vsyncpa %s9, 0
    %11 = vsyncpa [#allocation7], 0
    %s12 = scalar_lea.sflag [#allocation7], 1
    %13 = vsyncpa %s12, 0
    %14 = vsyncpa [#allocation5], 0
    %s15 = scalar_lea.sflag [#allocation5], 1
    %16 = vsyncpa %s15, 0
    loop: start=0, step=1, limit=4
    $region2: #{tpu_custom_call.1} parent=1 // loop_pre_header
      _
    $region3: #{tpu_custom_call.1} parent=1 // loop_header
      %s18 = sphi 0, %s22
      %p19 = scmp.ge.s32.totalorder %s18, 4
      %s25 = sphi 0, %s37
      %s26 = sphi 0, %s33
      %s27 = sphi 0, %s25
      %s28 = sphi 0, %s26
      %s29 = sphi 0, %s27
      %s30 = sphi 0, %s28
      %s40 = sphi 0, %s42
      %s43 = sphi 0, %s40
      %s44 = sphi 0, %s43
      %s60 = sphi 0, %s44
      %s66 = sphi 0, %s68
      %s69 = sphi 0, %s66
      %s70 = sphi 0, %s69
      %s86 = sphi 0, %s70
      %s92 = sphi 0, %s94
      %s95 = sphi 0, %s92
      %s96 = sphi 0, %s95
      %s112 = sphi 0, %s96
      %s120 = sphi 0, %s122
      %s123 = sphi 0, %s120
      %s124 = sphi 0, %s123
      %s140 = sphi 0, %s124
    $region4: #{tpu_custom_call.1} parent=1 // loop_header_branch
      %21 = sbr.rel (%p19) target = $region8
    $region5: #{tpu_custom_call.1} parent=1 // loop_body
      %s23 = ssub.s32 %s18, 1
      %s24 = ssub.s32 %s18, 2
      %s31 = sadd.s32 1, %s26
      %p32 = scmp.ge.s32.totalorder %s31, 2
      %s33 = scalar_select %p32, 0, %s31
      %s34 = sadd.s32 1, %s25
      %s35 = scalar_select %p32, %s34, %s25
      %p36 = scmp.ge.s32.totalorder %s35, 1
      %s37 = scalar_select %p36, 0, %s35
      %s38 = ssub.s32 %s26, %s33
      %p39 = scmp.eq.s32.totalorder %s38, 0
      %s41 = sadd.s32 %s40, 1
      %s42 = scalar_select %p39, %s40, %s41
      %p45 = pneg %p39
      %p46 = scmp.eq.s32.totalorder %s18, 1
      %p47 = por %p45, %p46
      %p48 = scmp.ne.s32.totalorder %s40, %s43
      %p49 = scmp.eq.s32.totalorder %s18, 0
      %p50 = por %p48, %p49
      %p51 = scmp.ne.s32.totalorder %s40, %s43
      %p52 = scmp.eq.s32.totalorder %s23, 1
      %p53 = por %p51, %p52
      %p54 = scmp.ne.s32.totalorder %s43, %s44
      %p55 = scmp.eq.s32.totalorder %s23, 0
      %p56 = por %p54, %p55
      %p57 = scmp.ne.s32.totalorder %s43, %s44
      %p58 = scmp.eq.s32.totalorder %s24, 1
      %p59 = por %p57, %p58
      %p61 = scmp.ne.s32.totalorder %s44, %s60
      %p62 = scmp.eq.s32.totalorder %s24, 0
      %p63 = por %p61, %p62
      %s64 = ssub.s32 %s26, %s33
      %p65 = scmp.eq.s32.totalorder %s64, 0
      %s67 = sadd.s32 %s66, 1
      %s68 = scalar_select %p65, %s66, %s67
      %p71 = pneg %p65
      %p72 = scmp.eq.s32.totalorder %s18, 1
      %p73 = por %p71, %p72
      %p74 = scmp.ne.s32.totalorder %s66, %s69
      %p75 = scmp.eq.s32.totalorder %s18, 0
      %p76 = por %p74, %p75
      %p77 = scmp.ne.s32.totalorder %s66, %s69
      %p78 = scmp.eq.s32.totalorder %s23, 1
      %p79 = por %p77, %p78
      %p80 = scmp.ne.s32.totalorder %s69, %s70
      %p81 = scmp.eq.s32.totalorder %s23, 0
      %p82 = por %p80, %p81
      %p83 = scmp.ne.s32.totalorder %s69, %s70
      %p84 = scmp.eq.s32.totalorder %s24, 1
      %p85 = por %p83, %p84
      %p87 = scmp.ne.s32.totalorder %s70, %s86
      %p88 = scmp.eq.s32.totalorder %s24, 0
      %p89 = por %p87, %p88
      %s90 = ssub.s32 %s25, %s37
      %p91 = scmp.eq.s32.totalorder %s90, 0
      %s93 = sadd.s32 %s92, 1
      %s94 = scalar_select %p91, %s92, %s93
      %p97 = pneg %p91
      %p98 = scmp.eq.s32.totalorder %s18, 1
      %p99 = por %p97, %p98
      %p100 = scmp.ne.s32.totalorder %s92, %s95
      %p101 = scmp.eq.s32.totalorder %s18, 0
      %p102 = por %p100, %p101
      %p103 = scmp.ne.s32.totalorder %s92, %s95
      %p104 = scmp.eq.s32.totalorder %s23, 1
      %p105 = por %p103, %p104
      %p106 = scmp.ne.s32.totalorder %s95, %s96
      %p107 = scmp.eq.s32.totalorder %s23, 0
      %p108 = por %p106, %p107
      %p109 = scmp.ne.s32.totalorder %s95, %s96
      %p110 = scmp.eq.s32.totalorder %s24, 1
      %p111 = por %p109, %p110
      %p113 = scmp.ne.s32.totalorder %s96, %s112
      %p114 = scmp.eq.s32.totalorder %s24, 0
      %p115 = por %p113, %p114
      %s116 = ssub.s32 %s26, %s33
      %s117 = ssub.s32 %s25, %s37
      %s118 = sor.u32 %s116, %s117
      %p119 = scmp.eq.s32.totalorder %s118, 0
      %s121 = sadd.s32 %s120, 1
      %s122 = scalar_select %p119, %s120, %s121
      %p125 = pneg %p119
      %p126 = scmp.eq.s32.totalorder %s18, 1
      %p127 = por %p125, %p126
      %p128 = scmp.ne.s32.totalorder %s120, %s123
      %p129 = scmp.eq.s32.totalorder %s18, 0
      %p130 = por %p128, %p129
      %p131 = scmp.ne.s32.totalorder %s120, %s123
      %p132 = scmp.eq.s32.totalorder %s23, 1
      %p133 = por %p131, %p132
      %p134 = scmp.ne.s32.totalorder %s123, %s124
      %p135 = scmp.eq.s32.totalorder %s23, 0
      %p136 = por %p134, %p135
      %p137 = scmp.ne.s32.totalorder %s123, %s124
      %p138 = scmp.eq.s32.totalorder %s24, 1
      %p139 = por %p137, %p138
      %p141 = scmp.ne.s32.totalorder %s124, %s140
      %p142 = scmp.eq.s32.totalorder %s24, 0
      %p143 = por %p141, %p142
      %p144 = scmp.le.s32.totalorder 1, %s18
      %p145 = scmp.lt.s32.totalorder %s18, 3
      %p146 = pnand %p144, %p145
      %p147 = pneg %p146
      // Predicated region
      $region9: #{tpu_custom_call.1} parent=5 // pred_check
        _
      $region10: #{tpu_custom_call.1} parent=5 // pred_check_branch
        %149 = sbr.rel (%p146) target = $region12
      $region11: #{tpu_custom_call.1} parent=5 // pred_region
        %s150 = ssub.s32 %s18, 1
        // Predicated region
        $region13: #{tpu_custom_call.1} parent=11 // pred_check
          %p151 = pneg %p108
        $region14: #{tpu_custom_call.1} parent=11 // pred_check_branch
          %153 = sbr.rel (%p151) target = $region16
        $region15: #{tpu_custom_call.1} parent=11 // pred_region
          %s155 = ssub.s32 8192, 8192
          %156 = vsyncadd [#allocation7], %s155
          %s157 = smul.addr %s27, 64
          %s158 = scalar_lea.hbm %s2, %s157
          %s159 = sshll.u32 [#allocation8], 4
          %s160 = int_to_ptr.vmem [resolvable:$true] %s159
          %165 = dma.hbm_to_vmem [thread:$0]  %s158, 8192, %s160, [#allocation7], 64, 64, 4
        $region16: #{tpu_custom_call.1} parent=11 // pred_fallthru
          _
      $region12: #{tpu_custom_call.1} parent=5 // pred_fallthru
        _
      %p166 = scmp.lt.s32.totalorder %s18, 2
      // Predicated region
      $region17: #{tpu_custom_call.1} parent=5 // pred_check
        %p167 = pneg %p166
      $region18: #{tpu_custom_call.1} parent=5 // pred_check_branch
        %169 = sbr.rel (%p167) target = $region20
      $region19: #{tpu_custom_call.1} parent=5 // pred_region
        // Predicated region
        $region21: #{tpu_custom_call.1} parent=19 // pred_check
          %p170 = pneg %p50
        $region22: #{tpu_custom_call.1} parent=19 // pred_check_branch
          %172 = sbr.rel (%p170) target = $region24
        $region23: #{tpu_custom_call.1} parent=19 // pred_region
          %s173 = sand.u32 %s40, 1
          %s174 = scalar_lea.sflag [#allocation4], %s173
          %s175 = sand.u32 %s40, 1
          %s176 = smul.addr %s175, 144
          %s177 = scalar_lea.vmem [#allocation3], %s176
          %s179 = ssub.s32 2304, 2304
          %180 = vsyncadd %s174, %s179
          %s181 = smul.addr %s26, 36
          %s182 = smul.addr %s181, 64
          %s183 = scalar_lea.hbm %s0, %s182
          %s184 = sshll.u32 %s177, 4
          %s185 = int_to_ptr.vmem [resolvable:$true] %s184
          %190 = dma.hbm_to_vmem [thread:$0]  %s183, 2304, %s185, %s174, 64, 64, 4
        $region24: #{tpu_custom_call.1} parent=19 // pred_fallthru
          _
        // Predicated region
        $region25: #{tpu_custom_call.1} parent=19 // pred_check
          %p191 = pneg %p76
        $region26: #{tpu_custom_call.1} parent=19 // pred_check_branch
          %193 = sbr.rel (%p191) target = $region28
        $region27: #{tpu_custom_call.1} parent=19 // pred_region
          %s194 = sand.u32 %s18, 1
          %s195 = scalar_lea.sflag [#allocation7], %s194
          %s196 = sand.u32 %s66, 1
          %s197 = smul.addr %s196, 144
          %s198 = scalar_lea.vmem [#allocation6], %s197
          %s200 = ssub.s32 2304, 2304
          %201 = vsyncadd %s195, %s200
          %s202 = smul.addr %s26, 36
          %s203 = smul.addr %s202, 64
          %s204 = scalar_lea.hbm %s1, %s203
          %s205 = sshll.u32 %s198, 4
          %s206 = int_to_ptr.vmem [resolvable:$true] %s205
          %211 = dma.hbm_to_vmem [thread:$0]  %s204, 2304, %s206, %s195, 64, 64, 4
        $region28: #{tpu_custom_call.1} parent=19 // pred_fallthru
          _
      $region20: #{tpu_custom_call.1} parent=5 // pred_fallthru
        _
      %p212 = scmp.le.s32.totalorder 1, %s18
      %p213 = scmp.lt.s32.totalorder %s18, 3
      %p214 = pnand %p212, %p213
      %p215 = pneg %p214
      // Predicated region
      $region29: #{tpu_custom_call.1} parent=5 // pred_check
        _
      $region30: #{tpu_custom_call.1} parent=5 // pred_check_branch
        %217 = sbr.rel (%p214) target = $region32
      $region31: #{tpu_custom_call.1} parent=5 // pred_region
        %s218 = ssub.s32 %s18, 1
        %s219 = sand.u32 %s43, 1
        %s220 = scalar_lea.sflag [#allocation4], %s219
        %s221 = sand.u32 %s43, 1
        %s222 = smul.addr %s221, 144
        %s223 = scalar_lea.vmem [#allocation3], %s222
        // Predicated region
        $region33: #{tpu_custom_call.1} parent=31 // pred_check
          %p224 = pneg %p56
        $region34: #{tpu_custom_call.1} parent=31 // pred_check_branch
          %226 = sbr.rel (%p224) target = $region36
        $region35: #{tpu_custom_call.1} parent=31 // pred_region
          %227 = dma.done %s220, 2304
        $region36: #{tpu_custom_call.1} parent=31 // pred_fallthru
          _
        %s228 = sand.u32 %s23, 1
        %s229 = scalar_lea.sflag [#allocation7], %s228
        %s230 = sand.u32 %s69, 1
        %s231 = smul.addr %s230, 144
        %s232 = scalar_lea.vmem [#allocation6], %s231
        // Predicated region
        $region37: #{tpu_custom_call.1} parent=31 // pred_check
          %p233 = pneg %p82
        $region38: #{tpu_custom_call.1} parent=31 // pred_check_branch
          %235 = sbr.rel (%p233) target = $region40
        $region39: #{tpu_custom_call.1} parent=31 // pred_region
          %236 = dma.done %s229, 2304
        $region40: #{tpu_custom_call.1} parent=31 // pred_fallthru
          _
        // Predicated region
        $region41: #{tpu_custom_call.1} parent=31 // pred_check
          %p237 = pneg %p108
        $region42: #{tpu_custom_call.1} parent=31 // pred_check_branch
          %239 = sbr.rel (%p237) target = $region44
        $region43: #{tpu_custom_call.1} parent=31 // pred_region
          %240 = dma.done [#allocation7], 8192
        $region44: #{tpu_custom_call.1} parent=31 // pred_fallthru
          _
        %s241 = sand.u32 %s43, 1
        %s242 = scalar_lea.sflag [#allocation4], %s241
        %s243 = sand.u32 %s43, 1
        %s244 = smul.addr %s243, 144
        %s245 = scalar_lea.vmem [#allocation3], %s244
        %p246 = pneg %p56
        %p247 = pneg %p53
        %s248 = sand.u32 %s23, 1
        %s249 = scalar_lea.sflag [#allocation7], %s248
        %s250 = sand.u32 %s69, 1
        %s251 = smul.addr %s250, 144
        %s252 = scalar_lea.vmem [#allocation6], %s251
        %p253 = pneg %p82
        %p254 = pneg %p79
        %p255 = pneg %p108
        %p256 = pneg %p105
        %p257 = pneg %p136
        %p258 = pneg %p133
        %s259 = sand.u32 %s123, 1
        %s260 = scalar_lea.sflag [#allocation5], %s259
        %s261 = sand.u32 %s123, 1
        %s262 = smul.addr %s261, 512
        %s263 = scalar_lea.vmem [#allocation9], %s262
        %s265 = scalar_lea.vmem %s223, 8 [#allocation3]
        %v266 = vld [vmem:[%s265] sm:$0xf]
        %v267 = vld [vmem:[%s265 + $0x4] sm:$0xf]
        %v268 = vld [vmem:[%s265 + $0x8] sm:$0xf]
        %v269 = vld [vmem:[%s265 + $0xc] sm:$0xf]
        %v270 = vld [vmem:[%s265 + $0x10] sm:$0xf]
        %v271 = vld [vmem:[%s265 + $0x14] sm:$0xf]
        %v272 = vld [vmem:[%s265 + $0x18] sm:$0xf]
        %v273 = vld [vmem:[%s265 + $0x1c] sm:$0xf]
        %v274 = vld [vmem:[%s265 + $0x20] sm:$0xf]
        %v275 = vld [vmem:[%s265 + $0x24] sm:$0xf]
        %v276 = vld [vmem:[%s265 + $0x28] sm:$0xf]
        %v277 = vld [vmem:[%s265 + $0x2c] sm:$0xf]
        %v278 = vld [vmem:[%s265 + $0x30] sm:$0xf]
        %v279 = vld [vmem:[%s265 + $0x34] sm:$0xf]
        %v280 = vld [vmem:[%s265 + $0x38] sm:$0xf]
        %v281 = vld [vmem:[%s265 + $0x3c] sm:$0xf]
        %v282 = vld [vmem:[%s265 + $0x40] sm:$0xf]
        %v283 = vld [vmem:[%s265 + $0x44] sm:$0xf]
        %v284 = vld [vmem:[%s265 + $0x48] sm:$0xf]
        %v285 = vld [vmem:[%s265 + $0x4c] sm:$0xf]
        %v286 = vld [vmem:[%s265 + $0x50] sm:$0xf]
        %v287 = vld [vmem:[%s265 + $0x54] sm:$0xf]
        %v288 = vld [vmem:[%s265 + $0x58] sm:$0xf]
        %v289 = vld [vmem:[%s265 + $0x5c] sm:$0xf]
        %v290 = vld [vmem:[%s265 + $0x60] sm:$0xf]
        %v291 = vld [vmem:[%s265 + $0x64] sm:$0xf]
        %v292 = vld [vmem:[%s265 + $0x68] sm:$0xf]
        %v293 = vld [vmem:[%s265 + $0x6c] sm:$0xf]
        %v294 = vld [vmem:[%s265 + $0x70] sm:$0xf]
        %v295 = vld [vmem:[%s265 + $0x74] sm:$0xf]
        %v296 = vld [vmem:[%s265 + $0x78] sm:$0xf]
        %v297 = vld [vmem:[%s265 + $0x7c] sm:$0xf]
        %v298 = vld [vmem:[#allocation8] sm:$0xf]
        %v299 = vld [vmem:[#allocation8 + $0x4] sm:$0xf]
        %v300 = vld [vmem:[#allocation8 + $0x8] sm:$0xf]
        %v301 = vld [vmem:[#allocation8 + $0xc] sm:$0xf]
        %v302 = vld [vmem:[#allocation8 + $0x10] sm:$0xf]
        %v303 = vld [vmem:[#allocation8 + $0x14] sm:$0xf]
        %v304 = vld [vmem:[#allocation8 + $0x18] sm:$0xf]
        %v305 = vld [vmem:[#allocation8 + $0x1c] sm:$0xf]
        %v306 = vld [vmem:[#allocation8 + $0x20] sm:$0xf]
        %v307 = vld [vmem:[#allocation8 + $0x24] sm:$0xf]
        %v308 = vld [vmem:[#allocation8 + $0x28] sm:$0xf]
        %v309 = vld [vmem:[#allocation8 + $0x2c] sm:$0xf]
        %v310 = vld [vmem:[#allocation8 + $0x30] sm:$0xf]
        %v311 = vld [vmem:[#allocation8 + $0x34] sm:$0xf]
        %v312 = vld [vmem:[#allocation8 + $0x38] sm:$0xf]
        %v313 = vld [vmem:[#allocation8 + $0x3c] sm:$0xf]
        %v314 = vld [vmem:[%s223] sm:$0xf]
        %v315 = vld [vmem:[%s223 + $0x4] sm:$0xf]
        %v316 = vld [vmem:[%s223 + $0x8] sm:$0xf]
        %v317 = vld [vmem:[%s223 + $0xc] sm:$0xf]
        %v318 = vld [vmem:[%s223 + $0x10] sm:$0xf]
        %v319 = vld [vmem:[%s223 + $0x14] sm:$0xf]
        %v320 = vld [vmem:[%s223 + $0x18] sm:$0xf]
        %v321 = vld [vmem:[%s223 + $0x1c] sm:$0xf]
        %v322 = vld [vmem:[%s223 + $0x20] sm:$0xf]
        %v323 = vld [vmem:[%s223 + $0x24] sm:$0xf]
        %v324 = vld [vmem:[%s223 + $0x28] sm:$0xf]
        %v325 = vld [vmem:[%s223 + $0x2c] sm:$0xf]
        %v326 = vld [vmem:[%s223 + $0x30] sm:$0xf]
        %v327 = vld [vmem:[%s223 + $0x34] sm:$0xf]
        %v328 = vld [vmem:[%s223 + $0x38] sm:$0xf]
        %v329 = vld [vmem:[%s223 + $0x3c] sm:$0xf]
        %v330 = vld [vmem:[%s223 + $0x40] sm:$0xf]
        %v331 = vld [vmem:[%s223 + $0x44] sm:$0xf]
        %v332 = vld [vmem:[%s223 + $0x48] sm:$0xf]
        %v333 = vld [vmem:[%s223 + $0x4c] sm:$0xf]
        %v334 = vld [vmem:[%s223 + $0x50] sm:$0xf]
        %v335 = vld [vmem:[%s223 + $0x54] sm:$0xf]
        %v336 = vld [vmem:[%s223 + $0x58] sm:$0xf]
        %v337 = vld [vmem:[%s223 + $0x5c] sm:$0xf]
        %v338 = vld [vmem:[%s223 + $0x60] sm:$0xf]
        %v339 = vld [vmem:[%s223 + $0x64] sm:$0xf]
        %v340 = vld [vmem:[%s223 + $0x68] sm:$0xf]
        %v341 = vld [vmem:[%s223 + $0x6c] sm:$0xf]
        %v342 = vld [vmem:[%s223 + $0x70] sm:$0xf]
        %v343 = vld [vmem:[%s223 + $0x74] sm:$0xf]
        %v344 = vld [vmem:[%s223 + $0x78] sm:$0xf]
        %v345 = vld [vmem:[%s223 + $0x7c] sm:$0xf]
        %s346 = scalar_lea.vmem [#allocation8], 64
        %v347 = vld [vmem:[%s346] sm:$0xf]
        %v348 = vld [vmem:[%s346 + $0x4] sm:$0xf]
        %v349 = vld [vmem:[%s346 + $0x8] sm:$0xf]
        %v350 = vld [vmem:[%s346 + $0xc] sm:$0xf]
        %v351 = vld [vmem:[%s346 + $0x10] sm:$0xf]
        %v352 = vld [vmem:[%s346 + $0x14] sm:$0xf]
        %v353 = vld [vmem:[%s346 + $0x18] sm:$0xf]
        %v354 = vld [vmem:[%s346 + $0x1c] sm:$0xf]
        %v355 = vld [vmem:[%s346 + $0x20] sm:$0xf]
        %v356 = vld [vmem:[%s346 + $0x24] sm:$0xf]
        %v357 = vld [vmem:[%s346 + $0x28] sm:$0xf]
        %v358 = vld [vmem:[%s346 + $0x2c] sm:$0xf]
        %v359 = vld [vmem:[%s346 + $0x30] sm:$0xf]
        %v360 = vld [vmem:[%s346 + $0x34] sm:$0xf]
        %v361 = vld [vmem:[%s346 + $0x38] sm:$0xf]
        %v362 = vld [vmem:[%s346 + $0x3c] sm:$0xf]
        %v395 = vunpack.c.l.b16 %v314
        %v396 = vunpack.c.l.b16 %v315
        %v397 = vunpack.c.l.b16 %v316
        %v398 = vunpack.c.l.b16 %v317
        %v399 = vunpack.c.l.b16 %v318
        %v400 = vunpack.c.l.b16 %v319
        %v401 = vunpack.c.l.b16 %v320
        %v402 = vunpack.c.l.b16 %v321
        %v403 = vunpack.c.l.b16 %v322
        %v404 = vunpack.c.l.b16 %v323
        %v405 = vunpack.c.l.b16 %v324
        %v406 = vunpack.c.l.b16 %v325
        %v407 = vunpack.c.l.b16 %v326
        %v408 = vunpack.c.l.b16 %v327
        %v409 = vunpack.c.l.b16 %v328
        %v410 = vunpack.c.l.b16 %v329
        %v411 = vunpack.c.l.b16 %v330
        %v412 = vunpack.c.l.b16 %v331
        %v413 = vunpack.c.l.b16 %v332
        %v414 = vunpack.c.l.b16 %v333
        %v415 = vunpack.c.l.b16 %v334
        %v416 = vunpack.c.l.b16 %v335
        %v417 = vunpack.c.l.b16 %v336
        %v418 = vunpack.c.l.b16 %v337
        %v419 = vunpack.c.l.b16 %v338
        %v420 = vunpack.c.l.b16 %v339
        %v421 = vunpack.c.l.b16 %v340
        %v422 = vunpack.c.l.b16 %v341
        %v423 = vunpack.c.l.b16 %v342
        %v424 = vunpack.c.l.b16 %v343
        %v425 = vunpack.c.l.b16 %v344
        %v426 = vunpack.c.l.b16 %v345
        %v427 = vpack.c.b16 %v396, %v395
        %v428 = vpack.c.b16 %v398, %v397
        %v429 = vpack.c.b16 %v400, %v399
        %v430 = vpack.c.b16 %v402, %v401
        %v431 = vpack.c.b16 %v404, %v403
        %v432 = vpack.c.b16 %v406, %v405
        %v433 = vpack.c.b16 %v408, %v407
        %v434 = vpack.c.b16 %v410, %v409
        %v435 = vpack.c.b16 %v412, %v411
        %v436 = vpack.c.b16 %v414, %v413
        %v437 = vpack.c.b16 %v416, %v415
        %v438 = vpack.c.b16 %v418, %v417
        %v439 = vpack.c.b16 %v420, %v419
        %v440 = vpack.c.b16 %v422, %v421
        %v441 = vpack.c.b16 %v424, %v423
        %v442 = vpack.c.b16 %v426, %v425
        %v475 = vunpack.c.l.b16 %v347
        %v476 = vunpack.c.l.b16 %v348
        %v477 = vunpack.c.l.b16 %v349
        %v478 = vunpack.c.l.b16 %v350
        %v479 = vunpack.c.l.b16 %v351
        %v480 = vunpack.c.l.b16 %v352
        %v481 = vunpack.c.l.b16 %v353
        %v482 = vunpack.c.l.b16 %v354
        %v483 = vunpack.c.l.b16 %v355
        %v484 = vunpack.c.l.b16 %v356
        %v485 = vunpack.c.l.b16 %v357
        %v486 = vunpack.c.l.b16 %v358
        %v487 = vunpack.c.l.b16 %v359
        %v488 = vunpack.c.l.b16 %v360
        %v489 = vunpack.c.l.b16 %v361
        %v490 = vunpack.c.l.b16 %v362
        %v491 = vpack.c.b16 %v476, %v475
        %v492 = vpack.c.b16 %v478, %v477
        %v493 = vpack.c.b16 %v480, %v479
        %v494 = vpack.c.b16 %v482, %v481
        %v495 = vpack.c.b16 %v484, %v483
        %v496 = vpack.c.b16 %v486, %v485
        %v497 = vpack.c.b16 %v488, %v487
        %v498 = vpack.c.b16 %v490, %v489
        %507 = vmatprep.subr.bf16.mxu0 0
        %508 = vmatpush1.bf16.msra.mxu0 %v498
        %509 = vmatprep.subr.bf16.mxu0 0
        %510 = vmatpush1.bf16.msra.mxu0 %v497
        %511 = vmatprep.subr.bf16.mxu0 0
        %512 = vmatpush1.bf16.msra.mxu0 %v496
        %513 = vmatprep.subr.bf16.mxu0 0
        %514 = vmatpush1.bf16.msra.mxu0 %v495
        %515 = vmatprep.subr.bf16.mxu0 0
        %516 = vmatpush1.bf16.msra.mxu0 %v494
        %517 = vmatprep.subr.bf16.mxu0 0
        %518 = vmatpush1.bf16.msra.mxu0 %v493
        %519 = vmatprep.subr.bf16.mxu0 0
        %520 = vmatpush1.bf16.msra.mxu0 %v492
        %521 = vmatprep.subr.bf16.mxu0 0
        %522 = vmatpush1.bf16.msra.mxu0 %v491
        %523 = vmatprep.subr.bf16.mxu0 0
        %524 = vmatpush2.bf16.msra.mxu0 0
        %525 = vmatprep.subr.bf16.mxu0 0
        %526 = vmatpush2.bf16.msra.mxu0 0
        %527 = vmatprep.subr.bf16.mxu0 0
        %528 = vmatpush2.bf16.msra.mxu0 0
        %529 = vmatprep.subr.bf16.mxu0 0
        %530 = vmatpush2.bf16.msra.mxu0 0
        %531 = vmatprep.subr.bf16.mxu0 0
        %532 = vmatpush2.bf16.msra.mxu0 0
        %533 = vmatprep.subr.bf16.mxu0 0
        %534 = vmatpush2.bf16.msra.mxu0 0
        %535 = vmatprep.subr.bf16.mxu0 0
        %536 = vmatpush2.bf16.msra.mxu0 0
        %537 = vmatprep.subr.bf16.mxu0 0
        %538 = vmatpush2.bf16.msra.mxu0 0
        %539 = vmatprep.mubr.bf16.mxu0 0
        %540 = vmatmul.mubr.bf16.gmra.mxu0 %v427
        %v541 = vpop.f32.mrf.mxu0
        %v542 = vadd.f32 0.0, %v541
        %v543 = vpop.f32.mrf.mxu0
        %v544 = vpop.f32.mrf.mxu0
        %v545 = vadd.f32 0.0, %v544
        %v546 = vpop.f32.mrf.mxu0
        %547 = vmatprep.mubr.bf16.mxu0 0
        %548 = vmatmul.mubr.bf16.gmra.mxu0 %v428
        %v549 = vpop.f32.mrf.mxu0
        %v550 = vadd.f32 0.0, %v549
        %v551 = vpop.f32.mrf.mxu0
        %v552 = vpop.f32.mrf.mxu0
        %v553 = vadd.f32 0.0, %v552
        %v554 = vpop.f32.mrf.mxu0
        %555 = vmatprep.mubr.bf16.mxu0 0
        %556 = vmatmul.mubr.bf16.gmra.mxu0 %v429
        %v557 = vpop.f32.mrf.mxu0
        %v558 = vadd.f32 0.0, %v557
        %v559 = vpop.f32.mrf.mxu0
        %v560 = vpop.f32.mrf.mxu0
        %v561 = vadd.f32 0.0, %v560
        %v562 = vpop.f32.mrf.mxu0
        %563 = vmatprep.mubr.bf16.mxu0 0
        %564 = vmatmul.mubr.bf16.gmra.mxu0 %v430
        %v565 = vpop.f32.mrf.mxu0
        %v566 = vadd.f32 0.0, %v565
        %v567 = vpop.f32.mrf.mxu0
        %v568 = vpop.f32.mrf.mxu0
        %v569 = vadd.f32 0.0, %v568
        %v570 = vpop.f32.mrf.mxu0
        %571 = vmatprep.mubr.bf16.mxu0 0
        %572 = vmatmul.mubr.bf16.gmra.mxu0 %v431
        %v573 = vpop.f32.mrf.mxu0
        %v574 = vadd.f32 0.0, %v573
        %v575 = vpop.f32.mrf.mxu0
        %v576 = vpop.f32.mrf.mxu0
        %v577 = vadd.f32 0.0, %v576
        %v578 = vpop.f32.mrf.mxu0
        %579 = vmatprep.mubr.bf16.mxu0 0
        %580 = vmatmul.mubr.bf16.gmra.mxu0 %v432
        %v581 = vpop.f32.mrf.mxu0
        %v582 = vadd.f32 0.0, %v581
        %v583 = vpop.f32.mrf.mxu0
        %v584 = vpop.f32.mrf.mxu0
        %v585 = vadd.f32 0.0, %v584
        %v586 = vpop.f32.mrf.mxu0
        %587 = vmatprep.mubr.bf16.mxu0 0
        %588 = vmatmul.mubr.bf16.gmra.mxu0 %v433
        %v589 = vpop.f32.mrf.mxu0
        %v590 = vadd.f32 0.0, %v589
        %v591 = vpop.f32.mrf.mxu0
        %v592 = vpop.f32.mrf.mxu0
        %v593 = vadd.f32 0.0, %v592
        %v594 = vpop.f32.mrf.mxu0
        %595 = vmatprep.mubr.bf16.mxu0 0
        %596 = vmatmul.mubr.bf16.gmra.mxu0 %v434
        %v597 = vpop.f32.mrf.mxu0
        %v598 = vadd.f32 0.0, %v597
        %v599 = vpop.f32.mrf.mxu0
        %v600 = vpop.f32.mrf.mxu0
        %v601 = vadd.f32 0.0, %v600
        %v602 = vpop.f32.mrf.mxu0
        %603 = vmatprep.mubr.bf16.mxu0 0
        %604 = vmatmul.mubr.bf16.gmra.mxu0 %v435
        %v605 = vpop.f32.mrf.mxu0
        %v606 = vadd.f32 0.0, %v605
        %v607 = vpop.f32.mrf.mxu0
        %v608 = vpop.f32.mrf.mxu0
        %v609 = vadd.f32 0.0, %v608
        %v610 = vpop.f32.mrf.mxu0
        %611 = vmatprep.mubr.bf16.mxu0 0
        %612 = vmatmul.mubr.bf16.gmra.mxu0 %v436
        %v613 = vpop.f32.mrf.mxu0
        %v614 = vadd.f32 0.0, %v613
        %v615 = vpop.f32.mrf.mxu0
        %v616 = vpop.f32.mrf.mxu0
        %v617 = vadd.f32 0.0, %v616
        %v618 = vpop.f32.mrf.mxu0
        %619 = vmatprep.mubr.bf16.mxu0 0
        %620 = vmatmul.mubr.bf16.gmra.mxu0 %v437
        %v621 = vpop.f32.mrf.mxu0
        %v622 = vadd.f32 0.0, %v621
        %v623 = vpop.f32.mrf.mxu0
        %v624 = vpop.f32.mrf.mxu0
        %v625 = vadd.f32 0.0, %v624
        %v626 = vpop.f32.mrf.mxu0
        %627 = vmatprep.mubr.bf16.mxu0 0
        %628 = vmatmul.mubr.bf16.gmra.mxu0 %v438
        %v629 = vpop.f32.mrf.mxu0
        %v630 = vadd.f32 0.0, %v629
        %v631 = vpop.f32.mrf.mxu0
        %v632 = vpop.f32.mrf.mxu0
        %v633 = vadd.f32 0.0, %v632
        %v634 = vpop.f32.mrf.mxu0
        %635 = vmatprep.mubr.bf16.mxu0 0
        %636 = vmatmul.mubr.bf16.gmra.mxu0 %v439
        %v637 = vpop.f32.mrf.mxu0
        %v638 = vadd.f32 0.0, %v637
        %v639 = vpop.f32.mrf.mxu0
        %v640 = vpop.f32.mrf.mxu0
        %v641 = vadd.f32 0.0, %v640
        %v642 = vpop.f32.mrf.mxu0
        %643 = vmatprep.mubr.bf16.mxu0 0
        %644 = vmatmul.mubr.bf16.gmra.mxu0 %v440
        %v645 = vpop.f32.mrf.mxu0
        %v646 = vadd.f32 0.0, %v645
        %v647 = vpop.f32.mrf.mxu0
        %v648 = vpop.f32.mrf.mxu0
        %v649 = vadd.f32 0.0, %v648
        %v650 = vpop.f32.mrf.mxu0
        %651 = vmatprep.mubr.bf16.mxu0 0
        %652 = vmatmul.mubr.bf16.gmra.mxu0 %v441
        %v653 = vpop.f32.mrf.mxu0
        %v654 = vadd.f32 0.0, %v653
        %v655 = vpop.f32.mrf.mxu0
        %v656 = vpop.f32.mrf.mxu0
        %v657 = vadd.f32 0.0, %v656
        %v658 = vpop.f32.mrf.mxu0
        %659 = vmatprep.mubr.bf16.mxu0 0
        %660 = vmatmul.mubr.bf16.gmra.mxu0 %v442
        %v661 = vpop.f32.mrf.mxu0
        %v662 = vadd.f32 0.0, %v661
        %v663 = vpop.f32.mrf.mxu0
        %v664 = vpop.f32.mrf.mxu0
        %v665 = vadd.f32 0.0, %v664
        %v666 = vpop.f32.mrf.mxu0
        %667 = vdwg.mxu0
        %v700 = vunpack.c.l.b16 %v266
        %v701 = vunpack.c.l.b16 %v267
        %v702 = vunpack.c.l.b16 %v268
        %v703 = vunpack.c.l.b16 %v269
        %v704 = vunpack.c.l.b16 %v270
        %v705 = vunpack.c.l.b16 %v271
        %v706 = vunpack.c.l.b16 %v272
        %v707 = vunpack.c.l.b16 %v273
        %v708 = vunpack.c.l.b16 %v274
        %v709 = vunpack.c.l.b16 %v275
        %v710 = vunpack.c.l.b16 %v276
        %v711 = vunpack.c.l.b16 %v277
        %v712 = vunpack.c.l.b16 %v278
        %v713 = vunpack.c.l.b16 %v279
        %v714 = vunpack.c.l.b16 %v280
        %v715 = vunpack.c.l.b16 %v281
        %v716 = vunpack.c.l.b16 %v282
        %v717 = vunpack.c.l.b16 %v283
        %v718 = vunpack.c.l.b16 %v284
        %v719 = vunpack.c.l.b16 %v285
        %v720 = vunpack.c.l.b16 %v286
        %v721 = vunpack.c.l.b16 %v287
        %v722 = vunpack.c.l.b16 %v288
        %v723 = vunpack.c.l.b16 %v289
        %v724 = vunpack.c.l.b16 %v290
        %v725 = vunpack.c.l.b16 %v291
        %v726 = vunpack.c.l.b16 %v292
        %v727 = vunpack.c.l.b16 %v293
        %v728 = vunpack.c.l.b16 %v294
        %v729 = vunpack.c.l.b16 %v295
        %v730 = vunpack.c.l.b16 %v296
        %v731 = vunpack.c.l.b16 %v297
        %v732 = vpack.c.b16 %v701, %v700
        %v733 = vpack.c.b16 %v703, %v702
        %v734 = vpack.c.b16 %v705, %v704
        %v735 = vpack.c.b16 %v707, %v706
        %v736 = vpack.c.b16 %v709, %v708
        %v737 = vpack.c.b16 %v711, %v710
        %v738 = vpack.c.b16 %v713, %v712
        %v739 = vpack.c.b16 %v715, %v714
        %v740 = vpack.c.b16 %v717, %v716
        %v741 = vpack.c.b16 %v719, %v718
        %v742 = vpack.c.b16 %v721, %v720
        %v743 = vpack.c.b16 %v723, %v722
        %v744 = vpack.c.b16 %v725, %v724
        %v745 = vpack.c.b16 %v727, %v726
        %v746 = vpack.c.b16 %v729, %v728
        %v747 = vpack.c.b16 %v731, %v730
        %v780 = vunpack.c.l.b16 %v298
        %v781 = vunpack.c.l.b16 %v299
        %v782 = vunpack.c.l.b16 %v300
        %v783 = vunpack.c.l.b16 %v301
        %v784 = vunpack.c.l.b16 %v302
        %v785 = vunpack.c.l.b16 %v303
        %v786 = vunpack.c.l.b16 %v304
        %v787 = vunpack.c.l.b16 %v305
        %v788 = vunpack.c.l.b16 %v306
        %v789 = vunpack.c.l.b16 %v307
        %v790 = vunpack.c.l.b16 %v308
        %v791 = vunpack.c.l.b16 %v309
        %v792 = vunpack.c.l.b16 %v310
        %v793 = vunpack.c.l.b16 %v311
        %v794 = vunpack.c.l.b16 %v312
        %v795 = vunpack.c.l.b16 %v313
        %v796 = vpack.c.b16 %v781, %v780
        %v797 = vpack.c.b16 %v783, %v782
        %v798 = vpack.c.b16 %v785, %v784
        %v799 = vpack.c.b16 %v787, %v786
        %v800 = vpack.c.b16 %v789, %v788
        %v801 = vpack.c.b16 %v791, %v790
        %v802 = vpack.c.b16 %v793, %v792
        %v803 = vpack.c.b16 %v795, %v794
        %812 = vmatprep.subr.bf16.mxu0 0
        %813 = vmatpush1.bf16.msra.mxu0 %v803
        %814 = vmatprep.subr.bf16.mxu0 0
        %815 = vmatpush1.bf16.msra.mxu0 %v802
        %816 = vmatprep.subr.bf16.mxu0 0
        %817 = vmatpush1.bf16.msra.mxu0 %v801
        %818 = vmatprep.subr.bf16.mxu0 0
        %819 = vmatpush1.bf16.msra.mxu0 %v800
        %820 = vmatprep.subr.bf16.mxu0 0
        %821 = vmatpush1.bf16.msra.mxu0 %v799
        %822 = vmatprep.subr.bf16.mxu0 0
        %823 = vmatpush1.bf16.msra.mxu0 %v798
        %824 = vmatprep.subr.bf16.mxu0 0
        %825 = vmatpush1.bf16.msra.mxu0 %v797
        %826 = vmatprep.subr.bf16.mxu0 0
        %827 = vmatpush1.bf16.msra.mxu0 %v796
        %828 = vmatprep.subr.bf16.mxu0 0
        %829 = vmatpush2.bf16.msra.mxu0 0
        %830 = vmatprep.subr.bf16.mxu0 0
        %831 = vmatpush2.bf16.msra.mxu0 0
        %832 = vmatprep.subr.bf16.mxu0 0
        %833 = vmatpush2.bf16.msra.mxu0 0
        %834 = vmatprep.subr.bf16.mxu0 0
        %835 = vmatpush2.bf16.msra.mxu0 0
        %836 = vmatprep.subr.bf16.mxu0 0
        %837 = vmatpush2.bf16.msra.mxu0 0
        %838 = vmatprep.subr.bf16.mxu0 0
        %839 = vmatpush2.bf16.msra.mxu0 0
        %840 = vmatprep.subr.bf16.mxu0 0
        %841 = vmatpush2.bf16.msra.mxu0 0
        %842 = vmatprep.subr.bf16.mxu0 0
        %843 = vmatpush2.bf16.msra.mxu0 0
        %844 = vmatprep.mubr.bf16.mxu0 0
        %845 = vmatmul.mubr.bf16.gmra.mxu0 %v732
        %v846 = vpop.f32.mrf.mxu0
        %v847 = vadd.f32 %v542, %v846
        %v848 = vpop.f32.mrf.mxu0
        %v849 = vpop.f32.mrf.mxu0
        %v850 = vadd.f32 %v545, %v849
        %v851 = vpop.f32.mrf.mxu0
        %852 = vmatprep.mubr.bf16.mxu0 0
        %853 = vmatmul.mubr.bf16.gmra.mxu0 %v733
        %v854 = vpop.f32.mrf.mxu0
        %v855 = vadd.f32 %v550, %v854
        %v856 = vpop.f32.mrf.mxu0
        %v857 = vpop.f32.mrf.mxu0
        %v858 = vadd.f32 %v553, %v857
        %v859 = vpop.f32.mrf.mxu0
        %860 = vmatprep.mubr.bf16.mxu0 0
        %861 = vmatmul.mubr.bf16.gmra.mxu0 %v734
        %v862 = vpop.f32.mrf.mxu0
        %v863 = vadd.f32 %v558, %v862
        %v864 = vpop.f32.mrf.mxu0
        %v865 = vpop.f32.mrf.mxu0
        %v866 = vadd.f32 %v561, %v865
        %v867 = vpop.f32.mrf.mxu0
        %868 = vmatprep.mubr.bf16.mxu0 0
        %869 = vmatmul.mubr.bf16.gmra.mxu0 %v735
        %v870 = vpop.f32.mrf.mxu0
        %v871 = vadd.f32 %v566, %v870
        %v872 = vpop.f32.mrf.mxu0
        %v873 = vpop.f32.mrf.mxu0
        %v874 = vadd.f32 %v569, %v873
        %v875 = vpop.f32.mrf.mxu0
        %876 = vmatprep.mubr.bf16.mxu0 0
        %877 = vmatmul.mubr.bf16.gmra.mxu0 %v736
        %v878 = vpop.f32.mrf.mxu0
        %v879 = vadd.f32 %v574, %v878
        %v880 = vpop.f32.mrf.mxu0
        %v881 = vpop.f32.mrf.mxu0
        %v882 = vadd.f32 %v577, %v881
        %v883 = vpop.f32.mrf.mxu0
        %884 = vmatprep.mubr.bf16.mxu0 0
        %885 = vmatmul.mubr.bf16.gmra.mxu0 %v737
        %v886 = vpop.f32.mrf.mxu0
        %v887 = vadd.f32 %v582, %v886
        %v888 = vpop.f32.mrf.mxu0
        %v889 = vpop.f32.mrf.mxu0
        %v890 = vadd.f32 %v585, %v889
        %v891 = vpop.f32.mrf.mxu0
        %892 = vmatprep.mubr.bf16.mxu0 0
        %893 = vmatmul.mubr.bf16.gmra.mxu0 %v738
        %v894 = vpop.f32.mrf.mxu0
        %v895 = vadd.f32 %v590, %v894
        %v896 = vpop.f32.mrf.mxu0
        %v897 = vpop.f32.mrf.mxu0
        %v898 = vadd.f32 %v593, %v897
        %v899 = vpop.f32.mrf.mxu0
        %900 = vmatprep.mubr.bf16.mxu0 0
        %901 = vmatmul.mubr.bf16.gmra.mxu0 %v739
        %v902 = vpop.f32.mrf.mxu0
        %v903 = vadd.f32 %v598, %v902
        %v904 = vpop.f32.mrf.mxu0
        %v905 = vpop.f32.mrf.mxu0
        %v906 = vadd.f32 %v601, %v905
        %v907 = vpop.f32.mrf.mxu0
        %908 = vmatprep.mubr.bf16.mxu0 0
        %909 = vmatmul.mubr.bf16.gmra.mxu0 %v740
        %v910 = vpop.f32.mrf.mxu0
        %v911 = vadd.f32 %v606, %v910
        %v912 = vpop.f32.mrf.mxu0
        %v913 = vpop.f32.mrf.mxu0
        %v914 = vadd.f32 %v609, %v913
        %v915 = vpop.f32.mrf.mxu0
        %916 = vmatprep.mubr.bf16.mxu0 0
        %917 = vmatmul.mubr.bf16.gmra.mxu0 %v741
        %v918 = vpop.f32.mrf.mxu0
        %v919 = vadd.f32 %v614, %v918
        %v920 = vpop.f32.mrf.mxu0
        %v921 = vpop.f32.mrf.mxu0
        %v922 = vadd.f32 %v617, %v921
        %v923 = vpop.f32.mrf.mxu0
        %924 = vmatprep.mubr.bf16.mxu0 0
        %925 = vmatmul.mubr.bf16.gmra.mxu0 %v742
        %v926 = vpop.f32.mrf.mxu0
        %v927 = vadd.f32 %v622, %v926
        %v928 = vpop.f32.mrf.mxu0
        %v929 = vpop.f32.mrf.mxu0
        %v930 = vadd.f32 %v625, %v929
        %v931 = vpop.f32.mrf.mxu0
        %932 = vmatprep.mubr.bf16.mxu0 0
        %933 = vmatmul.mubr.bf16.gmra.mxu0 %v743
        %v934 = vpop.f32.mrf.mxu0
        %v935 = vadd.f32 %v630, %v934
        %v936 = vpop.f32.mrf.mxu0
        %v937 = vpop.f32.mrf.mxu0
        %v938 = vadd.f32 %v633, %v937
        %v939 = vpop.f32.mrf.mxu0
        %940 = vmatprep.mubr.bf16.mxu0 0
        %941 = vmatmul.mubr.bf16.gmra.mxu0 %v744
        %v942 = vpop.f32.mrf.mxu0
        %v943 = vadd.f32 %v638, %v942
        %v944 = vpop.f32.mrf.mxu0
        %v945 = vpop.f32.mrf.mxu0
        %v946 = vadd.f32 %v641, %v945
        %v947 = vpop.f32.mrf.mxu0
        %948 = vmatprep.mubr.bf16.mxu0 0
        %949 = vmatmul.mubr.bf16.gmra.mxu0 %v745
        %v950 = vpop.f32.mrf.mxu0
        %v951 = vadd.f32 %v646, %v950
        %v952 = vpop.f32.mrf.mxu0
        %v953 = vpop.f32.mrf.mxu0
        %v954 = vadd.f32 %v649, %v953
        %v955 = vpop.f32.mrf.mxu0
        %956 = vmatprep.mubr.bf16.mxu0 0
        %957 = vmatmul.mubr.bf16.gmra.mxu0 %v746
        %v958 = vpop.f32.mrf.mxu0
        %v959 = vadd.f32 %v654, %v958
        %v960 = vpop.f32.mrf.mxu0
        %v961 = vpop.f32.mrf.mxu0
        %v962 = vadd.f32 %v657, %v961
        %v963 = vpop.f32.mrf.mxu0
        %964 = vmatprep.mubr.bf16.mxu0 0
        %965 = vmatmul.mubr.bf16.gmra.mxu0 %v747
        %v966 = vpop.f32.mrf.mxu0
        %v967 = vadd.f32 %v662, %v966
        %v968 = vpop.f32.mrf.mxu0
        %v969 = vpop.f32.mrf.mxu0
        %v970 = vadd.f32 %v665, %v969
        %v971 = vpop.f32.mrf.mxu0
        %972 = vdwg.mxu0
        %973 = vst [vmem:[#allocation2] sm:$0xff] %v847
        %974 = vst [vmem:[#allocation2 + $0x8] sm:$0xff] %v850
        %975 = vst [vmem:[#allocation2 + $0x10] sm:$0xff] %v855
        %976 = vst [vmem:[#allocation2 + $0x18] sm:$0xff] %v858
        %977 = vst [vmem:[#allocation2 + $0x20] sm:$0xff] %v863
        %978 = vst [vmem:[#allocation2 + $0x28] sm:$0xff] %v866
        %979 = vst [vmem:[#allocation2 + $0x30] sm:$0xff] %v871
        %980 = vst [vmem:[#allocation2 + $0x38] sm:$0xff] %v874
        %981 = vst [vmem:[#allocation2 + $0x40] sm:$0xff] %v879
        %982 = vst [vmem:[#allocation2 + $0x48] sm:$0xff] %v882
        %983 = vst [vmem:[#allocation2 + $0x50] sm:$0xff] %v887
        %984 = vst [vmem:[#allocation2 + $0x58] sm:$0xff] %v890
        %985 = vst [vmem:[#allocation2 + $0x60] sm:$0xff] %v895
        %986 = vst [vmem:[#allocation2 + $0x68] sm:$0xff] %v898
        %987 = vst [vmem:[#allocation2 + $0x70] sm:$0xff] %v903
        %988 = vst [vmem:[#allocation2 + $0x78] sm:$0xff] %v906
        %989 = vst [vmem:[#allocation2 + $0x80] sm:$0xff] %v911
        %990 = vst [vmem:[#allocation2 + $0x88] sm:$0xff] %v914
        %991 = vst [vmem:[#allocation2 + $0x90] sm:$0xff] %v919
        %992 = vst [vmem:[#allocation2 + $0x98] sm:$0xff] %v922
        %993 = vst [vmem:[#allocation2 + $0xa0] sm:$0xff] %v927
        %994 = vst [vmem:[#allocation2 + $0xa8] sm:$0xff] %v930
        %995 = vst [vmem:[#allocation2 + $0xb0] sm:$0xff] %v935
        %996 = vst [vmem:[#allocation2 + $0xb8] sm:$0xff] %v938
        %997 = vst [vmem:[#allocation2 + $0xc0] sm:$0xff] %v943
        %998 = vst [vmem:[#allocation2 + $0xc8] sm:$0xff] %v946
        %999 = vst [vmem:[#allocation2 + $0xd0] sm:$0xff] %v951
        %1000 = vst [vmem:[#allocation2 + $0xd8] sm:$0xff] %v954
        %1001 = vst [vmem:[#allocation2 + $0xe0] sm:$0xff] %v959
        %1002 = vst [vmem:[#allocation2 + $0xe8] sm:$0xff] %v962
        %1003 = vst [vmem:[#allocation2 + $0xf0] sm:$0xff] %v967
        %1004 = vst [vmem:[#allocation2 + $0xf8] sm:$0xff] %v970
        %v1005 = vadd.f32 %v847, %v850
        %v1006 = vadd.f32 %v1005, %v855
        %v1007 = vadd.f32 %v1006, %v858
        %v1008 = vadd.f32 %v1007, %v863
        %v1009 = vadd.f32 %v1008, %v866
        %v1010 = vadd.f32 %v1009, %v871
        %v1011 = vadd.f32 %v1010, %v874
        %v1012 = vadd.f32 %v1011, %v879
        %v1013 = vadd.f32 %v1012, %v882
        %v1014 = vadd.f32 %v1013, %v887
        %v1015 = vadd.f32 %v1014, %v890
        %v1016 = vadd.f32 %v1015, %v895
        %v1017 = vadd.f32 %v1016, %v898
        %v1018 = vadd.f32 %v1017, %v903
        %v1019 = vadd.f32 %v1018, %v906
        %v1020 = vadd.f32 %v1019, %v911
        %v1021 = vadd.f32 %v1020, %v914
        %v1022 = vadd.f32 %v1021, %v919
        %v1023 = vadd.f32 %v1022, %v922
        %v1024 = vadd.f32 %v1023, %v927
        %v1025 = vadd.f32 %v1024, %v930
        %v1026 = vadd.f32 %v1025, %v935
        %v1027 = vadd.f32 %v1026, %v938
        %v1028 = vadd.f32 %v1027, %v943
        %v1029 = vadd.f32 %v1028, %v946
        %v1030 = vadd.f32 %v1029, %v951
        %v1031 = vadd.f32 %v1030, %v954
        %v1032 = vadd.f32 %v1031, %v959
        %v1033 = vadd.f32 %v1032, %v962
        %v1034 = vadd.f32 %v1033, %v967
        %v1035 = vadd.f32 %v1034, %v970
        %v1036 = vrot.slane %v1035, 4
        %v1037 = vadd.f32 %v1035, %v1036
        %v1038 = vrot.slane %v1037, 2
        %v1039 = vadd.f32 %v1037, %v1038
        %v1040 = vrot.slane %v1039, 1
        %v1041 = vadd.f32 %v1039, %v1040
        %v1042 = vadd.f32 %v1041, 0.0
        %v1043 = vmul.f32 %v847, %v847
        %v1044 = vmul.f32 %v850, %v850
        %v1045 = vmul.f32 %v855, %v855
        %v1046 = vmul.f32 %v858, %v858
        %v1047 = vmul.f32 %v863, %v863
        %v1048 = vmul.f32 %v866, %v866
        %v1049 = vmul.f32 %v871, %v871
        %v1050 = vmul.f32 %v874, %v874
        %v1051 = vmul.f32 %v879, %v879
        %v1052 = vmul.f32 %v882, %v882
        %v1053 = vmul.f32 %v887, %v887
        %v1054 = vmul.f32 %v890, %v890
        %v1055 = vmul.f32 %v895, %v895
        %v1056 = vmul.f32 %v898, %v898
        %v1057 = vmul.f32 %v903, %v903
        %v1058 = vmul.f32 %v906, %v906
        %v1059 = vmul.f32 %v911, %v911
        %v1060 = vmul.f32 %v914, %v914
        %v1061 = vmul.f32 %v919, %v919
        %v1062 = vmul.f32 %v922, %v922
        %v1063 = vmul.f32 %v927, %v927
        %v1064 = vmul.f32 %v930, %v930
        %v1065 = vmul.f32 %v935, %v935
        %v1066 = vmul.f32 %v938, %v938
        %v1067 = vmul.f32 %v943, %v943
        %v1068 = vmul.f32 %v946, %v946
        %v1069 = vmul.f32 %v951, %v951
        %v1070 = vmul.f32 %v954, %v954
        %v1071 = vmul.f32 %v959, %v959
        %v1072 = vmul.f32 %v962, %v962
        %v1073 = vmul.f32 %v967, %v967
        %v1074 = vmul.f32 %v970, %v970
        %v1075 = vadd.f32 %v1043, %v1044
        %v1076 = vadd.f32 %v1075, %v1045
        %v1077 = vadd.f32 %v1076, %v1046
        %v1078 = vadd.f32 %v1077, %v1047
        %v1079 = vadd.f32 %v1078, %v1048
        %v1080 = vadd.f32 %v1079, %v1049
        %v1081 = vadd.f32 %v1080, %v1050
        %v1082 = vadd.f32 %v1081, %v1051
        %v1083 = vadd.f32 %v1082, %v1052
        %v1084 = vadd.f32 %v1083, %v1053
        %v1085 = vadd.f32 %v1084, %v1054
        %v1086 = vadd.f32 %v1085, %v1055
        %v1087 = vadd.f32 %v1086, %v1056
        %v1088 = vadd.f32 %v1087, %v1057
        %v1089 = vadd.f32 %v1088, %v1058
        %v1090 = vadd.f32 %v1089, %v1059
        %v1091 = vadd.f32 %v1090, %v1060
        %v1092 = vadd.f32 %v1091, %v1061
        %v1093 = vadd.f32 %v1092, %v1062
        %v1094 = vadd.f32 %v1093, %v1063
        %v1095 = vadd.f32 %v1094, %v1064
        %v1096 = vadd.f32 %v1095, %v1065
        %v1097 = vadd.f32 %v1096, %v1066
        %v1098 = vadd.f32 %v1097, %v1067
        %v1099 = vadd.f32 %v1098, %v1068
        %v1100 = vadd.f32 %v1099, %v1069
        %v1101 = vadd.f32 %v1100, %v1070
        %v1102 = vadd.f32 %v1101, %v1071
        %v1103 = vadd.f32 %v1102, %v1072
        %v1104 = vadd.f32 %v1103, %v1073
        %v1105 = vadd.f32 %v1104, %v1074
        %v1106 = vrot.slane %v1105, 4
        %v1107 = vadd.f32 %v1105, %v1106
        %v1108 = vrot.slane %v1107, 2
        %v1109 = vadd.f32 %v1107, %v1108
        %v1110 = vrot.slane %v1109, 1
        %v1111 = vadd.f32 %v1109, %v1110
        %v1112 = vadd.f32 %v1111, 0.0
        %s1113 = scalar_lea.vmem %s232, 8 [#allocation6]
        %v1114 = vld [vmem:[%s1113] sm:$0xf]
        %v1115 = vld [vmem:[%s1113 + $0x4] sm:$0xf]
        %v1116 = vld [vmem:[%s1113 + $0x8] sm:$0xf]
        %v1117 = vld [vmem:[%s1113 + $0xc] sm:$0xf]
        %v1118 = vld [vmem:[%s1113 + $0x10] sm:$0xf]
        %v1119 = vld [vmem:[%s1113 + $0x14] sm:$0xf]
        %v1120 = vld [vmem:[%s1113 + $0x18] sm:$0xf]
        %v1121 = vld [vmem:[%s1113 + $0x1c] sm:$0xf]
        %v1122 = vld [vmem:[%s1113 + $0x20] sm:$0xf]
        %v1123 = vld [vmem:[%s1113 + $0x24] sm:$0xf]
        %v1124 = vld [vmem:[%s1113 + $0x28] sm:$0xf]
        %v1125 = vld [vmem:[%s1113 + $0x2c] sm:$0xf]
        %v1126 = vld [vmem:[%s1113 + $0x30] sm:$0xf]
        %v1127 = vld [vmem:[%s1113 + $0x34] sm:$0xf]
        %v1128 = vld [vmem:[%s1113 + $0x38] sm:$0xf]
        %v1129 = vld [vmem:[%s1113 + $0x3c] sm:$0xf]
        %v1130 = vld [vmem:[%s1113 + $0x40] sm:$0xf]
        %v1131 = vld [vmem:[%s1113 + $0x44] sm:$0xf]
        %v1132 = vld [vmem:[%s1113 + $0x48] sm:$0xf]
        %v1133 = vld [vmem:[%s1113 + $0x4c] sm:$0xf]
        %v1134 = vld [vmem:[%s1113 + $0x50] sm:$0xf]
        %v1135 = vld [vmem:[%s1113 + $0x54] sm:$0xf]
        %v1136 = vld [vmem:[%s1113 + $0x58] sm:$0xf]
        %v1137 = vld [vmem:[%s1113 + $0x5c] sm:$0xf]
        %v1138 = vld [vmem:[%s1113 + $0x60] sm:$0xf]
        %v1139 = vld [vmem:[%s1113 + $0x64] sm:$0xf]
        %v1140 = vld [vmem:[%s1113 + $0x68] sm:$0xf]
        %v1141 = vld [vmem:[%s1113 + $0x6c] sm:$0xf]
        %v1142 = vld [vmem:[%s1113 + $0x70] sm:$0xf]
        %v1143 = vld [vmem:[%s1113 + $0x74] sm:$0xf]
        %v1144 = vld [vmem:[%s1113 + $0x78] sm:$0xf]
        %v1145 = vld [vmem:[%s1113 + $0x7c] sm:$0xf]
        %s1146 = scalar_lea.vmem [#allocation8], 128
        %v1147 = vld [vmem:[%s1146] sm:$0xf]
        %v1148 = vld [vmem:[%s1146 + $0x4] sm:$0xf]
        %v1149 = vld [vmem:[%s1146 + $0x8] sm:$0xf]
        %v1150 = vld [vmem:[%s1146 + $0xc] sm:$0xf]
        %v1151 = vld [vmem:[%s1146 + $0x10] sm:$0xf]
        %v1152 = vld [vmem:[%s1146 + $0x14] sm:$0xf]
        %v1153 = vld [vmem:[%s1146 + $0x18] sm:$0xf]
        %v1154 = vld [vmem:[%s1146 + $0x1c] sm:$0xf]
        %v1155 = vld [vmem:[%s1146 + $0x20] sm:$0xf]
        %v1156 = vld [vmem:[%s1146 + $0x24] sm:$0xf]
        %v1157 = vld [vmem:[%s1146 + $0x28] sm:$0xf]
        %v1158 = vld [vmem:[%s1146 + $0x2c] sm:$0xf]
        %v1159 = vld [vmem:[%s1146 + $0x30] sm:$0xf]
        %v1160 = vld [vmem:[%s1146 + $0x34] sm:$0xf]
        %v1161 = vld [vmem:[%s1146 + $0x38] sm:$0xf]
        %v1162 = vld [vmem:[%s1146 + $0x3c] sm:$0xf]
        %v1163 = vld [vmem:[%s232] sm:$0xf]
        %v1164 = vld [vmem:[%s232 + $0x4] sm:$0xf]
        %v1165 = vld [vmem:[%s232 + $0x8] sm:$0xf]
        %v1166 = vld [vmem:[%s232 + $0xc] sm:$0xf]
        %v1167 = vld [vmem:[%s232 + $0x10] sm:$0xf]
        %v1168 = vld [vmem:[%s232 + $0x14] sm:$0xf]
        %v1169 = vld [vmem:[%s232 + $0x18] sm:$0xf]
        %v1170 = vld [vmem:[%s232 + $0x1c] sm:$0xf]
        %v1171 = vld [vmem:[%s232 + $0x20] sm:$0xf]
        %v1172 = vld [vmem:[%s232 + $0x24] sm:$0xf]
        %v1173 = vld [vmem:[%s232 + $0x28] sm:$0xf]
        %v1174 = vld [vmem:[%s232 + $0x2c] sm:$0xf]
        %v1175 = vld [vmem:[%s232 + $0x30] sm:$0xf]
        %v1176 = vld [vmem:[%s232 + $0x34] sm:$0xf]
        %v1177 = vld [vmem:[%s232 + $0x38] sm:$0xf]
        %v1178 = vld [vmem:[%s232 + $0x3c] sm:$0xf]
        %v1179 = vld [vmem:[%s232 + $0x40] sm:$0xf]
        %v1180 = vld [vmem:[%s232 + $0x44] sm:$0xf]
        %v1181 = vld [vmem:[%s232 + $0x48] sm:$0xf]
        %v1182 = vld [vmem:[%s232 + $0x4c] sm:$0xf]
        %v1183 = vld [vmem:[%s232 + $0x50] sm:$0xf]
        %v1184 = vld [vmem:[%s232 + $0x54] sm:$0xf]
        %v1185 = vld [vmem:[%s232 + $0x58] sm:$0xf]
        %v1186 = vld [vmem:[%s232 + $0x5c] sm:$0xf]
        %v1187 = vld [vmem:[%s232 + $0x60] sm:$0xf]
        %v1188 = vld [vmem:[%s232 + $0x64] sm:$0xf]
        %v1189 = vld [vmem:[%s232 + $0x68] sm:$0xf]
        %v1190 = vld [vmem:[%s232 + $0x6c] sm:$0xf]
        %v1191 = vld [vmem:[%s232 + $0x70] sm:$0xf]
        %v1192 = vld [vmem:[%s232 + $0x74] sm:$0xf]
        %v1193 = vld [vmem:[%s232 + $0x78] sm:$0xf]
        %v1194 = vld [vmem:[%s232 + $0x7c] sm:$0xf]
        %s1195 = scalar_lea.vmem [#allocation8], 192
        %v1196 = vld [vmem:[%s1195] sm:$0xf]
        %v1197 = vld [vmem:[%s1195 + $0x4] sm:$0xf]
        %v1198 = vld [vmem:[%s1195 + $0x8] sm:$0xf]
        %v1199 = vld [vmem:[%s1195 + $0xc] sm:$0xf]
        %v1200 = vld [vmem:[%s1195 + $0x10] sm:$0xf]
        %v1201 = vld [vmem:[%s1195 + $0x14] sm:$0xf]
        %v1202 = vld [vmem:[%s1195 + $0x18] sm:$0xf]
        %v1203 = vld [vmem:[%s1195 + $0x1c] sm:$0xf]
        %v1204 = vld [vmem:[%s1195 + $0x20] sm:$0xf]
        %v1205 = vld [vmem:[%s1195 + $0x24] sm:$0xf]
        %v1206 = vld [vmem:[%s1195 + $0x28] sm:$0xf]
        %v1207 = vld [vmem:[%s1195 + $0x2c] sm:$0xf]
        %v1208 = vld [vmem:[%s1195 + $0x30] sm:$0xf]
        %v1209 = vld [vmem:[%s1195 + $0x34] sm:$0xf]
        %v1210 = vld [vmem:[%s1195 + $0x38] sm:$0xf]
        %v1211 = vld [vmem:[%s1195 + $0x3c] sm:$0xf]
        %v1244 = vunpack.c.l.b16 %v1163
        %v1245 = vunpack.c.l.b16 %v1164
        %v1246 = vunpack.c.l.b16 %v1165
        %v1247 = vunpack.c.l.b16 %v1166
        %v1248 = vunpack.c.l.b16 %v1167
        %v1249 = vunpack.c.l.b16 %v1168
        %v1250 = vunpack.c.l.b16 %v1169
        %v1251 = vunpack.c.l.b16 %v1170
        %v1252 = vunpack.c.l.b16 %v1171
        %v1253 = vunpack.c.l.b16 %v1172
        %v1254 = vunpack.c.l.b16 %v1173
        %v1255 = vunpack.c.l.b16 %v1174
        %v1256 = vunpack.c.l.b16 %v1175
        %v1257 = vunpack.c.l.b16 %v1176
        %v1258 = vunpack.c.l.b16 %v1177
        %v1259 = vunpack.c.l.b16 %v1178
        %v1260 = vunpack.c.l.b16 %v1179
        %v1261 = vunpack.c.l.b16 %v1180
        %v1262 = vunpack.c.l.b16 %v1181
        %v1263 = vunpack.c.l.b16 %v1182
        %v1264 = vunpack.c.l.b16 %v1183
        %v1265 = vunpack.c.l.b16 %v1184
        %v1266 = vunpack.c.l.b16 %v1185
        %v1267 = vunpack.c.l.b16 %v1186
        %v1268 = vunpack.c.l.b16 %v1187
        %v1269 = vunpack.c.l.b16 %v1188
        %v1270 = vunpack.c.l.b16 %v1189
        %v1271 = vunpack.c.l.b16 %v1190
        %v1272 = vunpack.c.l.b16 %v1191
        %v1273 = vunpack.c.l.b16 %v1192
        %v1274 = vunpack.c.l.b16 %v1193
        %v1275 = vunpack.c.l.b16 %v1194
        %v1276 = vpack.c.b16 %v1245, %v1244
        %v1277 = vpack.c.b16 %v1247, %v1246
        %v1278 = vpack.c.b16 %v1249, %v1248
        %v1279 = vpack.c.b16 %v1251, %v1250
        %v1280 = vpack.c.b16 %v1253, %v1252
        %v1281 = vpack.c.b16 %v1255, %v1254
        %v1282 = vpack.c.b16 %v1257, %v1256
        %v1283 = vpack.c.b16 %v1259, %v1258
        %v1284 = vpack.c.b16 %v1261, %v1260
        %v1285 = vpack.c.b16 %v1263, %v1262
        %v1286 = vpack.c.b16 %v1265, %v1264
        %v1287 = vpack.c.b16 %v1267, %v1266
        %v1288 = vpack.c.b16 %v1269, %v1268
        %v1289 = vpack.c.b16 %v1271, %v1270
        %v1290 = vpack.c.b16 %v1273, %v1272
        %v1291 = vpack.c.b16 %v1275, %v1274
        %v1324 = vunpack.c.l.b16 %v1196
        %v1325 = vunpack.c.l.b16 %v1197
        %v1326 = vunpack.c.l.b16 %v1198
        %v1327 = vunpack.c.l.b16 %v1199
        %v1328 = vunpack.c.l.b16 %v1200
        %v1329 = vunpack.c.l.b16 %v1201
        %v1330 = vunpack.c.l.b16 %v1202
        %v1331 = vunpack.c.l.b16 %v1203
        %v1332 = vunpack.c.l.b16 %v1204
        %v1333 = vunpack.c.l.b16 %v1205
        %v1334 = vunpack.c.l.b16 %v1206
        %v1335 = vunpack.c.l.b16 %v1207
        %v1336 = vunpack.c.l.b16 %v1208
        %v1337 = vunpack.c.l.b16 %v1209
        %v1338 = vunpack.c.l.b16 %v1210
        %v1339 = vunpack.c.l.b16 %v1211
        %v1340 = vpack.c.b16 %v1325, %v1324
        %v1341 = vpack.c.b16 %v1327, %v1326
        %v1342 = vpack.c.b16 %v1329, %v1328
        %v1343 = vpack.c.b16 %v1331, %v1330
        %v1344 = vpack.c.b16 %v1333, %v1332
        %v1345 = vpack.c.b16 %v1335, %v1334
        %v1346 = vpack.c.b16 %v1337, %v1336
        %v1347 = vpack.c.b16 %v1339, %v1338
        %1356 = vmatprep.subr.bf16.mxu0 0
        %1357 = vmatpush1.bf16.msra.mxu0 %v1347
        %1358 = vmatprep.subr.bf16.mxu0 0
        %1359 = vmatpush1.bf16.msra.mxu0 %v1346
        %1360 = vmatprep.subr.bf16.mxu0 0
        %1361 = vmatpush1.bf16.msra.mxu0 %v1345
        %1362 = vmatprep.subr.bf16.mxu0 0
        %1363 = vmatpush1.bf16.msra.mxu0 %v1344
        %1364 = vmatprep.subr.bf16.mxu0 0
        %1365 = vmatpush1.bf16.msra.mxu0 %v1343
        %1366 = vmatprep.subr.bf16.mxu0 0
        %1367 = vmatpush1.bf16.msra.mxu0 %v1342
        %1368 = vmatprep.subr.bf16.mxu0 0
        %1369 = vmatpush1.bf16.msra.mxu0 %v1341
        %1370 = vmatprep.subr.bf16.mxu0 0
        %1371 = vmatpush1.bf16.msra.mxu0 %v1340
        %1372 = vmatprep.subr.bf16.mxu0 0
        %1373 = vmatpush2.bf16.msra.mxu0 0
        %1374 = vmatprep.subr.bf16.mxu0 0
        %1375 = vmatpush2.bf16.msra.mxu0 0
        %1376 = vmatprep.subr.bf16.mxu0 0
        %1377 = vmatpush2.bf16.msra.mxu0 0
        %1378 = vmatprep.subr.bf16.mxu0 0
        %1379 = vmatpush2.bf16.msra.mxu0 0
        %1380 = vmatprep.subr.bf16.mxu0 0
        %1381 = vmatpush2.bf16.msra.mxu0 0
        %1382 = vmatprep.subr.bf16.mxu0 0
        %1383 = vmatpush2.bf16.msra.mxu0 0
        %1384 = vmatprep.subr.bf16.mxu0 0
        %1385 = vmatpush2.bf16.msra.mxu0 0
        %1386 = vmatprep.subr.bf16.mxu0 0
        %1387 = vmatpush2.bf16.msra.mxu0 0
        %1388 = vmatprep.mubr.bf16.mxu0 0
        %1389 = vmatmul.mubr.bf16.gmra.mxu0 %v1276
        %v1390 = vpop.f32.mrf.mxu0
        %v1391 = vadd.f32 0.0, %v1390
        %v1392 = vpop.f32.mrf.mxu0
        %v1393 = vpop.f32.mrf.mxu0
        %v1394 = vadd.f32 0.0, %v1393
        %v1395 = vpop.f32.mrf.mxu0
        %1396 = vmatprep.mubr.bf16.mxu0 0
        %1397 = vmatmul.mubr.bf16.gmra.mxu0 %v1277
        %v1398 = vpop.f32.mrf.mxu0
        %v1399 = vadd.f32 0.0, %v1398
        %v1400 = vpop.f32.mrf.mxu0
        %v1401 = vpop.f32.mrf.mxu0
        %v1402 = vadd.f32 0.0, %v1401
        %v1403 = vpop.f32.mrf.mxu0
        %1404 = vmatprep.mubr.bf16.mxu0 0
        %1405 = vmatmul.mubr.bf16.gmra.mxu0 %v1278
        %v1406 = vpop.f32.mrf.mxu0
        %v1407 = vadd.f32 0.0, %v1406
        %v1408 = vpop.f32.mrf.mxu0
        %v1409 = vpop.f32.mrf.mxu0
        %v1410 = vadd.f32 0.0, %v1409
        %v1411 = vpop.f32.mrf.mxu0
        %1412 = vmatprep.mubr.bf16.mxu0 0
        %1413 = vmatmul.mubr.bf16.gmra.mxu0 %v1279
        %v1414 = vpop.f32.mrf.mxu0
        %v1415 = vadd.f32 0.0, %v1414
        %v1416 = vpop.f32.mrf.mxu0
        %v1417 = vpop.f32.mrf.mxu0
        %v1418 = vadd.f32 0.0, %v1417
        %v1419 = vpop.f32.mrf.mxu0
        %1420 = vmatprep.mubr.bf16.mxu0 0
        %1421 = vmatmul.mubr.bf16.gmra.mxu0 %v1280
        %v1422 = vpop.f32.mrf.mxu0
        %v1423 = vadd.f32 0.0, %v1422
        %v1424 = vpop.f32.mrf.mxu0
        %v1425 = vpop.f32.mrf.mxu0
        %v1426 = vadd.f32 0.0, %v1425
        %v1427 = vpop.f32.mrf.mxu0
        %1428 = vmatprep.mubr.bf16.mxu0 0
        %1429 = vmatmul.mubr.bf16.gmra.mxu0 %v1281
        %v1430 = vpop.f32.mrf.mxu0
        %v1431 = vadd.f32 0.0, %v1430
        %v1432 = vpop.f32.mrf.mxu0
        %v1433 = vpop.f32.mrf.mxu0
        %v1434 = vadd.f32 0.0, %v1433
        %v1435 = vpop.f32.mrf.mxu0
        %1436 = vmatprep.mubr.bf16.mxu0 0
        %1437 = vmatmul.mubr.bf16.gmra.mxu0 %v1282
        %v1438 = vpop.f32.mrf.mxu0
        %v1439 = vadd.f32 0.0, %v1438
        %v1440 = vpop.f32.mrf.mxu0
        %v1441 = vpop.f32.mrf.mxu0
        %v1442 = vadd.f32 0.0, %v1441
        %v1443 = vpop.f32.mrf.mxu0
        %1444 = vmatprep.mubr.bf16.mxu0 0
        %1445 = vmatmul.mubr.bf16.gmra.mxu0 %v1283
        %v1446 = vpop.f32.mrf.mxu0
        %v1447 = vadd.f32 0.0, %v1446
        %v1448 = vpop.f32.mrf.mxu0
        %v1449 = vpop.f32.mrf.mxu0
        %v1450 = vadd.f32 0.0, %v1449
        %v1451 = vpop.f32.mrf.mxu0
        %1452 = vmatprep.mubr.bf16.mxu0 0
        %1453 = vmatmul.mubr.bf16.gmra.mxu0 %v1284
        %v1454 = vpop.f32.mrf.mxu0
        %v1455 = vadd.f32 0.0, %v1454
        %v1456 = vpop.f32.mrf.mxu0
        %v1457 = vpop.f32.mrf.mxu0
        %v1458 = vadd.f32 0.0, %v1457
        %v1459 = vpop.f32.mrf.mxu0
        %1460 = vmatprep.mubr.bf16.mxu0 0
        %1461 = vmatmul.mubr.bf16.gmra.mxu0 %v1285
        %v1462 = vpop.f32.mrf.mxu0
        %v1463 = vadd.f32 0.0, %v1462
        %v1464 = vpop.f32.mrf.mxu0
        %v1465 = vpop.f32.mrf.mxu0
        %v1466 = vadd.f32 0.0, %v1465
        %v1467 = vpop.f32.mrf.mxu0
        %1468 = vmatprep.mubr.bf16.mxu0 0
        %1469 = vmatmul.mubr.bf16.gmra.mxu0 %v1286
        %v1470 = vpop.f32.mrf.mxu0
        %v1471 = vadd.f32 0.0, %v1470
        %v1472 = vpop.f32.mrf.mxu0
        %v1473 = vpop.f32.mrf.mxu0
        %v1474 = vadd.f32 0.0, %v1473
        %v1475 = vpop.f32.mrf.mxu0
        %1476 = vmatprep.mubr.bf16.mxu0 0
        %1477 = vmatmul.mubr.bf16.gmra.mxu0 %v1287
        %v1478 = vpop.f32.mrf.mxu0
        %v1479 = vadd.f32 0.0, %v1478
        %v1480 = vpop.f32.mrf.mxu0
        %v1481 = vpop.f32.mrf.mxu0
        %v1482 = vadd.f32 0.0, %v1481
        %v1483 = vpop.f32.mrf.mxu0
        %1484 = vmatprep.mubr.bf16.mxu0 0
        %1485 = vmatmul.mubr.bf16.gmra.mxu0 %v1288
        %v1486 = vpop.f32.mrf.mxu0
        %v1487 = vadd.f32 0.0, %v1486
        %v1488 = vpop.f32.mrf.mxu0
        %v1489 = vpop.f32.mrf.mxu0
        %v1490 = vadd.f32 0.0, %v1489
        %v1491 = vpop.f32.mrf.mxu0
        %1492 = vmatprep.mubr.bf16.mxu0 0
        %1493 = vmatmul.mubr.bf16.gmra.mxu0 %v1289
        %v1494 = vpop.f32.mrf.mxu0
        %v1495 = vadd.f32 0.0, %v1494
        %v1496 = vpop.f32.mrf.mxu0
        %v1497 = vpop.f32.mrf.mxu0
        %v1498 = vadd.f32 0.0, %v1497
        %v1499 = vpop.f32.mrf.mxu0
        %1500 = vmatprep.mubr.bf16.mxu0 0
        %1501 = vmatmul.mubr.bf16.gmra.mxu0 %v1290
        %v1502 = vpop.f32.mrf.mxu0
        %v1503 = vadd.f32 0.0, %v1502
        %v1504 = vpop.f32.mrf.mxu0
        %v1505 = vpop.f32.mrf.mxu0
        %v1506 = vadd.f32 0.0, %v1505
        %v1507 = vpop.f32.mrf.mxu0
        %1508 = vmatprep.mubr.bf16.mxu0 0
        %1509 = vmatmul.mubr.bf16.gmra.mxu0 %v1291
        %v1510 = vpop.f32.mrf.mxu0
        %v1511 = vadd.f32 0.0, %v1510
        %v1512 = vpop.f32.mrf.mxu0
        %v1513 = vpop.f32.mrf.mxu0
        %v1514 = vadd.f32 0.0, %v1513
        %v1515 = vpop.f32.mrf.mxu0
        %1516 = vdwg.mxu0
        %v1549 = vunpack.c.l.b16 %v1114
        %v1550 = vunpack.c.l.b16 %v1115
        %v1551 = vunpack.c.l.b16 %v1116
        %v1552 = vunpack.c.l.b16 %v1117
        %v1553 = vunpack.c.l.b16 %v1118
        %v1554 = vunpack.c.l.b16 %v1119
        %v1555 = vunpack.c.l.b16 %v1120
        %v1556 = vunpack.c.l.b16 %v1121
        %v1557 = vunpack.c.l.b16 %v1122
        %v1558 = vunpack.c.l.b16 %v1123
        %v1559 = vunpack.c.l.b16 %v1124
        %v1560 = vunpack.c.l.b16 %v1125
        %v1561 = vunpack.c.l.b16 %v1126
        %v1562 = vunpack.c.l.b16 %v1127
        %v1563 = vunpack.c.l.b16 %v1128
        %v1564 = vunpack.c.l.b16 %v1129
        %v1565 = vunpack.c.l.b16 %v1130
        %v1566 = vunpack.c.l.b16 %v1131
        %v1567 = vunpack.c.l.b16 %v1132
        %v1568 = vunpack.c.l.b16 %v1133
        %v1569 = vunpack.c.l.b16 %v1134
        %v1570 = vunpack.c.l.b16 %v1135
        %v1571 = vunpack.c.l.b16 %v1136
        %v1572 = vunpack.c.l.b16 %v1137
        %v1573 = vunpack.c.l.b16 %v1138
        %v1574 = vunpack.c.l.b16 %v1139
        %v1575 = vunpack.c.l.b16 %v1140
        %v1576 = vunpack.c.l.b16 %v1141
        %v1577 = vunpack.c.l.b16 %v1142
        %v1578 = vunpack.c.l.b16 %v1143
        %v1579 = vunpack.c.l.b16 %v1144
        %v1580 = vunpack.c.l.b16 %v1145
        %v1581 = vpack.c.b16 %v1550, %v1549
        %v1582 = vpack.c.b16 %v1552, %v1551
        %v1583 = vpack.c.b16 %v1554, %v1553
        %v1584 = vpack.c.b16 %v1556, %v1555
        %v1585 = vpack.c.b16 %v1558, %v1557
        %v1586 = vpack.c.b16 %v1560, %v1559
        %v1587 = vpack.c.b16 %v1562, %v1561
        %v1588 = vpack.c.b16 %v1564, %v1563
        %v1589 = vpack.c.b16 %v1566, %v1565
        %v1590 = vpack.c.b16 %v1568, %v1567
        %v1591 = vpack.c.b16 %v1570, %v1569
        %v1592 = vpack.c.b16 %v1572, %v1571
        %v1593 = vpack.c.b16 %v1574, %v1573
        %v1594 = vpack.c.b16 %v1576, %v1575
        %v1595 = vpack.c.b16 %v1578, %v1577
        %v1596 = vpack.c.b16 %v1580, %v1579
        %v1629 = vunpack.c.l.b16 %v1147
        %v1630 = vunpack.c.l.b16 %v1148
        %v1631 = vunpack.c.l.b16 %v1149
        %v1632 = vunpack.c.l.b16 %v1150
        %v1633 = vunpack.c.l.b16 %v1151
        %v1634 = vunpack.c.l.b16 %v1152
        %v1635 = vunpack.c.l.b16 %v1153
        %v1636 = vunpack.c.l.b16 %v1154
        %v1637 = vunpack.c.l.b16 %v1155
        %v1638 = vunpack.c.l.b16 %v1156
        %v1639 = vunpack.c.l.b16 %v1157
        %v1640 = vunpack.c.l.b16 %v1158
        %v1641 = vunpack.c.l.b16 %v1159
        %v1642 = vunpack.c.l.b16 %v1160
        %v1643 = vunpack.c.l.b16 %v1161
        %v1644 = vunpack.c.l.b16 %v1162
        %v1645 = vpack.c.b16 %v1630, %v1629
        %v1646 = vpack.c.b16 %v1632, %v1631
        %v1647 = vpack.c.b16 %v1634, %v1633
        %v1648 = vpack.c.b16 %v1636, %v1635
        %v1649 = vpack.c.b16 %v1638, %v1637
        %v1650 = vpack.c.b16 %v1640, %v1639
        %v1651 = vpack.c.b16 %v1642, %v1641
        %v1652 = vpack.c.b16 %v1644, %v1643
        %1661 = vmatprep.subr.bf16.mxu0 0
        %1662 = vmatpush1.bf16.msra.mxu0 %v1652
        %1663 = vmatprep.subr.bf16.mxu0 0
        %1664 = vmatpush1.bf16.msra.mxu0 %v1651
        %1665 = vmatprep.subr.bf16.mxu0 0
        %1666 = vmatpush1.bf16.msra.mxu0 %v1650
        %1667 = vmatprep.subr.bf16.mxu0 0
        %1668 = vmatpush1.bf16.msra.mxu0 %v1649
        %1669 = vmatprep.subr.bf16.mxu0 0
        %1670 = vmatpush1.bf16.msra.mxu0 %v1648
        %1671 = vmatprep.subr.bf16.mxu0 0
        %1672 = vmatpush1.bf16.msra.mxu0 %v1647
        %1673 = vmatprep.subr.bf16.mxu0 0
        %1674 = vmatpush1.bf16.msra.mxu0 %v1646
        %1675 = vmatprep.subr.bf16.mxu0 0
        %1676 = vmatpush1.bf16.msra.mxu0 %v1645
        %1677 = vmatprep.subr.bf16.mxu0 0
        %1678 = vmatpush2.bf16.msra.mxu0 0
        %1679 = vmatprep.subr.bf16.mxu0 0
        %1680 = vmatpush2.bf16.msra.mxu0 0
        %1681 = vmatprep.subr.bf16.mxu0 0
        %1682 = vmatpush2.bf16.msra.mxu0 0
        %1683 = vmatprep.subr.bf16.mxu0 0
        %1684 = vmatpush2.bf16.msra.mxu0 0
        %1685 = vmatprep.subr.bf16.mxu0 0
        %1686 = vmatpush2.bf16.msra.mxu0 0
        %1687 = vmatprep.subr.bf16.mxu0 0
        %1688 = vmatpush2.bf16.msra.mxu0 0
        %1689 = vmatprep.subr.bf16.mxu0 0
        %1690 = vmatpush2.bf16.msra.mxu0 0
        %1691 = vmatprep.subr.bf16.mxu0 0
        %1692 = vmatpush2.bf16.msra.mxu0 0
        %1693 = vmatprep.mubr.bf16.mxu0 0
        %1694 = vmatmul.mubr.bf16.gmra.mxu0 %v1581
        %v1695 = vpop.f32.mrf.mxu0
        %v1696 = vadd.f32 %v1391, %v1695
        %v1697 = vpop.f32.mrf.mxu0
        %v1698 = vpop.f32.mrf.mxu0
        %v1699 = vadd.f32 %v1394, %v1698
        %v1700 = vpop.f32.mrf.mxu0
        %1701 = vmatprep.mubr.bf16.mxu0 0
        %1702 = vmatmul.mubr.bf16.gmra.mxu0 %v1582
        %v1703 = vpop.f32.mrf.mxu0
        %v1704 = vadd.f32 %v1399, %v1703
        %v1705 = vpop.f32.mrf.mxu0
        %v1706 = vpop.f32.mrf.mxu0
        %v1707 = vadd.f32 %v1402, %v1706
        %v1708 = vpop.f32.mrf.mxu0
        %1709 = vmatprep.mubr.bf16.mxu0 0
        %1710 = vmatmul.mubr.bf16.gmra.mxu0 %v1583
        %v1711 = vpop.f32.mrf.mxu0
        %v1712 = vadd.f32 %v1407, %v1711
        %v1713 = vpop.f32.mrf.mxu0
        %v1714 = vpop.f32.mrf.mxu0
        %v1715 = vadd.f32 %v1410, %v1714
        %v1716 = vpop.f32.mrf.mxu0
        %1717 = vmatprep.mubr.bf16.mxu0 0
        %1718 = vmatmul.mubr.bf16.gmra.mxu0 %v1584
        %v1719 = vpop.f32.mrf.mxu0
        %v1720 = vadd.f32 %v1415, %v1719
        %v1721 = vpop.f32.mrf.mxu0
        %v1722 = vpop.f32.mrf.mxu0
        %v1723 = vadd.f32 %v1418, %v1722
        %v1724 = vpop.f32.mrf.mxu0
        %1725 = vmatprep.mubr.bf16.mxu0 0
        %1726 = vmatmul.mubr.bf16.gmra.mxu0 %v1585
        %v1727 = vpop.f32.mrf.mxu0
        %v1728 = vadd.f32 %v1423, %v1727
        %v1729 = vpop.f32.mrf.mxu0
        %v1730 = vpop.f32.mrf.mxu0
        %v1731 = vadd.f32 %v1426, %v1730
        %v1732 = vpop.f32.mrf.mxu0
        %1733 = vmatprep.mubr.bf16.mxu0 0
        %1734 = vmatmul.mubr.bf16.gmra.mxu0 %v1586
        %v1735 = vpop.f32.mrf.mxu0
        %v1736 = vadd.f32 %v1431, %v1735
        %v1737 = vpop.f32.mrf.mxu0
        %v1738 = vpop.f32.mrf.mxu0
        %v1739 = vadd.f32 %v1434, %v1738
        %v1740 = vpop.f32.mrf.mxu0
        %1741 = vmatprep.mubr.bf16.mxu0 0
        %1742 = vmatmul.mubr.bf16.gmra.mxu0 %v1587
        %v1743 = vpop.f32.mrf.mxu0
        %v1744 = vadd.f32 %v1439, %v1743
        %v1745 = vpop.f32.mrf.mxu0
        %v1746 = vpop.f32.mrf.mxu0
        %v1747 = vadd.f32 %v1442, %v1746
        %v1748 = vpop.f32.mrf.mxu0
        %1749 = vmatprep.mubr.bf16.mxu0 0
        %1750 = vmatmul.mubr.bf16.gmra.mxu0 %v1588
        %v1751 = vpop.f32.mrf.mxu0
        %v1752 = vadd.f32 %v1447, %v1751
        %v1753 = vpop.f32.mrf.mxu0
        %v1754 = vpop.f32.mrf.mxu0
        %v1755 = vadd.f32 %v1450, %v1754
        %v1756 = vpop.f32.mrf.mxu0
        %1757 = vmatprep.mubr.bf16.mxu0 0
        %1758 = vmatmul.mubr.bf16.gmra.mxu0 %v1589
        %v1759 = vpop.f32.mrf.mxu0
        %v1760 = vadd.f32 %v1455, %v1759
        %v1761 = vpop.f32.mrf.mxu0
        %v1762 = vpop.f32.mrf.mxu0
        %v1763 = vadd.f32 %v1458, %v1762
        %v1764 = vpop.f32.mrf.mxu0
        %1765 = vmatprep.mubr.bf16.mxu0 0
        %1766 = vmatmul.mubr.bf16.gmra.mxu0 %v1590
        %v1767 = vpop.f32.mrf.mxu0
        %v1768 = vadd.f32 %v1463, %v1767
        %v1769 = vpop.f32.mrf.mxu0
        %v1770 = vpop.f32.mrf.mxu0
        %v1771 = vadd.f32 %v1466, %v1770
        %v1772 = vpop.f32.mrf.mxu0
        %1773 = vmatprep.mubr.bf16.mxu0 0
        %1774 = vmatmul.mubr.bf16.gmra.mxu0 %v1591
        %v1775 = vpop.f32.mrf.mxu0
        %v1776 = vadd.f32 %v1471, %v1775
        %v1777 = vpop.f32.mrf.mxu0
        %v1778 = vpop.f32.mrf.mxu0
        %v1779 = vadd.f32 %v1474, %v1778
        %v1780 = vpop.f32.mrf.mxu0
        %1781 = vmatprep.mubr.bf16.mxu0 0
        %1782 = vmatmul.mubr.bf16.gmra.mxu0 %v1592
        %v1783 = vpop.f32.mrf.mxu0
        %v1784 = vadd.f32 %v1479, %v1783
        %v1785 = vpop.f32.mrf.mxu0
        %v1786 = vpop.f32.mrf.mxu0
        %v1787 = vadd.f32 %v1482, %v1786
        %v1788 = vpop.f32.mrf.mxu0
        %1789 = vmatprep.mubr.bf16.mxu0 0
        %1790 = vmatmul.mubr.bf16.gmra.mxu0 %v1593
        %v1791 = vpop.f32.mrf.mxu0
        %v1792 = vadd.f32 %v1487, %v1791
        %v1793 = vpop.f32.mrf.mxu0
        %v1794 = vpop.f32.mrf.mxu0
        %v1795 = vadd.f32 %v1490, %v1794
        %v1796 = vpop.f32.mrf.mxu0
        %1797 = vmatprep.mubr.bf16.mxu0 0
        %1798 = vmatmul.mubr.bf16.gmra.mxu0 %v1594
        %v1799 = vpop.f32.mrf.mxu0
        %v1800 = vadd.f32 %v1495, %v1799
        %v1801 = vpop.f32.mrf.mxu0
        %v1802 = vpop.f32.mrf.mxu0
        %v1803 = vadd.f32 %v1498, %v1802
        %v1804 = vpop.f32.mrf.mxu0
        %1805 = vmatprep.mubr.bf16.mxu0 0
        %1806 = vmatmul.mubr.bf16.gmra.mxu0 %v1595
        %v1807 = vpop.f32.mrf.mxu0
        %v1808 = vadd.f32 %v1503, %v1807
        %v1809 = vpop.f32.mrf.mxu0
        %v1810 = vpop.f32.mrf.mxu0
        %v1811 = vadd.f32 %v1506, %v1810
        %v1812 = vpop.f32.mrf.mxu0
        %1813 = vmatprep.mubr.bf16.mxu0 0
        %1814 = vmatmul.mubr.bf16.gmra.mxu0 %v1596
        %v1815 = vpop.f32.mrf.mxu0
        %v1816 = vadd.f32 %v1511, %v1815
        %v1817 = vpop.f32.mrf.mxu0
        %v1818 = vpop.f32.mrf.mxu0
        %v1819 = vadd.f32 %v1514, %v1818
        %v1820 = vpop.f32.mrf.mxu0
        %1821 = vdwg.mxu0
        %s1822 = scalar_lea.vmem [#allocation2], 256
        %1823 = vst [vmem:[%s1822] sm:$0xff] %v1696
        %1824 = vst [vmem:[%s1822 + $0x8] sm:$0xff] %v1699
        %1825 = vst [vmem:[%s1822 + $0x10] sm:$0xff] %v1704
        %1826 = vst [vmem:[%s1822 + $0x18] sm:$0xff] %v1707
        %1827 = vst [vmem:[%s1822 + $0x20] sm:$0xff] %v1712
        %1828 = vst [vmem:[%s1822 + $0x28] sm:$0xff] %v1715
        %1829 = vst [vmem:[%s1822 + $0x30] sm:$0xff] %v1720
        %1830 = vst [vmem:[%s1822 + $0x38] sm:$0xff] %v1723
        %1831 = vst [vmem:[%s1822 + $0x40] sm:$0xff] %v1728
        %1832 = vst [vmem:[%s1822 + $0x48] sm:$0xff] %v1731
        %1833 = vst [vmem:[%s1822 + $0x50] sm:$0xff] %v1736
        %1834 = vst [vmem:[%s1822 + $0x58] sm:$0xff] %v1739
        %1835 = vst [vmem:[%s1822 + $0x60] sm:$0xff] %v1744
        %1836 = vst [vmem:[%s1822 + $0x68] sm:$0xff] %v1747
        %1837 = vst [vmem:[%s1822 + $0x70] sm:$0xff] %v1752
        %1838 = vst [vmem:[%s1822 + $0x78] sm:$0xff] %v1755
        %1839 = vst [vmem:[%s1822 + $0x80] sm:$0xff] %v1760
        %1840 = vst [vmem:[%s1822 + $0x88] sm:$0xff] %v1763
        %1841 = vst [vmem:[%s1822 + $0x90] sm:$0xff] %v1768
        %1842 = vst [vmem:[%s1822 + $0x98] sm:$0xff] %v1771
        %1843 = vst [vmem:[%s1822 + $0xa0] sm:$0xff] %v1776
        %1844 = vst [vmem:[%s1822 + $0xa8] sm:$0xff] %v1779
        %1845 = vst [vmem:[%s1822 + $0xb0] sm:$0xff] %v1784
        %1846 = vst [vmem:[%s1822 + $0xb8] sm:$0xff] %v1787
        %1847 = vst [vmem:[%s1822 + $0xc0] sm:$0xff] %v1792
        %1848 = vst [vmem:[%s1822 + $0xc8] sm:$0xff] %v1795
        %1849 = vst [vmem:[%s1822 + $0xd0] sm:$0xff] %v1800
        %1850 = vst [vmem:[%s1822 + $0xd8] sm:$0xff] %v1803
        %1851 = vst [vmem:[%s1822 + $0xe0] sm:$0xff] %v1808
        %1852 = vst [vmem:[%s1822 + $0xe8] sm:$0xff] %v1811
        %1853 = vst [vmem:[%s1822 + $0xf0] sm:$0xff] %v1816
        %1854 = vst [vmem:[%s1822 + $0xf8] sm:$0xff] %v1819
        %v1855 = vadd.f32 %v1696, %v1699
        %v1856 = vadd.f32 %v1855, %v1704
        %v1857 = vadd.f32 %v1856, %v1707
        %v1858 = vadd.f32 %v1857, %v1712
        %v1859 = vadd.f32 %v1858, %v1715
        %v1860 = vadd.f32 %v1859, %v1720
        %v1861 = vadd.f32 %v1860, %v1723
        %v1862 = vadd.f32 %v1861, %v1728
        %v1863 = vadd.f32 %v1862, %v1731
        %v1864 = vadd.f32 %v1863, %v1736
        %v1865 = vadd.f32 %v1864, %v1739
        %v1866 = vadd.f32 %v1865, %v1744
        %v1867 = vadd.f32 %v1866, %v1747
        %v1868 = vadd.f32 %v1867, %v1752
        %v1869 = vadd.f32 %v1868, %v1755
        %v1870 = vadd.f32 %v1869, %v1760
        %v1871 = vadd.f32 %v1870, %v1763
        %v1872 = vadd.f32 %v1871, %v1768
        %v1873 = vadd.f32 %v1872, %v1771
        %v1874 = vadd.f32 %v1873, %v1776
        %v1875 = vadd.f32 %v1874, %v1779
        %v1876 = vadd.f32 %v1875, %v1784
        %v1877 = vadd.f32 %v1876, %v1787
        %v1878 = vadd.f32 %v1877, %v1792
        %v1879 = vadd.f32 %v1878, %v1795
        %v1880 = vadd.f32 %v1879, %v1800
        %v1881 = vadd.f32 %v1880, %v1803
        %v1882 = vadd.f32 %v1881, %v1808
        %v1883 = vadd.f32 %v1882, %v1811
        %v1884 = vadd.f32 %v1883, %v1816
        %v1885 = vadd.f32 %v1884, %v1819
        %v1886 = vrot.slane %v1885, 4
        %v1887 = vadd.f32 %v1885, %v1886
        %v1888 = vrot.slane %v1887, 2
        %v1889 = vadd.f32 %v1887, %v1888
        %v1890 = vrot.slane %v1889, 1
        %v1891 = vadd.f32 %v1889, %v1890
        %v1892 = vadd.f32 %v1042, %v1891
        %v1893 = vmul.f32 %v1696, %v1696
        %v1894 = vmul.f32 %v1699, %v1699
        %v1895 = vmul.f32 %v1704, %v1704
        %v1896 = vmul.f32 %v1707, %v1707
        %v1897 = vmul.f32 %v1712, %v1712
        %v1898 = vmul.f32 %v1715, %v1715
        %v1899 = vmul.f32 %v1720, %v1720
        %v1900 = vmul.f32 %v1723, %v1723
        %v1901 = vmul.f32 %v1728, %v1728
        %v1902 = vmul.f32 %v1731, %v1731
        %v1903 = vmul.f32 %v1736, %v1736
        %v1904 = vmul.f32 %v1739, %v1739
        %v1905 = vmul.f32 %v1744, %v1744
        %v1906 = vmul.f32 %v1747, %v1747
        %v1907 = vmul.f32 %v1752, %v1752
        %v1908 = vmul.f32 %v1755, %v1755
        %v1909 = vmul.f32 %v1760, %v1760
        %v1910 = vmul.f32 %v1763, %v1763
        %v1911 = vmul.f32 %v1768, %v1768
        %v1912 = vmul.f32 %v1771, %v1771
        %v1913 = vmul.f32 %v1776, %v1776
        %v1914 = vmul.f32 %v1779, %v1779
        %v1915 = vmul.f32 %v1784, %v1784
        %v1916 = vmul.f32 %v1787, %v1787
        %v1917 = vmul.f32 %v1792, %v1792
        %v1918 = vmul.f32 %v1795, %v1795
        %v1919 = vmul.f32 %v1800, %v1800
        %v1920 = vmul.f32 %v1803, %v1803
        %v1921 = vmul.f32 %v1808, %v1808
        %v1922 = vmul.f32 %v1811, %v1811
        %v1923 = vmul.f32 %v1816, %v1816
        %v1924 = vmul.f32 %v1819, %v1819
        %v1925 = vadd.f32 %v1893, %v1894
        %v1926 = vadd.f32 %v1925, %v1895
        %v1927 = vadd.f32 %v1926, %v1896
        %v1928 = vadd.f32 %v1927, %v1897
        %v1929 = vadd.f32 %v1928, %v1898
        %v1930 = vadd.f32 %v1929, %v1899
        %v1931 = vadd.f32 %v1930, %v1900
        %v1932 = vadd.f32 %v1931, %v1901
        %v1933 = vadd.f32 %v1932, %v1902
        %v1934 = vadd.f32 %v1933, %v1903
        %v1935 = vadd.f32 %v1934, %v1904
        %v1936 = vadd.f32 %v1935, %v1905
        %v1937 = vadd.f32 %v1936, %v1906
        %v1938 = vadd.f32 %v1937, %v1907
        %v1939 = vadd.f32 %v1938, %v1908
        %v1940 = vadd.f32 %v1939, %v1909
        %v1941 = vadd.f32 %v1940, %v1910
        %v1942 = vadd.f32 %v1941, %v1911
        %v1943 = vadd.f32 %v1942, %v1912
        %v1944 = vadd.f32 %v1943, %v1913
        %v1945 = vadd.f32 %v1944, %v1914
        %v1946 = vadd.f32 %v1945, %v1915
        %v1947 = vadd.f32 %v1946, %v1916
        %v1948 = vadd.f32 %v1947, %v1917
        %v1949 = vadd.f32 %v1948, %v1918
        %v1950 = vadd.f32 %v1949, %v1919
        %v1951 = vadd.f32 %v1950, %v1920
        %v1952 = vadd.f32 %v1951, %v1921
        %v1953 = vadd.f32 %v1952, %v1922
        %v1954 = vadd.f32 %v1953, %v1923
        %v1955 = vadd.f32 %v1954, %v1924
        %v1956 = vrot.slane %v1955, 4
        %v1957 = vadd.f32 %v1955, %v1956
        %v1958 = vrot.slane %v1957, 2
        %v1959 = vadd.f32 %v1957, %v1958
        %v1960 = vrot.slane %v1959, 1
        %v1961 = vadd.f32 %v1959, %v1960
        %v1962 = vadd.f32 %v1112, %v1961
        %s1963 = scalar_lea.vmem %s223, 16 [#allocation3]
        %v1964 = vld [vmem:[%s1963] sm:$0xf]
        %v1965 = vld [vmem:[%s1963 + $0x4] sm:$0xf]
        %v1966 = vld [vmem:[%s1963 + $0x8] sm:$0xf]
        %v1967 = vld [vmem:[%s1963 + $0xc] sm:$0xf]
        %v1968 = vld [vmem:[%s1963 + $0x10] sm:$0xf]
        %v1969 = vld [vmem:[%s1963 + $0x14] sm:$0xf]
        %v1970 = vld [vmem:[%s1963 + $0x18] sm:$0xf]
        %v1971 = vld [vmem:[%s1963 + $0x1c] sm:$0xf]
        %v1972 = vld [vmem:[%s1963 + $0x20] sm:$0xf]
        %v1973 = vld [vmem:[%s1963 + $0x24] sm:$0xf]
        %v1974 = vld [vmem:[%s1963 + $0x28] sm:$0xf]
        %v1975 = vld [vmem:[%s1963 + $0x2c] sm:$0xf]
        %v1976 = vld [vmem:[%s1963 + $0x30] sm:$0xf]
        %v1977 = vld [vmem:[%s1963 + $0x34] sm:$0xf]
        %v1978 = vld [vmem:[%s1963 + $0x38] sm:$0xf]
        %v1979 = vld [vmem:[%s1963 + $0x3c] sm:$0xf]
        %v1980 = vld [vmem:[%s1963 + $0x40] sm:$0xf]
        %v1981 = vld [vmem:[%s1963 + $0x44] sm:$0xf]
        %v1982 = vld [vmem:[%s1963 + $0x48] sm:$0xf]
        %v1983 = vld [vmem:[%s1963 + $0x4c] sm:$0xf]
        %v1984 = vld [vmem:[%s1963 + $0x50] sm:$0xf]
        %v1985 = vld [vmem:[%s1963 + $0x54] sm:$0xf]
        %v1986 = vld [vmem:[%s1963 + $0x58] sm:$0xf]
        %v1987 = vld [vmem:[%s1963 + $0x5c] sm:$0xf]
        %v1988 = vld [vmem:[%s1963 + $0x60] sm:$0xf]
        %v1989 = vld [vmem:[%s1963 + $0x64] sm:$0xf]
        %v1990 = vld [vmem:[%s1963 + $0x68] sm:$0xf]
        %v1991 = vld [vmem:[%s1963 + $0x6c] sm:$0xf]
        %v1992 = vld [vmem:[%s1963 + $0x70] sm:$0xf]
        %v1993 = vld [vmem:[%s1963 + $0x74] sm:$0xf]
        %v1994 = vld [vmem:[%s1963 + $0x78] sm:$0xf]
        %v1995 = vld [vmem:[%s1963 + $0x7c] sm:$0xf]
        %s1996 = scalar_lea.vmem [#allocation8], 256
        %v1997 = vld [vmem:[%s1996] sm:$0xf]
        %v1998 = vld [vmem:[%s1996 + $0x4] sm:$0xf]
        %v1999 = vld [vmem:[%s1996 + $0x8] sm:$0xf]
        %v2000 = vld [vmem:[%s1996 + $0xc] sm:$0xf]
        %v2001 = vld [vmem:[%s1996 + $0x10] sm:$0xf]
        %v2002 = vld [vmem:[%s1996 + $0x14] sm:$0xf]
        %v2003 = vld [vmem:[%s1996 + $0x18] sm:$0xf]
        %v2004 = vld [vmem:[%s1996 + $0x1c] sm:$0xf]
        %v2005 = vld [vmem:[%s1996 + $0x20] sm:$0xf]
        %v2006 = vld [vmem:[%s1996 + $0x24] sm:$0xf]
        %v2007 = vld [vmem:[%s1996 + $0x28] sm:$0xf]
        %v2008 = vld [vmem:[%s1996 + $0x2c] sm:$0xf]
        %v2009 = vld [vmem:[%s1996 + $0x30] sm:$0xf]
        %v2010 = vld [vmem:[%s1996 + $0x34] sm:$0xf]
        %v2011 = vld [vmem:[%s1996 + $0x38] sm:$0xf]
        %v2012 = vld [vmem:[%s1996 + $0x3c] sm:$0xf]
        %v2013 = vld [vmem:[%s265] sm:$0xf]
        %v2014 = vld [vmem:[%s265 + $0x4] sm:$0xf]
        %v2015 = vld [vmem:[%s265 + $0x8] sm:$0xf]
        %v2016 = vld [vmem:[%s265 + $0xc] sm:$0xf]
        %v2017 = vld [vmem:[%s265 + $0x10] sm:$0xf]
        %v2018 = vld [vmem:[%s265 + $0x14] sm:$0xf]
        %v2019 = vld [vmem:[%s265 + $0x18] sm:$0xf]
        %v2020 = vld [vmem:[%s265 + $0x1c] sm:$0xf]
        %v2021 = vld [vmem:[%s265 + $0x20] sm:$0xf]
        %v2022 = vld [vmem:[%s265 + $0x24] sm:$0xf]
        %v2023 = vld [vmem:[%s265 + $0x28] sm:$0xf]
        %v2024 = vld [vmem:[%s265 + $0x2c] sm:$0xf]
        %v2025 = vld [vmem:[%s265 + $0x30] sm:$0xf]
        %v2026 = vld [vmem:[%s265 + $0x34] sm:$0xf]
        %v2027 = vld [vmem:[%s265 + $0x38] sm:$0xf]
        %v2028 = vld [vmem:[%s265 + $0x3c] sm:$0xf]
        %v2029 = vld [vmem:[%s265 + $0x40] sm:$0xf]
        %v2030 = vld [vmem:[%s265 + $0x44] sm:$0xf]
        %v2031 = vld [vmem:[%s265 + $0x48] sm:$0xf]
        %v2032 = vld [vmem:[%s265 + $0x4c] sm:$0xf]
        %v2033 = vld [vmem:[%s265 + $0x50] sm:$0xf]
        %v2034 = vld [vmem:[%s265 + $0x54] sm:$0xf]
        %v2035 = vld [vmem:[%s265 + $0x58] sm:$0xf]
        %v2036 = vld [vmem:[%s265 + $0x5c] sm:$0xf]
        %v2037 = vld [vmem:[%s265 + $0x60] sm:$0xf]
        %v2038 = vld [vmem:[%s265 + $0x64] sm:$0xf]
        %v2039 = vld [vmem:[%s265 + $0x68] sm:$0xf]
        %v2040 = vld [vmem:[%s265 + $0x6c] sm:$0xf]
        %v2041 = vld [vmem:[%s265 + $0x70] sm:$0xf]
        %v2042 = vld [vmem:[%s265 + $0x74] sm:$0xf]
        %v2043 = vld [vmem:[%s265 + $0x78] sm:$0xf]
        %v2044 = vld [vmem:[%s265 + $0x7c] sm:$0xf]
        %s2045 = scalar_lea.vmem [#allocation8], 320
        %v2046 = vld [vmem:[%s2045] sm:$0xf]
        %v2047 = vld [vmem:[%s2045 + $0x4] sm:$0xf]
        %v2048 = vld [vmem:[%s2045 + $0x8] sm:$0xf]
        %v2049 = vld [vmem:[%s2045 + $0xc] sm:$0xf]
        %v2050 = vld [vmem:[%s2045 + $0x10] sm:$0xf]
        %v2051 = vld [vmem:[%s2045 + $0x14] sm:$0xf]
        %v2052 = vld [vmem:[%s2045 + $0x18] sm:$0xf]
        %v2053 = vld [vmem:[%s2045 + $0x1c] sm:$0xf]
        %v2054 = vld [vmem:[%s2045 + $0x20] sm:$0xf]
        %v2055 = vld [vmem:[%s2045 + $0x24] sm:$0xf]
        %v2056 = vld [vmem:[%s2045 + $0x28] sm:$0xf]
        %v2057 = vld [vmem:[%s2045 + $0x2c] sm:$0xf]
        %v2058 = vld [vmem:[%s2045 + $0x30] sm:$0xf]
        %v2059 = vld [vmem:[%s2045 + $0x34] sm:$0xf]
        %v2060 = vld [vmem:[%s2045 + $0x38] sm:$0xf]
        %v2061 = vld [vmem:[%s2045 + $0x3c] sm:$0xf]
        %v2094 = vunpack.c.l.b16 %v2013
        %v2095 = vunpack.c.l.b16 %v2014
        %v2096 = vunpack.c.l.b16 %v2015
        %v2097 = vunpack.c.l.b16 %v2016
        %v2098 = vunpack.c.l.b16 %v2017
        %v2099 = vunpack.c.l.b16 %v2018
        %v2100 = vunpack.c.l.b16 %v2019
        %v2101 = vunpack.c.l.b16 %v2020
        %v2102 = vunpack.c.l.b16 %v2021
        %v2103 = vunpack.c.l.b16 %v2022
        %v2104 = vunpack.c.l.b16 %v2023
        %v2105 = vunpack.c.l.b16 %v2024
        %v2106 = vunpack.c.l.b16 %v2025
        %v2107 = vunpack.c.l.b16 %v2026
        %v2108 = vunpack.c.l.b16 %v2027
        %v2109 = vunpack.c.l.b16 %v2028
        %v2110 = vunpack.c.l.b16 %v2029
        %v2111 = vunpack.c.l.b16 %v2030
        %v2112 = vunpack.c.l.b16 %v2031
        %v2113 = vunpack.c.l.b16 %v2032
        %v2114 = vunpack.c.l.b16 %v2033
        %v2115 = vunpack.c.l.b16 %v2034
        %v2116 = vunpack.c.l.b16 %v2035
        %v2117 = vunpack.c.l.b16 %v2036
        %v2118 = vunpack.c.l.b16 %v2037
        %v2119 = vunpack.c.l.b16 %v2038
        %v2120 = vunpack.c.l.b16 %v2039
        %v2121 = vunpack.c.l.b16 %v2040
        %v2122 = vunpack.c.l.b16 %v2041
        %v2123 = vunpack.c.l.b16 %v2042
        %v2124 = vunpack.c.l.b16 %v2043
        %v2125 = vunpack.c.l.b16 %v2044
        %v2126 = vpack.c.b16 %v2095, %v2094
        %v2127 = vpack.c.b16 %v2097, %v2096
        %v2128 = vpack.c.b16 %v2099, %v2098
        %v2129 = vpack.c.b16 %v2101, %v2100
        %v2130 = vpack.c.b16 %v2103, %v2102
        %v2131 = vpack.c.b16 %v2105, %v2104
        %v2132 = vpack.c.b16 %v2107, %v2106
        %v2133 = vpack.c.b16 %v2109, %v2108
        %v2134 = vpack.c.b16 %v2111, %v2110
        %v2135 = vpack.c.b16 %v2113, %v2112
        %v2136 = vpack.c.b16 %v2115, %v2114
        %v2137 = vpack.c.b16 %v2117, %v2116
        %v2138 = vpack.c.b16 %v2119, %v2118
        %v2139 = vpack.c.b16 %v2121, %v2120
        %v2140 = vpack.c.b16 %v2123, %v2122
        %v2141 = vpack.c.b16 %v2125, %v2124
        %v2174 = vunpack.c.l.b16 %v2046
        %v2175 = vunpack.c.l.b16 %v2047
        %v2176 = vunpack.c.l.b16 %v2048
        %v2177 = vunpack.c.l.b16 %v2049
        %v2178 = vunpack.c.l.b16 %v2050
        %v2179 = vunpack.c.l.b16 %v2051
        %v2180 = vunpack.c.l.b16 %v2052
        %v2181 = vunpack.c.l.b16 %v2053
        %v2182 = vunpack.c.l.b16 %v2054
        %v2183 = vunpack.c.l.b16 %v2055
        %v2184 = vunpack.c.l.b16 %v2056
        %v2185 = vunpack.c.l.b16 %v2057
        %v2186 = vunpack.c.l.b16 %v2058
        %v2187 = vunpack.c.l.b16 %v2059
        %v2188 = vunpack.c.l.b16 %v2060
        %v2189 = vunpack.c.l.b16 %v2061
        %v2190 = vpack.c.b16 %v2175, %v2174
        %v2191 = vpack.c.b16 %v2177, %v2176
        %v2192 = vpack.c.b16 %v2179, %v2178
        %v2193 = vpack.c.b16 %v2181, %v2180
        %v2194 = vpack.c.b16 %v2183, %v2182
        %v2195 = vpack.c.b16 %v2185, %v2184
        %v2196 = vpack.c.b16 %v2187, %v2186
        %v2197 = vpack.c.b16 %v2189, %v2188
        %2206 = vmatprep.subr.bf16.mxu0 0
        %2207 = vmatpush1.bf16.msra.mxu0 %v2197
        %2208 = vmatprep.subr.bf16.mxu0 0
        %2209 = vmatpush1.bf16.msra.mxu0 %v2196
        %2210 = vmatprep.subr.bf16.mxu0 0
        %2211 = vmatpush1.bf16.msra.mxu0 %v2195
        %2212 = vmatprep.subr.bf16.mxu0 0
        %2213 = vmatpush1.bf16.msra.mxu0 %v2194
        %2214 = vmatprep.subr.bf16.mxu0 0
        %2215 = vmatpush1.bf16.msra.mxu0 %v2193
        %2216 = vmatprep.subr.bf16.mxu0 0
        %2217 = vmatpush1.bf16.msra.mxu0 %v2192
        %2218 = vmatprep.subr.bf16.mxu0 0
        %2219 = vmatpush1.bf16.msra.mxu0 %v2191
        %2220 = vmatprep.subr.bf16.mxu0 0
        %2221 = vmatpush1.bf16.msra.mxu0 %v2190
        %2222 = vmatprep.subr.bf16.mxu0 0
        %2223 = vmatpush2.bf16.msra.mxu0 0
        %2224 = vmatprep.subr.bf16.mxu0 0
        %2225 = vmatpush2.bf16.msra.mxu0 0
        %2226 = vmatprep.subr.bf16.mxu0 0
        %2227 = vmatpush2.bf16.msra.mxu0 0
        %2228 = vmatprep.subr.bf16.mxu0 0
        %2229 = vmatpush2.bf16.msra.mxu0 0
        %2230 = vmatprep.subr.bf16.mxu0 0
        %2231 = vmatpush2.bf16.msra.mxu0 0
        %2232 = vmatprep.subr.bf16.mxu0 0
        %2233 = vmatpush2.bf16.msra.mxu0 0
        %2234 = vmatprep.subr.bf16.mxu0 0
        %2235 = vmatpush2.bf16.msra.mxu0 0
        %2236 = vmatprep.subr.bf16.mxu0 0
        %2237 = vmatpush2.bf16.msra.mxu0 0
        %2238 = vmatprep.mubr.bf16.mxu0 0
        %2239 = vmatmul.mubr.bf16.gmra.mxu0 %v2126
        %v2240 = vpop.f32.mrf.mxu0
        %v2241 = vadd.f32 0.0, %v2240
        %v2242 = vpop.f32.mrf.mxu0
        %v2243 = vpop.f32.mrf.mxu0
        %v2244 = vadd.f32 0.0, %v2243
        %v2245 = vpop.f32.mrf.mxu0
        %2246 = vmatprep.mubr.bf16.mxu0 0
        %2247 = vmatmul.mubr.bf16.gmra.mxu0 %v2127
        %v2248 = vpop.f32.mrf.mxu0
        %v2249 = vadd.f32 0.0, %v2248
        %v2250 = vpop.f32.mrf.mxu0
        %v2251 = vpop.f32.mrf.mxu0
        %v2252 = vadd.f32 0.0, %v2251
        %v2253 = vpop.f32.mrf.mxu0
        %2254 = vmatprep.mubr.bf16.mxu0 0
        %2255 = vmatmul.mubr.bf16.gmra.mxu0 %v2128
        %v2256 = vpop.f32.mrf.mxu0
        %v2257 = vadd.f32 0.0, %v2256
        %v2258 = vpop.f32.mrf.mxu0
        %v2259 = vpop.f32.mrf.mxu0
        %v2260 = vadd.f32 0.0, %v2259
        %v2261 = vpop.f32.mrf.mxu0
        %2262 = vmatprep.mubr.bf16.mxu0 0
        %2263 = vmatmul.mubr.bf16.gmra.mxu0 %v2129
        %v2264 = vpop.f32.mrf.mxu0
        %v2265 = vadd.f32 0.0, %v2264
        %v2266 = vpop.f32.mrf.mxu0
        %v2267 = vpop.f32.mrf.mxu0
        %v2268 = vadd.f32 0.0, %v2267
        %v2269 = vpop.f32.mrf.mxu0
        %2270 = vmatprep.mubr.bf16.mxu0 0
        %2271 = vmatmul.mubr.bf16.gmra.mxu0 %v2130
        %v2272 = vpop.f32.mrf.mxu0
        %v2273 = vadd.f32 0.0, %v2272
        %v2274 = vpop.f32.mrf.mxu0
        %v2275 = vpop.f32.mrf.mxu0
        %v2276 = vadd.f32 0.0, %v2275
        %v2277 = vpop.f32.mrf.mxu0
        %2278 = vmatprep.mubr.bf16.mxu0 0
        %2279 = vmatmul.mubr.bf16.gmra.mxu0 %v2131
        %v2280 = vpop.f32.mrf.mxu0
        %v2281 = vadd.f32 0.0, %v2280
        %v2282 = vpop.f32.mrf.mxu0
        %v2283 = vpop.f32.mrf.mxu0
        %v2284 = vadd.f32 0.0, %v2283
        %v2285 = vpop.f32.mrf.mxu0
        %2286 = vmatprep.mubr.bf16.mxu0 0
        %2287 = vmatmul.mubr.bf16.gmra.mxu0 %v2132
        %v2288 = vpop.f32.mrf.mxu0
        %v2289 = vadd.f32 0.0, %v2288
        %v2290 = vpop.f32.mrf.mxu0
        %v2291 = vpop.f32.mrf.mxu0
        %v2292 = vadd.f32 0.0, %v2291
        %v2293 = vpop.f32.mrf.mxu0
        %2294 = vmatprep.mubr.bf16.mxu0 0
        %2295 = vmatmul.mubr.bf16.gmra.mxu0 %v2133
        %v2296 = vpop.f32.mrf.mxu0
        %v2297 = vadd.f32 0.0, %v2296
        %v2298 = vpop.f32.mrf.mxu0
        %v2299 = vpop.f32.mrf.mxu0
        %v2300 = vadd.f32 0.0, %v2299
        %v2301 = vpop.f32.mrf.mxu0
        %2302 = vmatprep.mubr.bf16.mxu0 0
        %2303 = vmatmul.mubr.bf16.gmra.mxu0 %v2134
        %v2304 = vpop.f32.mrf.mxu0
        %v2305 = vadd.f32 0.0, %v2304
        %v2306 = vpop.f32.mrf.mxu0
        %v2307 = vpop.f32.mrf.mxu0
        %v2308 = vadd.f32 0.0, %v2307
        %v2309 = vpop.f32.mrf.mxu0
        %2310 = vmatprep.mubr.bf16.mxu0 0
        %2311 = vmatmul.mubr.bf16.gmra.mxu0 %v2135
        %v2312 = vpop.f32.mrf.mxu0
        %v2313 = vadd.f32 0.0, %v2312
        %v2314 = vpop.f32.mrf.mxu0
        %v2315 = vpop.f32.mrf.mxu0
        %v2316 = vadd.f32 0.0, %v2315
        %v2317 = vpop.f32.mrf.mxu0
        %2318 = vmatprep.mubr.bf16.mxu0 0
        %2319 = vmatmul.mubr.bf16.gmra.mxu0 %v2136
        %v2320 = vpop.f32.mrf.mxu0
        %v2321 = vadd.f32 0.0, %v2320
        %v2322 = vpop.f32.mrf.mxu0
        %v2323 = vpop.f32.mrf.mxu0
        %v2324 = vadd.f32 0.0, %v2323
        %v2325 = vpop.f32.mrf.mxu0
        %2326 = vmatprep.mubr.bf16.mxu0 0
        %2327 = vmatmul.mubr.bf16.gmra.mxu0 %v2137
        %v2328 = vpop.f32.mrf.mxu0
        %v2329 = vadd.f32 0.0, %v2328
        %v2330 = vpop.f32.mrf.mxu0
        %v2331 = vpop.f32.mrf.mxu0
        %v2332 = vadd.f32 0.0, %v2331
        %v2333 = vpop.f32.mrf.mxu0
        %2334 = vmatprep.mubr.bf16.mxu0 0
        %2335 = vmatmul.mubr.bf16.gmra.mxu0 %v2138
        %v2336 = vpop.f32.mrf.mxu0
        %v2337 = vadd.f32 0.0, %v2336
        %v2338 = vpop.f32.mrf.mxu0
        %v2339 = vpop.f32.mrf.mxu0
        %v2340 = vadd.f32 0.0, %v2339
        %v2341 = vpop.f32.mrf.mxu0
        %2342 = vmatprep.mubr.bf16.mxu0 0
        %2343 = vmatmul.mubr.bf16.gmra.mxu0 %v2139
        %v2344 = vpop.f32.mrf.mxu0
        %v2345 = vadd.f32 0.0, %v2344
        %v2346 = vpop.f32.mrf.mxu0
        %v2347 = vpop.f32.mrf.mxu0
        %v2348 = vadd.f32 0.0, %v2347
        %v2349 = vpop.f32.mrf.mxu0
        %2350 = vmatprep.mubr.bf16.mxu0 0
        %2351 = vmatmul.mubr.bf16.gmra.mxu0 %v2140
        %v2352 = vpop.f32.mrf.mxu0
        %v2353 = vadd.f32 0.0, %v2352
        %v2354 = vpop.f32.mrf.mxu0
        %v2355 = vpop.f32.mrf.mxu0
        %v2356 = vadd.f32 0.0, %v2355
        %v2357 = vpop.f32.mrf.mxu0
        %2358 = vmatprep.mubr.bf16.mxu0 0
        %2359 = vmatmul.mubr.bf16.gmra.mxu0 %v2141
        %v2360 = vpop.f32.mrf.mxu0
        %v2361 = vadd.f32 0.0, %v2360
        %v2362 = vpop.f32.mrf.mxu0
        %v2363 = vpop.f32.mrf.mxu0
        %v2364 = vadd.f32 0.0, %v2363
        %v2365 = vpop.f32.mrf.mxu0
        %2366 = vdwg.mxu0
        %v2399 = vunpack.c.l.b16 %v1964
        %v2400 = vunpack.c.l.b16 %v1965
        %v2401 = vunpack.c.l.b16 %v1966
        %v2402 = vunpack.c.l.b16 %v1967
        %v2403 = vunpack.c.l.b16 %v1968
        %v2404 = vunpack.c.l.b16 %v1969
        %v2405 = vunpack.c.l.b16 %v1970
        %v2406 = vunpack.c.l.b16 %v1971
        %v2407 = vunpack.c.l.b16 %v1972
        %v2408 = vunpack.c.l.b16 %v1973
        %v2409 = vunpack.c.l.b16 %v1974
        %v2410 = vunpack.c.l.b16 %v1975
        %v2411 = vunpack.c.l.b16 %v1976
        %v2412 = vunpack.c.l.b16 %v1977
        %v2413 = vunpack.c.l.b16 %v1978
        %v2414 = vunpack.c.l.b16 %v1979
        %v2415 = vunpack.c.l.b16 %v1980
        %v2416 = vunpack.c.l.b16 %v1981
        %v2417 = vunpack.c.l.b16 %v1982
        %v2418 = vunpack.c.l.b16 %v1983
        %v2419 = vunpack.c.l.b16 %v1984
        %v2420 = vunpack.c.l.b16 %v1985
        %v2421 = vunpack.c.l.b16 %v1986
        %v2422 = vunpack.c.l.b16 %v1987
        %v2423 = vunpack.c.l.b16 %v1988
        %v2424 = vunpack.c.l.b16 %v1989
        %v2425 = vunpack.c.l.b16 %v1990
        %v2426 = vunpack.c.l.b16 %v1991
        %v2427 = vunpack.c.l.b16 %v1992
        %v2428 = vunpack.c.l.b16 %v1993
        %v2429 = vunpack.c.l.b16 %v1994
        %v2430 = vunpack.c.l.b16 %v1995
        %v2431 = vpack.c.b16 %v2400, %v2399
        %v2432 = vpack.c.b16 %v2402, %v2401
        %v2433 = vpack.c.b16 %v2404, %v2403
        %v2434 = vpack.c.b16 %v2406, %v2405
        %v2435 = vpack.c.b16 %v2408, %v2407
        %v2436 = vpack.c.b16 %v2410, %v2409
        %v2437 = vpack.c.b16 %v2412, %v2411
        %v2438 = vpack.c.b16 %v2414, %v2413
        %v2439 = vpack.c.b16 %v2416, %v2415
        %v2440 = vpack.c.b16 %v2418, %v2417
        %v2441 = vpack.c.b16 %v2420, %v2419
        %v2442 = vpack.c.b16 %v2422, %v2421
        %v2443 = vpack.c.b16 %v2424, %v2423
        %v2444 = vpack.c.b16 %v2426, %v2425
        %v2445 = vpack.c.b16 %v2428, %v2427
        %v2446 = vpack.c.b16 %v2430, %v2429
        %v2479 = vunpack.c.l.b16 %v1997
        %v2480 = vunpack.c.l.b16 %v1998
        %v2481 = vunpack.c.l.b16 %v1999
        %v2482 = vunpack.c.l.b16 %v2000
        %v2483 = vunpack.c.l.b16 %v2001
        %v2484 = vunpack.c.l.b16 %v2002
        %v2485 = vunpack.c.l.b16 %v2003
        %v2486 = vunpack.c.l.b16 %v2004
        %v2487 = vunpack.c.l.b16 %v2005
        %v2488 = vunpack.c.l.b16 %v2006
        %v2489 = vunpack.c.l.b16 %v2007
        %v2490 = vunpack.c.l.b16 %v2008
        %v2491 = vunpack.c.l.b16 %v2009
        %v2492 = vunpack.c.l.b16 %v2010
        %v2493 = vunpack.c.l.b16 %v2011
        %v2494 = vunpack.c.l.b16 %v2012
        %v2495 = vpack.c.b16 %v2480, %v2479
        %v2496 = vpack.c.b16 %v2482, %v2481
        %v2497 = vpack.c.b16 %v2484, %v2483
        %v2498 = vpack.c.b16 %v2486, %v2485
        %v2499 = vpack.c.b16 %v2488, %v2487
        %v2500 = vpack.c.b16 %v2490, %v2489
        %v2501 = vpack.c.b16 %v2492, %v2491
        %v2502 = vpack.c.b16 %v2494, %v2493
        %2511 = vmatprep.subr.bf16.mxu0 0
        %2512 = vmatpush1.bf16.msra.mxu0 %v2502
        %2513 = vmatprep.subr.bf16.mxu0 0
        %2514 = vmatpush1.bf16.msra.mxu0 %v2501
        %2515 = vmatprep.subr.bf16.mxu0 0
        %2516 = vmatpush1.bf16.msra.mxu0 %v2500
        %2517 = vmatprep.subr.bf16.mxu0 0
        %2518 = vmatpush1.bf16.msra.mxu0 %v2499
        %2519 = vmatprep.subr.bf16.mxu0 0
        %2520 = vmatpush1.bf16.msra.mxu0 %v2498
        %2521 = vmatprep.subr.bf16.mxu0 0
        %2522 = vmatpush1.bf16.msra.mxu0 %v2497
        %2523 = vmatprep.subr.bf16.mxu0 0
        %2524 = vmatpush1.bf16.msra.mxu0 %v2496
        %2525 = vmatprep.subr.bf16.mxu0 0
        %2526 = vmatpush1.bf16.msra.mxu0 %v2495
        %2527 = vmatprep.subr.bf16.mxu0 0
        %2528 = vmatpush2.bf16.msra.mxu0 0
        %2529 = vmatprep.subr.bf16.mxu0 0
        %2530 = vmatpush2.bf16.msra.mxu0 0
        %2531 = vmatprep.subr.bf16.mxu0 0
        %2532 = vmatpush2.bf16.msra.mxu0 0
        %2533 = vmatprep.subr.bf16.mxu0 0
        %2534 = vmatpush2.bf16.msra.mxu0 0
        %2535 = vmatprep.subr.bf16.mxu0 0
        %2536 = vmatpush2.bf16.msra.mxu0 0
        %2537 = vmatprep.subr.bf16.mxu0 0
        %2538 = vmatpush2.bf16.msra.mxu0 0
        %2539 = vmatprep.subr.bf16.mxu0 0
        %2540 = vmatpush2.bf16.msra.mxu0 0
        %2541 = vmatprep.subr.bf16.mxu0 0
        %2542 = vmatpush2.bf16.msra.mxu0 0
        %2543 = vmatprep.mubr.bf16.mxu0 0
        %2544 = vmatmul.mubr.bf16.gmra.mxu0 %v2431
        %v2545 = vpop.f32.mrf.mxu0
        %v2546 = vadd.f32 %v2241, %v2545
        %v2547 = vpop.f32.mrf.mxu0
        %v2548 = vpop.f32.mrf.mxu0
        %v2549 = vadd.f32 %v2244, %v2548
        %v2550 = vpop.f32.mrf.mxu0
        %2551 = vmatprep.mubr.bf16.mxu0 0
        %2552 = vmatmul.mubr.bf16.gmra.mxu0 %v2432
        %v2553 = vpop.f32.mrf.mxu0
        %v2554 = vadd.f32 %v2249, %v2553
        %v2555 = vpop.f32.mrf.mxu0
        %v2556 = vpop.f32.mrf.mxu0
        %v2557 = vadd.f32 %v2252, %v2556
        %v2558 = vpop.f32.mrf.mxu0
        %2559 = vmatprep.mubr.bf16.mxu0 0
        %2560 = vmatmul.mubr.bf16.gmra.mxu0 %v2433
        %v2561 = vpop.f32.mrf.mxu0
        %v2562 = vadd.f32 %v2257, %v2561
        %v2563 = vpop.f32.mrf.mxu0
        %v2564 = vpop.f32.mrf.mxu0
        %v2565 = vadd.f32 %v2260, %v2564
        %v2566 = vpop.f32.mrf.mxu0
        %2567 = vmatprep.mubr.bf16.mxu0 0
        %2568 = vmatmul.mubr.bf16.gmra.mxu0 %v2434
        %v2569 = vpop.f32.mrf.mxu0
        %v2570 = vadd.f32 %v2265, %v2569
        %v2571 = vpop.f32.mrf.mxu0
        %v2572 = vpop.f32.mrf.mxu0
        %v2573 = vadd.f32 %v2268, %v2572
        %v2574 = vpop.f32.mrf.mxu0
        %2575 = vmatprep.mubr.bf16.mxu0 0
        %2576 = vmatmul.mubr.bf16.gmra.mxu0 %v2435
        %v2577 = vpop.f32.mrf.mxu0
        %v2578 = vadd.f32 %v2273, %v2577
        %v2579 = vpop.f32.mrf.mxu0
        %v2580 = vpop.f32.mrf.mxu0
        %v2581 = vadd.f32 %v2276, %v2580
        %v2582 = vpop.f32.mrf.mxu0
        %2583 = vmatprep.mubr.bf16.mxu0 0
        %2584 = vmatmul.mubr.bf16.gmra.mxu0 %v2436
        %v2585 = vpop.f32.mrf.mxu0
        %v2586 = vadd.f32 %v2281, %v2585
        %v2587 = vpop.f32.mrf.mxu0
        %v2588 = vpop.f32.mrf.mxu0
        %v2589 = vadd.f32 %v2284, %v2588
        %v2590 = vpop.f32.mrf.mxu0
        %2591 = vmatprep.mubr.bf16.mxu0 0
        %2592 = vmatmul.mubr.bf16.gmra.mxu0 %v2437
        %v2593 = vpop.f32.mrf.mxu0
        %v2594 = vadd.f32 %v2289, %v2593
        %v2595 = vpop.f32.mrf.mxu0
        %v2596 = vpop.f32.mrf.mxu0
        %v2597 = vadd.f32 %v2292, %v2596
        %v2598 = vpop.f32.mrf.mxu0
        %2599 = vmatprep.mubr.bf16.mxu0 0
        %2600 = vmatmul.mubr.bf16.gmra.mxu0 %v2438
        %v2601 = vpop.f32.mrf.mxu0
        %v2602 = vadd.f32 %v2297, %v2601
        %v2603 = vpop.f32.mrf.mxu0
        %v2604 = vpop.f32.mrf.mxu0
        %v2605 = vadd.f32 %v2300, %v2604
        %v2606 = vpop.f32.mrf.mxu0
        %2607 = vmatprep.mubr.bf16.mxu0 0
        %2608 = vmatmul.mubr.bf16.gmra.mxu0 %v2439
        %v2609 = vpop.f32.mrf.mxu0
        %v2610 = vadd.f32 %v2305, %v2609
        %v2611 = vpop.f32.mrf.mxu0
        %v2612 = vpop.f32.mrf.mxu0
        %v2613 = vadd.f32 %v2308, %v2612
        %v2614 = vpop.f32.mrf.mxu0
        %2615 = vmatprep.mubr.bf16.mxu0 0
        %2616 = vmatmul.mubr.bf16.gmra.mxu0 %v2440
        %v2617 = vpop.f32.mrf.mxu0
        %v2618 = vadd.f32 %v2313, %v2617
        %v2619 = vpop.f32.mrf.mxu0
        %v2620 = vpop.f32.mrf.mxu0
        %v2621 = vadd.f32 %v2316, %v2620
        %v2622 = vpop.f32.mrf.mxu0
        %2623 = vmatprep.mubr.bf16.mxu0 0
        %2624 = vmatmul.mubr.bf16.gmra.mxu0 %v2441
        %v2625 = vpop.f32.mrf.mxu0
        %v2626 = vadd.f32 %v2321, %v2625
        %v2627 = vpop.f32.mrf.mxu0
        %v2628 = vpop.f32.mrf.mxu0
        %v2629 = vadd.f32 %v2324, %v2628
        %v2630 = vpop.f32.mrf.mxu0
        %2631 = vmatprep.mubr.bf16.mxu0 0
        %2632 = vmatmul.mubr.bf16.gmra.mxu0 %v2442
        %v2633 = vpop.f32.mrf.mxu0
        %v2634 = vadd.f32 %v2329, %v2633
        %v2635 = vpop.f32.mrf.mxu0
        %v2636 = vpop.f32.mrf.mxu0
        %v2637 = vadd.f32 %v2332, %v2636
        %v2638 = vpop.f32.mrf.mxu0
        %2639 = vmatprep.mubr.bf16.mxu0 0
        %2640 = vmatmul.mubr.bf16.gmra.mxu0 %v2443
        %v2641 = vpop.f32.mrf.mxu0
        %v2642 = vadd.f32 %v2337, %v2641
        %v2643 = vpop.f32.mrf.mxu0
        %v2644 = vpop.f32.mrf.mxu0
        %v2645 = vadd.f32 %v2340, %v2644
        %v2646 = vpop.f32.mrf.mxu0
        %2647 = vmatprep.mubr.bf16.mxu0 0
        %2648 = vmatmul.mubr.bf16.gmra.mxu0 %v2444
        %v2649 = vpop.f32.mrf.mxu0
        %v2650 = vadd.f32 %v2345, %v2649
        %v2651 = vpop.f32.mrf.mxu0
        %v2652 = vpop.f32.mrf.mxu0
        %v2653 = vadd.f32 %v2348, %v2652
        %v2654 = vpop.f32.mrf.mxu0
        %2655 = vmatprep.mubr.bf16.mxu0 0
        %2656 = vmatmul.mubr.bf16.gmra.mxu0 %v2445
        %v2657 = vpop.f32.mrf.mxu0
        %v2658 = vadd.f32 %v2353, %v2657
        %v2659 = vpop.f32.mrf.mxu0
        %v2660 = vpop.f32.mrf.mxu0
        %v2661 = vadd.f32 %v2356, %v2660
        %v2662 = vpop.f32.mrf.mxu0
        %2663 = vmatprep.mubr.bf16.mxu0 0
        %2664 = vmatmul.mubr.bf16.gmra.mxu0 %v2446
        %v2665 = vpop.f32.mrf.mxu0
        %v2666 = vadd.f32 %v2361, %v2665
        %v2667 = vpop.f32.mrf.mxu0
        %v2668 = vpop.f32.mrf.mxu0
        %v2669 = vadd.f32 %v2364, %v2668
        %v2670 = vpop.f32.mrf.mxu0
        %2671 = vdwg.mxu0
        %s2672 = scalar_lea.vmem [#allocation2], 512
        %2673 = vst [vmem:[%s2672] sm:$0xff] %v2546
        %2674 = vst [vmem:[%s2672 + $0x8] sm:$0xff] %v2549
        %2675 = vst [vmem:[%s2672 + $0x10] sm:$0xff] %v2554
        %2676 = vst [vmem:[%s2672 + $0x18] sm:$0xff] %v2557
        %2677 = vst [vmem:[%s2672 + $0x20] sm:$0xff] %v2562
        %2678 = vst [vmem:[%s2672 + $0x28] sm:$0xff] %v2565
        %2679 = vst [vmem:[%s2672 + $0x30] sm:$0xff] %v2570
        %2680 = vst [vmem:[%s2672 + $0x38] sm:$0xff] %v2573
        %2681 = vst [vmem:[%s2672 + $0x40] sm:$0xff] %v2578
        %2682 = vst [vmem:[%s2672 + $0x48] sm:$0xff] %v2581
        %2683 = vst [vmem:[%s2672 + $0x50] sm:$0xff] %v2586
        %2684 = vst [vmem:[%s2672 + $0x58] sm:$0xff] %v2589
        %2685 = vst [vmem:[%s2672 + $0x60] sm:$0xff] %v2594
        %2686 = vst [vmem:[%s2672 + $0x68] sm:$0xff] %v2597
        %2687 = vst [vmem:[%s2672 + $0x70] sm:$0xff] %v2602
        %2688 = vst [vmem:[%s2672 + $0x78] sm:$0xff] %v2605
        %2689 = vst [vmem:[%s2672 + $0x80] sm:$0xff] %v2610
        %2690 = vst [vmem:[%s2672 + $0x88] sm:$0xff] %v2613
        %2691 = vst [vmem:[%s2672 + $0x90] sm:$0xff] %v2618
        %2692 = vst [vmem:[%s2672 + $0x98] sm:$0xff] %v2621
        %2693 = vst [vmem:[%s2672 + $0xa0] sm:$0xff] %v2626
        %2694 = vst [vmem:[%s2672 + $0xa8] sm:$0xff] %v2629
        %2695 = vst [vmem:[%s2672 + $0xb0] sm:$0xff] %v2634
        %2696 = vst [vmem:[%s2672 + $0xb8] sm:$0xff] %v2637
        %2697 = vst [vmem:[%s2672 + $0xc0] sm:$0xff] %v2642
        %2698 = vst [vmem:[%s2672 + $0xc8] sm:$0xff] %v2645
        %2699 = vst [vmem:[%s2672 + $0xd0] sm:$0xff] %v2650
        %2700 = vst [vmem:[%s2672 + $0xd8] sm:$0xff] %v2653
        %2701 = vst [vmem:[%s2672 + $0xe0] sm:$0xff] %v2658
        %2702 = vst [vmem:[%s2672 + $0xe8] sm:$0xff] %v2661
        %2703 = vst [vmem:[%s2672 + $0xf0] sm:$0xff] %v2666
        %2704 = vst [vmem:[%s2672 + $0xf8] sm:$0xff] %v2669
        %v2705 = vadd.f32 %v2546, %v2549
        %v2706 = vadd.f32 %v2705, %v2554
        %v2707 = vadd.f32 %v2706, %v2557
        %v2708 = vadd.f32 %v2707, %v2562
        %v2709 = vadd.f32 %v2708, %v2565
        %v2710 = vadd.f32 %v2709, %v2570
        %v2711 = vadd.f32 %v2710, %v2573
        %v2712 = vadd.f32 %v2711, %v2578
        %v2713 = vadd.f32 %v2712, %v2581
        %v2714 = vadd.f32 %v2713, %v2586
        %v2715 = vadd.f32 %v2714, %v2589
        %v2716 = vadd.f32 %v2715, %v2594
        %v2717 = vadd.f32 %v2716, %v2597
        %v2718 = vadd.f32 %v2717, %v2602
        %v2719 = vadd.f32 %v2718, %v2605
        %v2720 = vadd.f32 %v2719, %v2610
        %v2721 = vadd.f32 %v2720, %v2613
        %v2722 = vadd.f32 %v2721, %v2618
        %v2723 = vadd.f32 %v2722, %v2621
        %v2724 = vadd.f32 %v2723, %v2626
        %v2725 = vadd.f32 %v2724, %v2629
        %v2726 = vadd.f32 %v2725, %v2634
        %v2727 = vadd.f32 %v2726, %v2637
        %v2728 = vadd.f32 %v2727, %v2642
        %v2729 = vadd.f32 %v2728, %v2645
        %v2730 = vadd.f32 %v2729, %v2650
        %v2731 = vadd.f32 %v2730, %v2653
        %v2732 = vadd.f32 %v2731, %v2658
        %v2733 = vadd.f32 %v2732, %v2661
        %v2734 = vadd.f32 %v2733, %v2666
        %v2735 = vadd.f32 %v2734, %v2669
        %v2736 = vrot.slane %v2735, 4
        %v2737 = vadd.f32 %v2735, %v2736
        %v2738 = vrot.slane %v2737, 2
        %v2739 = vadd.f32 %v2737, %v2738
        %v2740 = vrot.slane %v2739, 1
        %v2741 = vadd.f32 %v2739, %v2740
        %v2742 = vadd.f32 %v1892, %v2741
        %v2743 = vmul.f32 %v2546, %v2546
        %v2744 = vmul.f32 %v2549, %v2549
        %v2745 = vmul.f32 %v2554, %v2554
        %v2746 = vmul.f32 %v2557, %v2557
        %v2747 = vmul.f32 %v2562, %v2562
        %v2748 = vmul.f32 %v2565, %v2565
        %v2749 = vmul.f32 %v2570, %v2570
        %v2750 = vmul.f32 %v2573, %v2573
        %v2751 = vmul.f32 %v2578, %v2578
        %v2752 = vmul.f32 %v2581, %v2581
        %v2753 = vmul.f32 %v2586, %v2586
        %v2754 = vmul.f32 %v2589, %v2589
        %v2755 = vmul.f32 %v2594, %v2594
        %v2756 = vmul.f32 %v2597, %v2597
        %v2757 = vmul.f32 %v2602, %v2602
        %v2758 = vmul.f32 %v2605, %v2605
        %v2759 = vmul.f32 %v2610, %v2610
        %v2760 = vmul.f32 %v2613, %v2613
        %v2761 = vmul.f32 %v2618, %v2618
        %v2762 = vmul.f32 %v2621, %v2621
        %v2763 = vmul.f32 %v2626, %v2626
        %v2764 = vmul.f32 %v2629, %v2629
        %v2765 = vmul.f32 %v2634, %v2634
        %v2766 = vmul.f32 %v2637, %v2637
        %v2767 = vmul.f32 %v2642, %v2642
        %v2768 = vmul.f32 %v2645, %v2645
        %v2769 = vmul.f32 %v2650, %v2650
        %v2770 = vmul.f32 %v2653, %v2653
        %v2771 = vmul.f32 %v2658, %v2658
        %v2772 = vmul.f32 %v2661, %v2661
        %v2773 = vmul.f32 %v2666, %v2666
        %v2774 = vmul.f32 %v2669, %v2669
        %v2775 = vadd.f32 %v2743, %v2744
        %v2776 = vadd.f32 %v2775, %v2745
        %v2777 = vadd.f32 %v2776, %v2746
        %v2778 = vadd.f32 %v2777, %v2747
        %v2779 = vadd.f32 %v2778, %v2748
        %v2780 = vadd.f32 %v2779, %v2749
        %v2781 = vadd.f32 %v2780, %v2750
        %v2782 = vadd.f32 %v2781, %v2751
        %v2783 = vadd.f32 %v2782, %v2752
        %v2784 = vadd.f32 %v2783, %v2753
        %v2785 = vadd.f32 %v2784, %v2754
        %v2786 = vadd.f32 %v2785, %v2755
        %v2787 = vadd.f32 %v2786, %v2756
        %v2788 = vadd.f32 %v2787, %v2757
        %v2789 = vadd.f32 %v2788, %v2758
        %v2790 = vadd.f32 %v2789, %v2759
        %v2791 = vadd.f32 %v2790, %v2760
        %v2792 = vadd.f32 %v2791, %v2761
        %v2793 = vadd.f32 %v2792, %v2762
        %v2794 = vadd.f32 %v2793, %v2763
        %v2795 = vadd.f32 %v2794, %v2764
        %v2796 = vadd.f32 %v2795, %v2765
        %v2797 = vadd.f32 %v2796, %v2766
        %v2798 = vadd.f32 %v2797, %v2767
        %v2799 = vadd.f32 %v2798, %v2768
        %v2800 = vadd.f32 %v2799, %v2769
        %v2801 = vadd.f32 %v2800, %v2770
        %v2802 = vadd.f32 %v2801, %v2771
        %v2803 = vadd.f32 %v2802, %v2772
        %v2804 = vadd.f32 %v2803, %v2773
        %v2805 = vadd.f32 %v2804, %v2774
        %v2806 = vrot.slane %v2805, 4
        %v2807 = vadd.f32 %v2805, %v2806
        %v2808 = vrot.slane %v2807, 2
        %v2809 = vadd.f32 %v2807, %v2808
        %v2810 = vrot.slane %v2809, 1
        %v2811 = vadd.f32 %v2809, %v2810
        %v2812 = vadd.f32 %v1962, %v2811
        %s2813 = scalar_lea.vmem %s232, 16 [#allocation6]
        %v2814 = vld [vmem:[%s2813] sm:$0xf]
        %v2815 = vld [vmem:[%s2813 + $0x4] sm:$0xf]
        %v2816 = vld [vmem:[%s2813 + $0x8] sm:$0xf]
        %v2817 = vld [vmem:[%s2813 + $0xc] sm:$0xf]
        %v2818 = vld [vmem:[%s2813 + $0x10] sm:$0xf]
        %v2819 = vld [vmem:[%s2813 + $0x14] sm:$0xf]
        %v2820 = vld [vmem:[%s2813 + $0x18] sm:$0xf]
        %v2821 = vld [vmem:[%s2813 + $0x1c] sm:$0xf]
        %v2822 = vld [vmem:[%s2813 + $0x20] sm:$0xf]
        %v2823 = vld [vmem:[%s2813 + $0x24] sm:$0xf]
        %v2824 = vld [vmem:[%s2813 + $0x28] sm:$0xf]
        %v2825 = vld [vmem:[%s2813 + $0x2c] sm:$0xf]
        %v2826 = vld [vmem:[%s2813 + $0x30] sm:$0xf]
        %v2827 = vld [vmem:[%s2813 + $0x34] sm:$0xf]
        %v2828 = vld [vmem:[%s2813 + $0x38] sm:$0xf]
        %v2829 = vld [vmem:[%s2813 + $0x3c] sm:$0xf]
        %v2830 = vld [vmem:[%s2813 + $0x40] sm:$0xf]
        %v2831 = vld [vmem:[%s2813 + $0x44] sm:$0xf]
        %v2832 = vld [vmem:[%s2813 + $0x48] sm:$0xf]
        %v2833 = vld [vmem:[%s2813 + $0x4c] sm:$0xf]
        %v2834 = vld [vmem:[%s2813 + $0x50] sm:$0xf]
        %v2835 = vld [vmem:[%s2813 + $0x54] sm:$0xf]
        %v2836 = vld [vmem:[%s2813 + $0x58] sm:$0xf]
        %v2837 = vld [vmem:[%s2813 + $0x5c] sm:$0xf]
        %v2838 = vld [vmem:[%s2813 + $0x60] sm:$0xf]
        %v2839 = vld [vmem:[%s2813 + $0x64] sm:$0xf]
        %v2840 = vld [vmem:[%s2813 + $0x68] sm:$0xf]
        %v2841 = vld [vmem:[%s2813 + $0x6c] sm:$0xf]
        %v2842 = vld [vmem:[%s2813 + $0x70] sm:$0xf]
        %v2843 = vld [vmem:[%s2813 + $0x74] sm:$0xf]
        %v2844 = vld [vmem:[%s2813 + $0x78] sm:$0xf]
        %v2845 = vld [vmem:[%s2813 + $0x7c] sm:$0xf]
        %s2846 = scalar_lea.vmem [#allocation8], 384
        %v2847 = vld [vmem:[%s2846] sm:$0xf]
        %v2848 = vld [vmem:[%s2846 + $0x4] sm:$0xf]
        %v2849 = vld [vmem:[%s2846 + $0x8] sm:$0xf]
        %v2850 = vld [vmem:[%s2846 + $0xc] sm:$0xf]
        %v2851 = vld [vmem:[%s2846 + $0x10] sm:$0xf]
        %v2852 = vld [vmem:[%s2846 + $0x14] sm:$0xf]
        %v2853 = vld [vmem:[%s2846 + $0x18] sm:$0xf]
        %v2854 = vld [vmem:[%s2846 + $0x1c] sm:$0xf]
        %v2855 = vld [vmem:[%s2846 + $0x20] sm:$0xf]
        %v2856 = vld [vmem:[%s2846 + $0x24] sm:$0xf]
        %v2857 = vld [vmem:[%s2846 + $0x28] sm:$0xf]
        %v2858 = vld [vmem:[%s2846 + $0x2c] sm:$0xf]
        %v2859 = vld [vmem:[%s2846 + $0x30] sm:$0xf]
        %v2860 = vld [vmem:[%s2846 + $0x34] sm:$0xf]
        %v2861 = vld [vmem:[%s2846 + $0x38] sm:$0xf]
        %v2862 = vld [vmem:[%s2846 + $0x3c] sm:$0xf]
        %v2863 = vld [vmem:[%s1113] sm:$0xf]
        %v2864 = vld [vmem:[%s1113 + $0x4] sm:$0xf]
        %v2865 = vld [vmem:[%s1113 + $0x8] sm:$0xf]
        %v2866 = vld [vmem:[%s1113 + $0xc] sm:$0xf]
        %v2867 = vld [vmem:[%s1113 + $0x10] sm:$0xf]
        %v2868 = vld [vmem:[%s1113 + $0x14] sm:$0xf]
        %v2869 = vld [vmem:[%s1113 + $0x18] sm:$0xf]
        %v2870 = vld [vmem:[%s1113 + $0x1c] sm:$0xf]
        %v2871 = vld [vmem:[%s1113 + $0x20] sm:$0xf]
        %v2872 = vld [vmem:[%s1113 + $0x24] sm:$0xf]
        %v2873 = vld [vmem:[%s1113 + $0x28] sm:$0xf]
        %v2874 = vld [vmem:[%s1113 + $0x2c] sm:$0xf]
        %v2875 = vld [vmem:[%s1113 + $0x30] sm:$0xf]
        %v2876 = vld [vmem:[%s1113 + $0x34] sm:$0xf]
        %v2877 = vld [vmem:[%s1113 + $0x38] sm:$0xf]
        %v2878 = vld [vmem:[%s1113 + $0x3c] sm:$0xf]
        %v2879 = vld [vmem:[%s1113 + $0x40] sm:$0xf]
        %v2880 = vld [vmem:[%s1113 + $0x44] sm:$0xf]
        %v2881 = vld [vmem:[%s1113 + $0x48] sm:$0xf]
        %v2882 = vld [vmem:[%s1113 + $0x4c] sm:$0xf]
        %v2883 = vld [vmem:[%s1113 + $0x50] sm:$0xf]
        %v2884 = vld [vmem:[%s1113 + $0x54] sm:$0xf]
        %v2885 = vld [vmem:[%s1113 + $0x58] sm:$0xf]
        %v2886 = vld [vmem:[%s1113 + $0x5c] sm:$0xf]
        %v2887 = vld [vmem:[%s1113 + $0x60] sm:$0xf]
        %v2888 = vld [vmem:[%s1113 + $0x64] sm:$0xf]
        %v2889 = vld [vmem:[%s1113 + $0x68] sm:$0xf]
        %v2890 = vld [vmem:[%s1113 + $0x6c] sm:$0xf]
        %v2891 = vld [vmem:[%s1113 + $0x70] sm:$0xf]
        %v2892 = vld [vmem:[%s1113 + $0x74] sm:$0xf]
        %v2893 = vld [vmem:[%s1113 + $0x78] sm:$0xf]
        %v2894 = vld [vmem:[%s1113 + $0x7c] sm:$0xf]
        %s2895 = scalar_lea.vmem [#allocation8], 448
        %v2896 = vld [vmem:[%s2895] sm:$0xf]
        %v2897 = vld [vmem:[%s2895 + $0x4] sm:$0xf]
        %v2898 = vld [vmem:[%s2895 + $0x8] sm:$0xf]
        %v2899 = vld [vmem:[%s2895 + $0xc] sm:$0xf]
        %v2900 = vld [vmem:[%s2895 + $0x10] sm:$0xf]
        %v2901 = vld [vmem:[%s2895 + $0x14] sm:$0xf]
        %v2902 = vld [vmem:[%s2895 + $0x18] sm:$0xf]
        %v2903 = vld [vmem:[%s2895 + $0x1c] sm:$0xf]
        %v2904 = vld [vmem:[%s2895 + $0x20] sm:$0xf]
        %v2905 = vld [vmem:[%s2895 + $0x24] sm:$0xf]
        %v2906 = vld [vmem:[%s2895 + $0x28] sm:$0xf]
        %v2907 = vld [vmem:[%s2895 + $0x2c] sm:$0xf]
        %v2908 = vld [vmem:[%s2895 + $0x30] sm:$0xf]
        %v2909 = vld [vmem:[%s2895 + $0x34] sm:$0xf]
        %v2910 = vld [vmem:[%s2895 + $0x38] sm:$0xf]
        %v2911 = vld [vmem:[%s2895 + $0x3c] sm:$0xf]
        %v2944 = vunpack.c.l.b16 %v2863
        %v2945 = vunpack.c.l.b16 %v2864
        %v2946 = vunpack.c.l.b16 %v2865
        %v2947 = vunpack.c.l.b16 %v2866
        %v2948 = vunpack.c.l.b16 %v2867
        %v2949 = vunpack.c.l.b16 %v2868
        %v2950 = vunpack.c.l.b16 %v2869
        %v2951 = vunpack.c.l.b16 %v2870
        %v2952 = vunpack.c.l.b16 %v2871
        %v2953 = vunpack.c.l.b16 %v2872
        %v2954 = vunpack.c.l.b16 %v2873
        %v2955 = vunpack.c.l.b16 %v2874
        %v2956 = vunpack.c.l.b16 %v2875
        %v2957 = vunpack.c.l.b16 %v2876
        %v2958 = vunpack.c.l.b16 %v2877
        %v2959 = vunpack.c.l.b16 %v2878
        %v2960 = vunpack.c.l.b16 %v2879
        %v2961 = vunpack.c.l.b16 %v2880
        %v2962 = vunpack.c.l.b16 %v2881
        %v2963 = vunpack.c.l.b16 %v2882
        %v2964 = vunpack.c.l.b16 %v2883
        %v2965 = vunpack.c.l.b16 %v2884
        %v2966 = vunpack.c.l.b16 %v2885
        %v2967 = vunpack.c.l.b16 %v2886
        %v2968 = vunpack.c.l.b16 %v2887
        %v2969 = vunpack.c.l.b16 %v2888
        %v2970 = vunpack.c.l.b16 %v2889
        %v2971 = vunpack.c.l.b16 %v2890
        %v2972 = vunpack.c.l.b16 %v2891
        %v2973 = vunpack.c.l.b16 %v2892
        %v2974 = vunpack.c.l.b16 %v2893
        %v2975 = vunpack.c.l.b16 %v2894
        %v2976 = vpack.c.b16 %v2945, %v2944
        %v2977 = vpack.c.b16 %v2947, %v2946
        %v2978 = vpack.c.b16 %v2949, %v2948
        %v2979 = vpack.c.b16 %v2951, %v2950
        %v2980 = vpack.c.b16 %v2953, %v2952
        %v2981 = vpack.c.b16 %v2955, %v2954
        %v2982 = vpack.c.b16 %v2957, %v2956
        %v2983 = vpack.c.b16 %v2959, %v2958
        %v2984 = vpack.c.b16 %v2961, %v2960
        %v2985 = vpack.c.b16 %v2963, %v2962
        %v2986 = vpack.c.b16 %v2965, %v2964
        %v2987 = vpack.c.b16 %v2967, %v2966
        %v2988 = vpack.c.b16 %v2969, %v2968
        %v2989 = vpack.c.b16 %v2971, %v2970
        %v2990 = vpack.c.b16 %v2973, %v2972
        %v2991 = vpack.c.b16 %v2975, %v2974
        %v3024 = vunpack.c.l.b16 %v2896
        %v3025 = vunpack.c.l.b16 %v2897
        %v3026 = vunpack.c.l.b16 %v2898
        %v3027 = vunpack.c.l.b16 %v2899
        %v3028 = vunpack.c.l.b16 %v2900
        %v3029 = vunpack.c.l.b16 %v2901
        %v3030 = vunpack.c.l.b16 %v2902
        %v3031 = vunpack.c.l.b16 %v2903
        %v3032 = vunpack.c.l.b16 %v2904
        %v3033 = vunpack.c.l.b16 %v2905
        %v3034 = vunpack.c.l.b16 %v2906
        %v3035 = vunpack.c.l.b16 %v2907
        %v3036 = vunpack.c.l.b16 %v2908
        %v3037 = vunpack.c.l.b16 %v2909
        %v3038 = vunpack.c.l.b16 %v2910
        %v3039 = vunpack.c.l.b16 %v2911
        %v3040 = vpack.c.b16 %v3025, %v3024
        %v3041 = vpack.c.b16 %v3027, %v3026
        %v3042 = vpack.c.b16 %v3029, %v3028
        %v3043 = vpack.c.b16 %v3031, %v3030
        %v3044 = vpack.c.b16 %v3033, %v3032
        %v3045 = vpack.c.b16 %v3035, %v3034
        %v3046 = vpack.c.b16 %v3037, %v3036
        %v3047 = vpack.c.b16 %v3039, %v3038
        %3056 = vmatprep.subr.bf16.mxu0 0
        %3057 = vmatpush1.bf16.msra.mxu0 %v3047
        %3058 = vmatprep.subr.bf16.mxu0 0
        %3059 = vmatpush1.bf16.msra.mxu0 %v3046
        %3060 = vmatprep.subr.bf16.mxu0 0
        %3061 = vmatpush1.bf16.msra.mxu0 %v3045
        %3062 = vmatprep.subr.bf16.mxu0 0
        %3063 = vmatpush1.bf16.msra.mxu0 %v3044
        %3064 = vmatprep.subr.bf16.mxu0 0
        %3065 = vmatpush1.bf16.msra.mxu0 %v3043
        %3066 = vmatprep.subr.bf16.mxu0 0
        %3067 = vmatpush1.bf16.msra.mxu0 %v3042
        %3068 = vmatprep.subr.bf16.mxu0 0
        %3069 = vmatpush1.bf16.msra.mxu0 %v3041
        %3070 = vmatprep.subr.bf16.mxu0 0
        %3071 = vmatpush1.bf16.msra.mxu0 %v3040
        %3072 = vmatprep.subr.bf16.mxu0 0
        %3073 = vmatpush2.bf16.msra.mxu0 0
        %3074 = vmatprep.subr.bf16.mxu0 0
        %3075 = vmatpush2.bf16.msra.mxu0 0
        %3076 = vmatprep.subr.bf16.mxu0 0
        %3077 = vmatpush2.bf16.msra.mxu0 0
        %3078 = vmatprep.subr.bf16.mxu0 0
        %3079 = vmatpush2.bf16.msra.mxu0 0
        %3080 = vmatprep.subr.bf16.mxu0 0
        %3081 = vmatpush2.bf16.msra.mxu0 0
        %3082 = vmatprep.subr.bf16.mxu0 0
        %3083 = vmatpush2.bf16.msra.mxu0 0
        %3084 = vmatprep.subr.bf16.mxu0 0
        %3085 = vmatpush2.bf16.msra.mxu0 0
        %3086 = vmatprep.subr.bf16.mxu0 0
        %3087 = vmatpush2.bf16.msra.mxu0 0
        %3088 = vmatprep.mubr.bf16.mxu0 0
        %3089 = vmatmul.mubr.bf16.gmra.mxu0 %v2976
        %v3090 = vpop.f32.mrf.mxu0
        %v3091 = vadd.f32 0.0, %v3090
        %v3092 = vpop.f32.mrf.mxu0
        %v3093 = vpop.f32.mrf.mxu0
        %v3094 = vadd.f32 0.0, %v3093
        %v3095 = vpop.f32.mrf.mxu0
        %3096 = vmatprep.mubr.bf16.mxu0 0
        %3097 = vmatmul.mubr.bf16.gmra.mxu0 %v2977
        %v3098 = vpop.f32.mrf.mxu0
        %v3099 = vadd.f32 0.0, %v3098
        %v3100 = vpop.f32.mrf.mxu0
        %v3101 = vpop.f32.mrf.mxu0
        %v3102 = vadd.f32 0.0, %v3101
        %v3103 = vpop.f32.mrf.mxu0
        %3104 = vmatprep.mubr.bf16.mxu0 0
        %3105 = vmatmul.mubr.bf16.gmra.mxu0 %v2978
        %v3106 = vpop.f32.mrf.mxu0
        %v3107 = vadd.f32 0.0, %v3106
        %v3108 = vpop.f32.mrf.mxu0
        %v3109 = vpop.f32.mrf.mxu0
        %v3110 = vadd.f32 0.0, %v3109
        %v3111 = vpop.f32.mrf.mxu0
        %3112 = vmatprep.mubr.bf16.mxu0 0
        %3113 = vmatmul.mubr.bf16.gmra.mxu0 %v2979
        %v3114 = vpop.f32.mrf.mxu0
        %v3115 = vadd.f32 0.0, %v3114
        %v3116 = vpop.f32.mrf.mxu0
        %v3117 = vpop.f32.mrf.mxu0
        %v3118 = vadd.f32 0.0, %v3117
        %v3119 = vpop.f32.mrf.mxu0
        %3120 = vmatprep.mubr.bf16.mxu0 0
        %3121 = vmatmul.mubr.bf16.gmra.mxu0 %v2980
        %v3122 = vpop.f32.mrf.mxu0
        %v3123 = vadd.f32 0.0, %v3122
        %v3124 = vpop.f32.mrf.mxu0
        %v3125 = vpop.f32.mrf.mxu0
        %v3126 = vadd.f32 0.0, %v3125
        %v3127 = vpop.f32.mrf.mxu0
        %3128 = vmatprep.mubr.bf16.mxu0 0
        %3129 = vmatmul.mubr.bf16.gmra.mxu0 %v2981
        %v3130 = vpop.f32.mrf.mxu0
        %v3131 = vadd.f32 0.0, %v3130
        %v3132 = vpop.f32.mrf.mxu0
        %v3133 = vpop.f32.mrf.mxu0
        %v3134 = vadd.f32 0.0, %v3133
        %v3135 = vpop.f32.mrf.mxu0
        %3136 = vmatprep.mubr.bf16.mxu0 0
        %3137 = vmatmul.mubr.bf16.gmra.mxu0 %v2982
        %v3138 = vpop.f32.mrf.mxu0
        %v3139 = vadd.f32 0.0, %v3138
        %v3140 = vpop.f32.mrf.mxu0
        %v3141 = vpop.f32.mrf.mxu0
        %v3142 = vadd.f32 0.0, %v3141
        %v3143 = vpop.f32.mrf.mxu0
        %3144 = vmatprep.mubr.bf16.mxu0 0
        %3145 = vmatmul.mubr.bf16.gmra.mxu0 %v2983
        %v3146 = vpop.f32.mrf.mxu0
        %v3147 = vadd.f32 0.0, %v3146
        %v3148 = vpop.f32.mrf.mxu0
        %v3149 = vpop.f32.mrf.mxu0
        %v3150 = vadd.f32 0.0, %v3149
        %v3151 = vpop.f32.mrf.mxu0
        %3152 = vmatprep.mubr.bf16.mxu0 0
        %3153 = vmatmul.mubr.bf16.gmra.mxu0 %v2984
        %v3154 = vpop.f32.mrf.mxu0
        %v3155 = vadd.f32 0.0, %v3154
        %v3156 = vpop.f32.mrf.mxu0
        %v3157 = vpop.f32.mrf.mxu0
        %v3158 = vadd.f32 0.0, %v3157
        %v3159 = vpop.f32.mrf.mxu0
        %3160 = vmatprep.mubr.bf16.mxu0 0
        %3161 = vmatmul.mubr.bf16.gmra.mxu0 %v2985
        %v3162 = vpop.f32.mrf.mxu0
        %v3163 = vadd.f32 0.0, %v3162
        %v3164 = vpop.f32.mrf.mxu0
        %v3165 = vpop.f32.mrf.mxu0
        %v3166 = vadd.f32 0.0, %v3165
        %v3167 = vpop.f32.mrf.mxu0
        %3168 = vmatprep.mubr.bf16.mxu0 0
        %3169 = vmatmul.mubr.bf16.gmra.mxu0 %v2986
        %v3170 = vpop.f32.mrf.mxu0
        %v3171 = vadd.f32 0.0, %v3170
        %v3172 = vpop.f32.mrf.mxu0
        %v3173 = vpop.f32.mrf.mxu0
        %v3174 = vadd.f32 0.0, %v3173
        %v3175 = vpop.f32.mrf.mxu0
        %3176 = vmatprep.mubr.bf16.mxu0 0
        %3177 = vmatmul.mubr.bf16.gmra.mxu0 %v2987
        %v3178 = vpop.f32.mrf.mxu0
        %v3179 = vadd.f32 0.0, %v3178
        %v3180 = vpop.f32.mrf.mxu0
        %v3181 = vpop.f32.mrf.mxu0
        %v3182 = vadd.f32 0.0, %v3181
        %v3183 = vpop.f32.mrf.mxu0
        %3184 = vmatprep.mubr.bf16.mxu0 0
        %3185 = vmatmul.mubr.bf16.gmra.mxu0 %v2988
        %v3186 = vpop.f32.mrf.mxu0
        %v3187 = vadd.f32 0.0, %v3186
        %v3188 = vpop.f32.mrf.mxu0
        %v3189 = vpop.f32.mrf.mxu0
        %v3190 = vadd.f32 0.0, %v3189
        %v3191 = vpop.f32.mrf.mxu0
        %3192 = vmatprep.mubr.bf16.mxu0 0
        %3193 = vmatmul.mubr.bf16.gmra.mxu0 %v2989
        %v3194 = vpop.f32.mrf.mxu0
        %v3195 = vadd.f32 0.0, %v3194
        %v3196 = vpop.f32.mrf.mxu0
        %v3197 = vpop.f32.mrf.mxu0
        %v3198 = vadd.f32 0.0, %v3197
        %v3199 = vpop.f32.mrf.mxu0
        %3200 = vmatprep.mubr.bf16.mxu0 0
        %3201 = vmatmul.mubr.bf16.gmra.mxu0 %v2990
        %v3202 = vpop.f32.mrf.mxu0
        %v3203 = vadd.f32 0.0, %v3202
        %v3204 = vpop.f32.mrf.mxu0
        %v3205 = vpop.f32.mrf.mxu0
        %v3206 = vadd.f32 0.0, %v3205
        %v3207 = vpop.f32.mrf.mxu0
        %3208 = vmatprep.mubr.bf16.mxu0 0
        %3209 = vmatmul.mubr.bf16.gmra.mxu0 %v2991
        %v3210 = vpop.f32.mrf.mxu0
        %v3211 = vadd.f32 0.0, %v3210
        %v3212 = vpop.f32.mrf.mxu0
        %v3213 = vpop.f32.mrf.mxu0
        %v3214 = vadd.f32 0.0, %v3213
        %v3215 = vpop.f32.mrf.mxu0
        %3216 = vdwg.mxu0
        %v3249 = vunpack.c.l.b16 %v2814
        %v3250 = vunpack.c.l.b16 %v2815
        %v3251 = vunpack.c.l.b16 %v2816
        %v3252 = vunpack.c.l.b16 %v2817
        %v3253 = vunpack.c.l.b16 %v2818
        %v3254 = vunpack.c.l.b16 %v2819
        %v3255 = vunpack.c.l.b16 %v2820
        %v3256 = vunpack.c.l.b16 %v2821
        %v3257 = vunpack.c.l.b16 %v2822
        %v3258 = vunpack.c.l.b16 %v2823
        %v3259 = vunpack.c.l.b16 %v2824
        %v3260 = vunpack.c.l.b16 %v2825
        %v3261 = vunpack.c.l.b16 %v2826
        %v3262 = vunpack.c.l.b16 %v2827
        %v3263 = vunpack.c.l.b16 %v2828
        %v3264 = vunpack.c.l.b16 %v2829
        %v3265 = vunpack.c.l.b16 %v2830
        %v3266 = vunpack.c.l.b16 %v2831
        %v3267 = vunpack.c.l.b16 %v2832
        %v3268 = vunpack.c.l.b16 %v2833
        %v3269 = vunpack.c.l.b16 %v2834
        %v3270 = vunpack.c.l.b16 %v2835
        %v3271 = vunpack.c.l.b16 %v2836
        %v3272 = vunpack.c.l.b16 %v2837
        %v3273 = vunpack.c.l.b16 %v2838
        %v3274 = vunpack.c.l.b16 %v2839
        %v3275 = vunpack.c.l.b16 %v2840
        %v3276 = vunpack.c.l.b16 %v2841
        %v3277 = vunpack.c.l.b16 %v2842
        %v3278 = vunpack.c.l.b16 %v2843
        %v3279 = vunpack.c.l.b16 %v2844
        %v3280 = vunpack.c.l.b16 %v2845
        %v3281 = vpack.c.b16 %v3250, %v3249
        %v3282 = vpack.c.b16 %v3252, %v3251
        %v3283 = vpack.c.b16 %v3254, %v3253
        %v3284 = vpack.c.b16 %v3256, %v3255
        %v3285 = vpack.c.b16 %v3258, %v3257
        %v3286 = vpack.c.b16 %v3260, %v3259
        %v3287 = vpack.c.b16 %v3262, %v3261
        %v3288 = vpack.c.b16 %v3264, %v3263
        %v3289 = vpack.c.b16 %v3266, %v3265
        %v3290 = vpack.c.b16 %v3268, %v3267
        %v3291 = vpack.c.b16 %v3270, %v3269
        %v3292 = vpack.c.b16 %v3272, %v3271
        %v3293 = vpack.c.b16 %v3274, %v3273
        %v3294 = vpack.c.b16 %v3276, %v3275
        %v3295 = vpack.c.b16 %v3278, %v3277
        %v3296 = vpack.c.b16 %v3280, %v3279
        %v3329 = vunpack.c.l.b16 %v2847
        %v3330 = vunpack.c.l.b16 %v2848
        %v3331 = vunpack.c.l.b16 %v2849
        %v3332 = vunpack.c.l.b16 %v2850
        %v3333 = vunpack.c.l.b16 %v2851
        %v3334 = vunpack.c.l.b16 %v2852
        %v3335 = vunpack.c.l.b16 %v2853
        %v3336 = vunpack.c.l.b16 %v2854
        %v3337 = vunpack.c.l.b16 %v2855
        %v3338 = vunpack.c.l.b16 %v2856
        %v3339 = vunpack.c.l.b16 %v2857
        %v3340 = vunpack.c.l.b16 %v2858
        %v3341 = vunpack.c.l.b16 %v2859
        %v3342 = vunpack.c.l.b16 %v2860
        %v3343 = vunpack.c.l.b16 %v2861
        %v3344 = vunpack.c.l.b16 %v2862
        %v3345 = vpack.c.b16 %v3330, %v3329
        %v3346 = vpack.c.b16 %v3332, %v3331
        %v3347 = vpack.c.b16 %v3334, %v3333
        %v3348 = vpack.c.b16 %v3336, %v3335
        %v3349 = vpack.c.b16 %v3338, %v3337
        %v3350 = vpack.c.b16 %v3340, %v3339
        %v3351 = vpack.c.b16 %v3342, %v3341
        %v3352 = vpack.c.b16 %v3344, %v3343
        %3361 = vmatprep.subr.bf16.mxu0 0
        %3362 = vmatpush1.bf16.msra.mxu0 %v3352
        %3363 = vmatprep.subr.bf16.mxu0 0
        %3364 = vmatpush1.bf16.msra.mxu0 %v3351
        %3365 = vmatprep.subr.bf16.mxu0 0
        %3366 = vmatpush1.bf16.msra.mxu0 %v3350
        %3367 = vmatprep.subr.bf16.mxu0 0
        %3368 = vmatpush1.bf16.msra.mxu0 %v3349
        %3369 = vmatprep.subr.bf16.mxu0 0
        %3370 = vmatpush1.bf16.msra.mxu0 %v3348
        %3371 = vmatprep.subr.bf16.mxu0 0
        %3372 = vmatpush1.bf16.msra.mxu0 %v3347
        %3373 = vmatprep.subr.bf16.mxu0 0
        %3374 = vmatpush1.bf16.msra.mxu0 %v3346
        %3375 = vmatprep.subr.bf16.mxu0 0
        %3376 = vmatpush1.bf16.msra.mxu0 %v3345
        %3377 = vmatprep.subr.bf16.mxu0 0
        %3378 = vmatpush2.bf16.msra.mxu0 0
        %3379 = vmatprep.subr.bf16.mxu0 0
        %3380 = vmatpush2.bf16.msra.mxu0 0
        %3381 = vmatprep.subr.bf16.mxu0 0
        %3382 = vmatpush2.bf16.msra.mxu0 0
        %3383 = vmatprep.subr.bf16.mxu0 0
        %3384 = vmatpush2.bf16.msra.mxu0 0
        %3385 = vmatprep.subr.bf16.mxu0 0
        %3386 = vmatpush2.bf16.msra.mxu0 0
        %3387 = vmatprep.subr.bf16.mxu0 0
        %3388 = vmatpush2.bf16.msra.mxu0 0
        %3389 = vmatprep.subr.bf16.mxu0 0
        %3390 = vmatpush2.bf16.msra.mxu0 0
        %3391 = vmatprep.subr.bf16.mxu0 0
        %3392 = vmatpush2.bf16.msra.mxu0 0
        %3393 = vmatprep.mubr.bf16.mxu0 0
        %3394 = vmatmul.mubr.bf16.gmra.mxu0 %v3281
        %v3395 = vpop.f32.mrf.mxu0
        %v3396 = vadd.f32 %v3091, %v3395
        %v3397 = vpop.f32.mrf.mxu0
        %v3398 = vpop.f32.mrf.mxu0
        %v3399 = vadd.f32 %v3094, %v3398
        %v3400 = vpop.f32.mrf.mxu0
        %3401 = vmatprep.mubr.bf16.mxu0 0
        %3402 = vmatmul.mubr.bf16.gmra.mxu0 %v3282
        %v3403 = vpop.f32.mrf.mxu0
        %v3404 = vadd.f32 %v3099, %v3403
        %v3405 = vpop.f32.mrf.mxu0
        %v3406 = vpop.f32.mrf.mxu0
        %v3407 = vadd.f32 %v3102, %v3406
        %v3408 = vpop.f32.mrf.mxu0
        %3409 = vmatprep.mubr.bf16.mxu0 0
        %3410 = vmatmul.mubr.bf16.gmra.mxu0 %v3283
        %v3411 = vpop.f32.mrf.mxu0
        %v3412 = vadd.f32 %v3107, %v3411
        %v3413 = vpop.f32.mrf.mxu0
        %v3414 = vpop.f32.mrf.mxu0
        %v3415 = vadd.f32 %v3110, %v3414
        %v3416 = vpop.f32.mrf.mxu0
        %3417 = vmatprep.mubr.bf16.mxu0 0
        %3418 = vmatmul.mubr.bf16.gmra.mxu0 %v3284
        %v3419 = vpop.f32.mrf.mxu0
        %v3420 = vadd.f32 %v3115, %v3419
        %v3421 = vpop.f32.mrf.mxu0
        %v3422 = vpop.f32.mrf.mxu0
        %v3423 = vadd.f32 %v3118, %v3422
        %v3424 = vpop.f32.mrf.mxu0
        %3425 = vmatprep.mubr.bf16.mxu0 0
        %3426 = vmatmul.mubr.bf16.gmra.mxu0 %v3285
        %v3427 = vpop.f32.mrf.mxu0
        %v3428 = vadd.f32 %v3123, %v3427
        %v3429 = vpop.f32.mrf.mxu0
        %v3430 = vpop.f32.mrf.mxu0
        %v3431 = vadd.f32 %v3126, %v3430
        %v3432 = vpop.f32.mrf.mxu0
        %3433 = vmatprep.mubr.bf16.mxu0 0
        %3434 = vmatmul.mubr.bf16.gmra.mxu0 %v3286
        %v3435 = vpop.f32.mrf.mxu0
        %v3436 = vadd.f32 %v3131, %v3435
        %v3437 = vpop.f32.mrf.mxu0
        %v3438 = vpop.f32.mrf.mxu0
        %v3439 = vadd.f32 %v3134, %v3438
        %v3440 = vpop.f32.mrf.mxu0
        %3441 = vmatprep.mubr.bf16.mxu0 0
        %3442 = vmatmul.mubr.bf16.gmra.mxu0 %v3287
        %v3443 = vpop.f32.mrf.mxu0
        %v3444 = vadd.f32 %v3139, %v3443
        %v3445 = vpop.f32.mrf.mxu0
        %v3446 = vpop.f32.mrf.mxu0
        %v3447 = vadd.f32 %v3142, %v3446
        %v3448 = vpop.f32.mrf.mxu0
        %3449 = vmatprep.mubr.bf16.mxu0 0
        %3450 = vmatmul.mubr.bf16.gmra.mxu0 %v3288
        %v3451 = vpop.f32.mrf.mxu0
        %v3452 = vadd.f32 %v3147, %v3451
        %v3453 = vpop.f32.mrf.mxu0
        %v3454 = vpop.f32.mrf.mxu0
        %v3455 = vadd.f32 %v3150, %v3454
        %v3456 = vpop.f32.mrf.mxu0
        %3457 = vmatprep.mubr.bf16.mxu0 0
        %3458 = vmatmul.mubr.bf16.gmra.mxu0 %v3289
        %v3459 = vpop.f32.mrf.mxu0
        %v3460 = vadd.f32 %v3155, %v3459
        %v3461 = vpop.f32.mrf.mxu0
        %v3462 = vpop.f32.mrf.mxu0
        %v3463 = vadd.f32 %v3158, %v3462
        %v3464 = vpop.f32.mrf.mxu0
        %3465 = vmatprep.mubr.bf16.mxu0 0
        %3466 = vmatmul.mubr.bf16.gmra.mxu0 %v3290
        %v3467 = vpop.f32.mrf.mxu0
        %v3468 = vadd.f32 %v3163, %v3467
        %v3469 = vpop.f32.mrf.mxu0
        %v3470 = vpop.f32.mrf.mxu0
        %v3471 = vadd.f32 %v3166, %v3470
        %v3472 = vpop.f32.mrf.mxu0
        %3473 = vmatprep.mubr.bf16.mxu0 0
        %3474 = vmatmul.mubr.bf16.gmra.mxu0 %v3291
        %v3475 = vpop.f32.mrf.mxu0
        %v3476 = vadd.f32 %v3171, %v3475
        %v3477 = vpop.f32.mrf.mxu0
        %v3478 = vpop.f32.mrf.mxu0
        %v3479 = vadd.f32 %v3174, %v3478
        %v3480 = vpop.f32.mrf.mxu0
        %3481 = vmatprep.mubr.bf16.mxu0 0
        %3482 = vmatmul.mubr.bf16.gmra.mxu0 %v3292
        %v3483 = vpop.f32.mrf.mxu0
        %v3484 = vadd.f32 %v3179, %v3483
        %v3485 = vpop.f32.mrf.mxu0
        %v3486 = vpop.f32.mrf.mxu0
        %v3487 = vadd.f32 %v3182, %v3486
        %v3488 = vpop.f32.mrf.mxu0
        %3489 = vmatprep.mubr.bf16.mxu0 0
        %3490 = vmatmul.mubr.bf16.gmra.mxu0 %v3293
        %v3491 = vpop.f32.mrf.mxu0
        %v3492 = vadd.f32 %v3187, %v3491
        %v3493 = vpop.f32.mrf.mxu0
        %v3494 = vpop.f32.mrf.mxu0
        %v3495 = vadd.f32 %v3190, %v3494
        %v3496 = vpop.f32.mrf.mxu0
        %3497 = vmatprep.mubr.bf16.mxu0 0
        %3498 = vmatmul.mubr.bf16.gmra.mxu0 %v3294
        %v3499 = vpop.f32.mrf.mxu0
        %v3500 = vadd.f32 %v3195, %v3499
        %v3501 = vpop.f32.mrf.mxu0
        %v3502 = vpop.f32.mrf.mxu0
        %v3503 = vadd.f32 %v3198, %v3502
        %v3504 = vpop.f32.mrf.mxu0
        %3505 = vmatprep.mubr.bf16.mxu0 0
        %3506 = vmatmul.mubr.bf16.gmra.mxu0 %v3295
        %v3507 = vpop.f32.mrf.mxu0
        %v3508 = vadd.f32 %v3203, %v3507
        %v3509 = vpop.f32.mrf.mxu0
        %v3510 = vpop.f32.mrf.mxu0
        %v3511 = vadd.f32 %v3206, %v3510
        %v3512 = vpop.f32.mrf.mxu0
        %3513 = vmatprep.mubr.bf16.mxu0 0
        %3514 = vmatmul.mubr.bf16.gmra.mxu0 %v3296
        %v3515 = vpop.f32.mrf.mxu0
        %v3516 = vadd.f32 %v3211, %v3515
        %v3517 = vpop.f32.mrf.mxu0
        %v3518 = vpop.f32.mrf.mxu0
        %v3519 = vadd.f32 %v3214, %v3518
        %v3520 = vpop.f32.mrf.mxu0
        %3521 = vdwg.mxu0
        %s3522 = scalar_lea.vmem [#allocation2], 768
        %3523 = vst [vmem:[%s3522] sm:$0xff] %v3396
        %3524 = vst [vmem:[%s3522 + $0x8] sm:$0xff] %v3399
        %3525 = vst [vmem:[%s3522 + $0x10] sm:$0xff] %v3404
        %3526 = vst [vmem:[%s3522 + $0x18] sm:$0xff] %v3407
        %3527 = vst [vmem:[%s3522 + $0x20] sm:$0xff] %v3412
        %3528 = vst [vmem:[%s3522 + $0x28] sm:$0xff] %v3415
        %3529 = vst [vmem:[%s3522 + $0x30] sm:$0xff] %v3420
        %3530 = vst [vmem:[%s3522 + $0x38] sm:$0xff] %v3423
        %3531 = vst [vmem:[%s3522 + $0x40] sm:$0xff] %v3428
        %3532 = vst [vmem:[%s3522 + $0x48] sm:$0xff] %v3431
        %3533 = vst [vmem:[%s3522 + $0x50] sm:$0xff] %v3436
        %3534 = vst [vmem:[%s3522 + $0x58] sm:$0xff] %v3439
        %3535 = vst [vmem:[%s3522 + $0x60] sm:$0xff] %v3444
        %3536 = vst [vmem:[%s3522 + $0x68] sm:$0xff] %v3447
        %3537 = vst [vmem:[%s3522 + $0x70] sm:$0xff] %v3452
        %3538 = vst [vmem:[%s3522 + $0x78] sm:$0xff] %v3455
        %3539 = vst [vmem:[%s3522 + $0x80] sm:$0xff] %v3460
        %3540 = vst [vmem:[%s3522 + $0x88] sm:$0xff] %v3463
        %3541 = vst [vmem:[%s3522 + $0x90] sm:$0xff] %v3468
        %3542 = vst [vmem:[%s3522 + $0x98] sm:$0xff] %v3471
        %3543 = vst [vmem:[%s3522 + $0xa0] sm:$0xff] %v3476
        %3544 = vst [vmem:[%s3522 + $0xa8] sm:$0xff] %v3479
        %3545 = vst [vmem:[%s3522 + $0xb0] sm:$0xff] %v3484
        %3546 = vst [vmem:[%s3522 + $0xb8] sm:$0xff] %v3487
        %3547 = vst [vmem:[%s3522 + $0xc0] sm:$0xff] %v3492
        %3548 = vst [vmem:[%s3522 + $0xc8] sm:$0xff] %v3495
        %3549 = vst [vmem:[%s3522 + $0xd0] sm:$0xff] %v3500
        %3550 = vst [vmem:[%s3522 + $0xd8] sm:$0xff] %v3503
        %3551 = vst [vmem:[%s3522 + $0xe0] sm:$0xff] %v3508
        %3552 = vst [vmem:[%s3522 + $0xe8] sm:$0xff] %v3511
        %3553 = vst [vmem:[%s3522 + $0xf0] sm:$0xff] %v3516
        %3554 = vst [vmem:[%s3522 + $0xf8] sm:$0xff] %v3519
        %v3555 = vadd.f32 %v3396, %v3399
        %v3556 = vadd.f32 %v3555, %v3404
        %v3557 = vadd.f32 %v3556, %v3407
        %v3558 = vadd.f32 %v3557, %v3412
        %v3559 = vadd.f32 %v3558, %v3415
        %v3560 = vadd.f32 %v3559, %v3420
        %v3561 = vadd.f32 %v3560, %v3423
        %v3562 = vadd.f32 %v3561, %v3428
        %v3563 = vadd.f32 %v3562, %v3431
        %v3564 = vadd.f32 %v3563, %v3436
        %v3565 = vadd.f32 %v3564, %v3439
        %v3566 = vadd.f32 %v3565, %v3444
        %v3567 = vadd.f32 %v3566, %v3447
        %v3568 = vadd.f32 %v3567, %v3452
        %v3569 = vadd.f32 %v3568, %v3455
        %v3570 = vadd.f32 %v3569, %v3460
        %v3571 = vadd.f32 %v3570, %v3463
        %v3572 = vadd.f32 %v3571, %v3468
        %v3573 = vadd.f32 %v3572, %v3471
        %v3574 = vadd.f32 %v3573, %v3476
        %v3575 = vadd.f32 %v3574, %v3479
        %v3576 = vadd.f32 %v3575, %v3484
        %v3577 = vadd.f32 %v3576, %v3487
        %v3578 = vadd.f32 %v3577, %v3492
        %v3579 = vadd.f32 %v3578, %v3495
        %v3580 = vadd.f32 %v3579, %v3500
        %v3581 = vadd.f32 %v3580, %v3503
        %v3582 = vadd.f32 %v3581, %v3508
        %v3583 = vadd.f32 %v3582, %v3511
        %v3584 = vadd.f32 %v3583, %v3516
        %v3585 = vadd.f32 %v3584, %v3519
        %v3586 = vrot.slane %v3585, 4
        %v3587 = vadd.f32 %v3585, %v3586
        %v3588 = vrot.slane %v3587, 2
        %v3589 = vadd.f32 %v3587, %v3588
        %v3590 = vrot.slane %v3589, 1
        %v3591 = vadd.f32 %v3589, %v3590
        %v3592 = vadd.f32 %v2742, %v3591
        %v3593 = vmul.f32 %v3396, %v3396
        %v3594 = vmul.f32 %v3399, %v3399
        %v3595 = vmul.f32 %v3404, %v3404
        %v3596 = vmul.f32 %v3407, %v3407
        %v3597 = vmul.f32 %v3412, %v3412
        %v3598 = vmul.f32 %v3415, %v3415
        %v3599 = vmul.f32 %v3420, %v3420
        %v3600 = vmul.f32 %v3423, %v3423
        %v3601 = vmul.f32 %v3428, %v3428
        %v3602 = vmul.f32 %v3431, %v3431
        %v3603 = vmul.f32 %v3436, %v3436
        %v3604 = vmul.f32 %v3439, %v3439
        %v3605 = vmul.f32 %v3444, %v3444
        %v3606 = vmul.f32 %v3447, %v3447
        %v3607 = vmul.f32 %v3452, %v3452
        %v3608 = vmul.f32 %v3455, %v3455
        %v3609 = vmul.f32 %v3460, %v3460
        %v3610 = vmul.f32 %v3463, %v3463
        %v3611 = vmul.f32 %v3468, %v3468
        %v3612 = vmul.f32 %v3471, %v3471
        %v3613 = vmul.f32 %v3476, %v3476
        %v3614 = vmul.f32 %v3479, %v3479
        %v3615 = vmul.f32 %v3484, %v3484
        %v3616 = vmul.f32 %v3487, %v3487
        %v3617 = vmul.f32 %v3492, %v3492
        %v3618 = vmul.f32 %v3495, %v3495
        %v3619 = vmul.f32 %v3500, %v3500
        %v3620 = vmul.f32 %v3503, %v3503
        %v3621 = vmul.f32 %v3508, %v3508
        %v3622 = vmul.f32 %v3511, %v3511
        %v3623 = vmul.f32 %v3516, %v3516
        %v3624 = vmul.f32 %v3519, %v3519
        %v3625 = vadd.f32 %v3593, %v3594
        %v3626 = vadd.f32 %v3625, %v3595
        %v3627 = vadd.f32 %v3626, %v3596
        %v3628 = vadd.f32 %v3627, %v3597
        %v3629 = vadd.f32 %v3628, %v3598
        %v3630 = vadd.f32 %v3629, %v3599
        %v3631 = vadd.f32 %v3630, %v3600
        %v3632 = vadd.f32 %v3631, %v3601
        %v3633 = vadd.f32 %v3632, %v3602
        %v3634 = vadd.f32 %v3633, %v3603
        %v3635 = vadd.f32 %v3634, %v3604
        %v3636 = vadd.f32 %v3635, %v3605
        %v3637 = vadd.f32 %v3636, %v3606
        %v3638 = vadd.f32 %v3637, %v3607
        %v3639 = vadd.f32 %v3638, %v3608
        %v3640 = vadd.f32 %v3639, %v3609
        %v3641 = vadd.f32 %v3640, %v3610
        %v3642 = vadd.f32 %v3641, %v3611
        %v3643 = vadd.f32 %v3642, %v3612
        %v3644 = vadd.f32 %v3643, %v3613
        %v3645 = vadd.f32 %v3644, %v3614
        %v3646 = vadd.f32 %v3645, %v3615
        %v3647 = vadd.f32 %v3646, %v3616
        %v3648 = vadd.f32 %v3647, %v3617
        %v3649 = vadd.f32 %v3648, %v3618
        %v3650 = vadd.f32 %v3649, %v3619
        %v3651 = vadd.f32 %v3650, %v3620
        %v3652 = vadd.f32 %v3651, %v3621
        %v3653 = vadd.f32 %v3652, %v3622
        %v3654 = vadd.f32 %v3653, %v3623
        %v3655 = vadd.f32 %v3654, %v3624
        %v3656 = vrot.slane %v3655, 4
        %v3657 = vadd.f32 %v3655, %v3656
        %v3658 = vrot.slane %v3657, 2
        %v3659 = vadd.f32 %v3657, %v3658
        %v3660 = vrot.slane %v3659, 1
        %v3661 = vadd.f32 %v3659, %v3660
        %v3662 = vadd.f32 %v2812, %v3661
        %v3663 = vmul.f32 %v3592, 0.0009765625
        %v3664 = vmul.f32 %v3662, 0.0009765625
        %v3665 = vmul.f32 %v3663, %v3663
        %v3666 = vsub.f32 %v3664, %v3665
        %v3667 = vadd.f32 %v3666, 1e-05
        %v3668 = vrsqrt.pop %v3667
        %v3669 = vld [vmem:[#allocation2] sm:$0xff]
        %v3670 = vld [vmem:[#allocation2 + $0x8] sm:$0xff]
        %v3671 = vld [vmem:[#allocation2 + $0x10] sm:$0xff]
        %v3672 = vld [vmem:[#allocation2 + $0x18] sm:$0xff]
        %v3673 = vld [vmem:[#allocation2 + $0x20] sm:$0xff]
        %v3674 = vld [vmem:[#allocation2 + $0x28] sm:$0xff]
        %v3675 = vld [vmem:[#allocation2 + $0x30] sm:$0xff]
        %v3676 = vld [vmem:[#allocation2 + $0x38] sm:$0xff]
        %v3677 = vld [vmem:[#allocation2 + $0x40] sm:$0xff]
        %v3678 = vld [vmem:[#allocation2 + $0x48] sm:$0xff]
        %v3679 = vld [vmem:[#allocation2 + $0x50] sm:$0xff]
        %v3680 = vld [vmem:[#allocation2 + $0x58] sm:$0xff]
        %v3681 = vld [vmem:[#allocation2 + $0x60] sm:$0xff]
        %v3682 = vld [vmem:[#allocation2 + $0x68] sm:$0xff]
        %v3683 = vld [vmem:[#allocation2 + $0x70] sm:$0xff]
        %v3684 = vld [vmem:[#allocation2 + $0x78] sm:$0xff]
        %v3685 = vld [vmem:[#allocation2 + $0x80] sm:$0xff]
        %v3686 = vld [vmem:[#allocation2 + $0x88] sm:$0xff]
        %v3687 = vld [vmem:[#allocation2 + $0x90] sm:$0xff]
        %v3688 = vld [vmem:[#allocation2 + $0x98] sm:$0xff]
        %v3689 = vld [vmem:[#allocation2 + $0xa0] sm:$0xff]
        %v3690 = vld [vmem:[#allocation2 + $0xa8] sm:$0xff]
        %v3691 = vld [vmem:[#allocation2 + $0xb0] sm:$0xff]
        %v3692 = vld [vmem:[#allocation2 + $0xb8] sm:$0xff]
        %v3693 = vld [vmem:[#allocation2 + $0xc0] sm:$0xff]
        %v3694 = vld [vmem:[#allocation2 + $0xc8] sm:$0xff]
        %v3695 = vld [vmem:[#allocation2 + $0xd0] sm:$0xff]
        %v3696 = vld [vmem:[#allocation2 + $0xd8] sm:$0xff]
        %v3697 = vld [vmem:[#allocation2 + $0xe0] sm:$0xff]
        %v3698 = vld [vmem:[#allocation2 + $0xe8] sm:$0xff]
        %v3699 = vld [vmem:[#allocation2 + $0xf0] sm:$0xff]
        %v3700 = vld [vmem:[#allocation2 + $0xf8] sm:$0xff]
        %v3701 = vsub.f32 %v3669, %v3663
        %v3702 = vsub.f32 %v3670, %v3663
        %v3703 = vsub.f32 %v3671, %v3663
        %v3704 = vsub.f32 %v3672, %v3663
        %v3705 = vsub.f32 %v3673, %v3663
        %v3706 = vsub.f32 %v3674, %v3663
        %v3707 = vsub.f32 %v3675, %v3663
        %v3708 = vsub.f32 %v3676, %v3663
        %v3709 = vsub.f32 %v3677, %v3663
        %v3710 = vsub.f32 %v3678, %v3663
        %v3711 = vsub.f32 %v3679, %v3663
        %v3712 = vsub.f32 %v3680, %v3663
        %v3713 = vsub.f32 %v3681, %v3663
        %v3714 = vsub.f32 %v3682, %v3663
        %v3715 = vsub.f32 %v3683, %v3663
        %v3716 = vsub.f32 %v3684, %v3663
        %v3717 = vsub.f32 %v3685, %v3663
        %v3718 = vsub.f32 %v3686, %v3663
        %v3719 = vsub.f32 %v3687, %v3663
        %v3720 = vsub.f32 %v3688, %v3663
        %v3721 = vsub.f32 %v3689, %v3663
        %v3722 = vsub.f32 %v3690, %v3663
        %v3723 = vsub.f32 %v3691, %v3663
        %v3724 = vsub.f32 %v3692, %v3663
        %v3725 = vsub.f32 %v3693, %v3663
        %v3726 = vsub.f32 %v3694, %v3663
        %v3727 = vsub.f32 %v3695, %v3663
        %v3728 = vsub.f32 %v3696, %v3663
        %v3729 = vsub.f32 %v3697, %v3663
        %v3730 = vsub.f32 %v3698, %v3663
        %v3731 = vsub.f32 %v3699, %v3663
        %v3732 = vsub.f32 %v3700, %v3663
        %v3733 = vmul.f32 %v3701, %v3668
        %v3734 = vmul.f32 %v3702, %v3668
        %v3735 = vmul.f32 %v3703, %v3668
        %v3736 = vmul.f32 %v3704, %v3668
        %v3737 = vmul.f32 %v3705, %v3668
        %v3738 = vmul.f32 %v3706, %v3668
        %v3739 = vmul.f32 %v3707, %v3668
        %v3740 = vmul.f32 %v3708, %v3668
        %v3741 = vmul.f32 %v3709, %v3668
        %v3742 = vmul.f32 %v3710, %v3668
        %v3743 = vmul.f32 %v3711, %v3668
        %v3744 = vmul.f32 %v3712, %v3668
        %v3745 = vmul.f32 %v3713, %v3668
        %v3746 = vmul.f32 %v3714, %v3668
        %v3747 = vmul.f32 %v3715, %v3668
        %v3748 = vmul.f32 %v3716, %v3668
        %v3749 = vmul.f32 %v3717, %v3668
        %v3750 = vmul.f32 %v3718, %v3668
        %v3751 = vmul.f32 %v3719, %v3668
        %v3752 = vmul.f32 %v3720, %v3668
        %v3753 = vmul.f32 %v3721, %v3668
        %v3754 = vmul.f32 %v3722, %v3668
        %v3755 = vmul.f32 %v3723, %v3668
        %v3756 = vmul.f32 %v3724, %v3668
        %v3757 = vmul.f32 %v3725, %v3668
        %v3758 = vmul.f32 %v3726, %v3668
        %v3759 = vmul.f32 %v3727, %v3668
        %v3760 = vmul.f32 %v3728, %v3668
        %v3761 = vmul.f32 %v3729, %v3668
        %v3762 = vmul.f32 %v3730, %v3668
        %v3763 = vmul.f32 %v3731, %v3668
        %v3764 = vmul.f32 %v3732, %v3668
        %v3765 = vmax.f32 %v3733, 0.0
        %v3766 = vmax.f32 %v3734, 0.0
        %v3767 = vmax.f32 %v3735, 0.0
        %v3768 = vmax.f32 %v3736, 0.0
        %v3769 = vmax.f32 %v3737, 0.0
        %v3770 = vmax.f32 %v3738, 0.0
        %v3771 = vmax.f32 %v3739, 0.0
        %v3772 = vmax.f32 %v3740, 0.0
        %v3773 = vmax.f32 %v3741, 0.0
        %v3774 = vmax.f32 %v3742, 0.0
        %v3775 = vmax.f32 %v3743, 0.0
        %v3776 = vmax.f32 %v3744, 0.0
        %v3777 = vmax.f32 %v3745, 0.0
        %v3778 = vmax.f32 %v3746, 0.0
        %v3779 = vmax.f32 %v3747, 0.0
        %v3780 = vmax.f32 %v3748, 0.0
        %v3781 = vmax.f32 %v3749, 0.0
        %v3782 = vmax.f32 %v3750, 0.0
        %v3783 = vmax.f32 %v3751, 0.0
        %v3784 = vmax.f32 %v3752, 0.0
        %v3785 = vmax.f32 %v3753, 0.0
        %v3786 = vmax.f32 %v3754, 0.0
        %v3787 = vmax.f32 %v3755, 0.0
        %v3788 = vmax.f32 %v3756, 0.0
        %v3789 = vmax.f32 %v3757, 0.0
        %v3790 = vmax.f32 %v3758, 0.0
        %v3791 = vmax.f32 %v3759, 0.0
        %v3792 = vmax.f32 %v3760, 0.0
        %v3793 = vmax.f32 %v3761, 0.0
        %v3794 = vmax.f32 %v3762, 0.0
        %v3795 = vmax.f32 %v3763, 0.0
        %v3796 = vmax.f32 %v3764, 0.0
        %v3797 = vpack.c.bf16 %v3766, %v3765
        %v3798 = vpack.c.bf16 %v3768, %v3767
        %v3799 = vpack.c.bf16 %v3770, %v3769
        %v3800 = vpack.c.bf16 %v3772, %v3771
        %v3801 = vpack.c.bf16 %v3774, %v3773
        %v3802 = vpack.c.bf16 %v3776, %v3775
        %v3803 = vpack.c.bf16 %v3778, %v3777
        %v3804 = vpack.c.bf16 %v3780, %v3779
        %v3805 = vpack.c.bf16 %v3782, %v3781
        %v3806 = vpack.c.bf16 %v3784, %v3783
        %v3807 = vpack.c.bf16 %v3786, %v3785
        %v3808 = vpack.c.bf16 %v3788, %v3787
        %v3809 = vpack.c.bf16 %v3790, %v3789
        %v3810 = vpack.c.bf16 %v3792, %v3791
        %v3811 = vpack.c.bf16 %v3794, %v3793
        %v3812 = vpack.c.bf16 %v3796, %v3795
        %v3829 = vunpack.c.l.b16 %v3797
        %v3830 = vunpack.c.h.b16 %v3797
        %v3831 = vunpack.c.l.b16 %v3798
        %v3832 = vunpack.c.h.b16 %v3798
        %v3833 = vunpack.c.l.b16 %v3799
        %v3834 = vunpack.c.h.b16 %v3799
        %v3835 = vunpack.c.l.b16 %v3800
        %v3836 = vunpack.c.h.b16 %v3800
        %v3837 = vunpack.c.l.b16 %v3801
        %v3838 = vunpack.c.h.b16 %v3801
        %v3839 = vunpack.c.l.b16 %v3802
        %v3840 = vunpack.c.h.b16 %v3802
        %v3841 = vunpack.c.l.b16 %v3803
        %v3842 = vunpack.c.h.b16 %v3803
        %v3843 = vunpack.c.l.b16 %v3804
        %v3844 = vunpack.c.h.b16 %v3804
        %v3845 = vunpack.c.l.b16 %v3805
        %v3846 = vunpack.c.h.b16 %v3805
        %v3847 = vunpack.c.l.b16 %v3806
        %v3848 = vunpack.c.h.b16 %v3806
        %v3849 = vunpack.c.l.b16 %v3807
        %v3850 = vunpack.c.h.b16 %v3807
        %v3851 = vunpack.c.l.b16 %v3808
        %v3852 = vunpack.c.h.b16 %v3808
        %v3853 = vunpack.c.l.b16 %v3809
        %v3854 = vunpack.c.h.b16 %v3809
        %v3855 = vunpack.c.l.b16 %v3810
        %v3856 = vunpack.c.h.b16 %v3810
        %v3857 = vunpack.c.l.b16 %v3811
        %v3858 = vunpack.c.h.b16 %v3811
        %v3859 = vunpack.c.l.b16 %v3812
        %v3860 = vunpack.c.h.b16 %v3812
        %v3861 = vpack.c.b16 %v3829, %v3829
        %v3862 = vpack.c.b16 %v3830, %v3830
        %v3863 = vpack.c.b16 %v3831, %v3831
        %v3864 = vpack.c.b16 %v3832, %v3832
        %v3865 = vpack.c.b16 %v3833, %v3833
        %v3866 = vpack.c.b16 %v3834, %v3834
        %v3867 = vpack.c.b16 %v3835, %v3835
        %v3868 = vpack.c.b16 %v3836, %v3836
        %v3869 = vpack.c.b16 %v3837, %v3837
        %v3870 = vpack.c.b16 %v3838, %v3838
        %v3871 = vpack.c.b16 %v3839, %v3839
        %v3872 = vpack.c.b16 %v3840, %v3840
        %v3873 = vpack.c.b16 %v3841, %v3841
        %v3874 = vpack.c.b16 %v3842, %v3842
        %v3875 = vpack.c.b16 %v3843, %v3843
        %v3876 = vpack.c.b16 %v3844, %v3844
        %v3877 = vpack.c.b16 %v3845, %v3845
        %v3878 = vpack.c.b16 %v3846, %v3846
        %v3879 = vpack.c.b16 %v3847, %v3847
        %v3880 = vpack.c.b16 %v3848, %v3848
        %v3881 = vpack.c.b16 %v3849, %v3849
        %v3882 = vpack.c.b16 %v3850, %v3850
        %v3883 = vpack.c.b16 %v3851, %v3851
        %v3884 = vpack.c.b16 %v3852, %v3852
        %v3885 = vpack.c.b16 %v3853, %v3853
        %v3886 = vpack.c.b16 %v3854, %v3854
        %v3887 = vpack.c.b16 %v3855, %v3855
        %v3888 = vpack.c.b16 %v3856, %v3856
        %v3889 = vpack.c.b16 %v3857, %v3857
        %v3890 = vpack.c.b16 %v3858, %v3858
        %v3891 = vpack.c.b16 %v3859, %v3859
        %v3892 = vpack.c.b16 %v3860, %v3860
        %3925 = vst [vmem:[%s263] sm:$0xf] %v3861
        %3926 = vst [vmem:[%s263 + $0x4] sm:$0xf] %v3862
        %3927 = vst [vmem:[%s263 + $0x8] sm:$0xf] %v3863
        %3928 = vst [vmem:[%s263 + $0xc] sm:$0xf] %v3864
        %3929 = vst [vmem:[%s263 + $0x10] sm:$0xf] %v3865
        %3930 = vst [vmem:[%s263 + $0x14] sm:$0xf] %v3866
        %3931 = vst [vmem:[%s263 + $0x18] sm:$0xf] %v3867
        %3932 = vst [vmem:[%s263 + $0x1c] sm:$0xf] %v3868
        %3933 = vst [vmem:[%s263 + $0x20] sm:$0xf] %v3869
        %3934 = vst [vmem:[%s263 + $0x24] sm:$0xf] %v3870
        %3935 = vst [vmem:[%s263 + $0x28] sm:$0xf] %v3871
        %3936 = vst [vmem:[%s263 + $0x2c] sm:$0xf] %v3872
        %3937 = vst [vmem:[%s263 + $0x30] sm:$0xf] %v3873
        %3938 = vst [vmem:[%s263 + $0x34] sm:$0xf] %v3874
        %3939 = vst [vmem:[%s263 + $0x38] sm:$0xf] %v3875
        %3940 = vst [vmem:[%s263 + $0x3c] sm:$0xf] %v3876
        %3941 = vst [vmem:[%s263 + $0x40] sm:$0xf] %v3877
        %3942 = vst [vmem:[%s263 + $0x44] sm:$0xf] %v3878
        %3943 = vst [vmem:[%s263 + $0x48] sm:$0xf] %v3879
        %3944 = vst [vmem:[%s263 + $0x4c] sm:$0xf] %v3880
        %3945 = vst [vmem:[%s263 + $0x50] sm:$0xf] %v3881
        %3946 = vst [vmem:[%s263 + $0x54] sm:$0xf] %v3882
        %3947 = vst [vmem:[%s263 + $0x58] sm:$0xf] %v3883
        %3948 = vst [vmem:[%s263 + $0x5c] sm:$0xf] %v3884
        %3949 = vst [vmem:[%s263 + $0x60] sm:$0xf] %v3885
        %3950 = vst [vmem:[%s263 + $0x64] sm:$0xf] %v3886
        %3951 = vst [vmem:[%s263 + $0x68] sm:$0xf] %v3887
        %3952 = vst [vmem:[%s263 + $0x6c] sm:$0xf] %v3888
        %3953 = vst [vmem:[%s263 + $0x70] sm:$0xf] %v3889
        %3954 = vst [vmem:[%s263 + $0x74] sm:$0xf] %v3890
        %3955 = vst [vmem:[%s263 + $0x78] sm:$0xf] %v3891
        %3956 = vst [vmem:[%s263 + $0x7c] sm:$0xf] %v3892
        %v3957 = vld [vmem:[%s1822] sm:$0xff]
        %v3958 = vld [vmem:[%s1822 + $0x8] sm:$0xff]
        %v3959 = vld [vmem:[%s1822 + $0x10] sm:$0xff]
        %v3960 = vld [vmem:[%s1822 + $0x18] sm:$0xff]
        %v3961 = vld [vmem:[%s1822 + $0x20] sm:$0xff]
        %v3962 = vld [vmem:[%s1822 + $0x28] sm:$0xff]
        %v3963 = vld [vmem:[%s1822 + $0x30] sm:$0xff]
        %v3964 = vld [vmem:[%s1822 + $0x38] sm:$0xff]
        %v3965 = vld [vmem:[%s1822 + $0x40] sm:$0xff]
        %v3966 = vld [vmem:[%s1822 + $0x48] sm:$0xff]
        %v3967 = vld [vmem:[%s1822 + $0x50] sm:$0xff]
        %v3968 = vld [vmem:[%s1822 + $0x58] sm:$0xff]
        %v3969 = vld [vmem:[%s1822 + $0x60] sm:$0xff]
        %v3970 = vld [vmem:[%s1822 + $0x68] sm:$0xff]
        %v3971 = vld [vmem:[%s1822 + $0x70] sm:$0xff]
        %v3972 = vld [vmem:[%s1822 + $0x78] sm:$0xff]
        %v3973 = vld [vmem:[%s1822 + $0x80] sm:$0xff]
        %v3974 = vld [vmem:[%s1822 + $0x88] sm:$0xff]
        %v3975 = vld [vmem:[%s1822 + $0x90] sm:$0xff]
        %v3976 = vld [vmem:[%s1822 + $0x98] sm:$0xff]
        %v3977 = vld [vmem:[%s1822 + $0xa0] sm:$0xff]
        %v3978 = vld [vmem:[%s1822 + $0xa8] sm:$0xff]
        %v3979 = vld [vmem:[%s1822 + $0xb0] sm:$0xff]
        %v3980 = vld [vmem:[%s1822 + $0xb8] sm:$0xff]
        %v3981 = vld [vmem:[%s1822 + $0xc0] sm:$0xff]
        %v3982 = vld [vmem:[%s1822 + $0xc8] sm:$0xff]
        %v3983 = vld [vmem:[%s1822 + $0xd0] sm:$0xff]
        %v3984 = vld [vmem:[%s1822 + $0xd8] sm:$0xff]
        %v3985 = vld [vmem:[%s1822 + $0xe0] sm:$0xff]
        %v3986 = vld [vmem:[%s1822 + $0xe8] sm:$0xff]
        %v3987 = vld [vmem:[%s1822 + $0xf0] sm:$0xff]
        %v3988 = vld [vmem:[%s1822 + $0xf8] sm:$0xff]
        %v3989 = vsub.f32 %v3957, %v3663
        %v3990 = vsub.f32 %v3958, %v3663
        %v3991 = vsub.f32 %v3959, %v3663
        %v3992 = vsub.f32 %v3960, %v3663
        %v3993 = vsub.f32 %v3961, %v3663
        %v3994 = vsub.f32 %v3962, %v3663
        %v3995 = vsub.f32 %v3963, %v3663
        %v3996 = vsub.f32 %v3964, %v3663
        %v3997 = vsub.f32 %v3965, %v3663
        %v3998 = vsub.f32 %v3966, %v3663
        %v3999 = vsub.f32 %v3967, %v3663
        %v4000 = vsub.f32 %v3968, %v3663
        %v4001 = vsub.f32 %v3969, %v3663
        %v4002 = vsub.f32 %v3970, %v3663
        %v4003 = vsub.f32 %v3971, %v3663
        %v4004 = vsub.f32 %v3972, %v3663
        %v4005 = vsub.f32 %v3973, %v3663
        %v4006 = vsub.f32 %v3974, %v3663
        %v4007 = vsub.f32 %v3975, %v3663
        %v4008 = vsub.f32 %v3976, %v3663
        %v4009 = vsub.f32 %v3977, %v3663
        %v4010 = vsub.f32 %v3978, %v3663
        %v4011 = vsub.f32 %v3979, %v3663
        %v4012 = vsub.f32 %v3980, %v3663
        %v4013 = vsub.f32 %v3981, %v3663
        %v4014 = vsub.f32 %v3982, %v3663
        %v4015 = vsub.f32 %v3983, %v3663
        %v4016 = vsub.f32 %v3984, %v3663
        %v4017 = vsub.f32 %v3985, %v3663
        %v4018 = vsub.f32 %v3986, %v3663
        %v4019 = vsub.f32 %v3987, %v3663
        %v4020 = vsub.f32 %v3988, %v3663
        %v4021 = vmul.f32 %v3989, %v3668
        %v4022 = vmul.f32 %v3990, %v3668
        %v4023 = vmul.f32 %v3991, %v3668
        %v4024 = vmul.f32 %v3992, %v3668
        %v4025 = vmul.f32 %v3993, %v3668
        %v4026 = vmul.f32 %v3994, %v3668
        %v4027 = vmul.f32 %v3995, %v3668
        %v4028 = vmul.f32 %v3996, %v3668
        %v4029 = vmul.f32 %v3997, %v3668
        %v4030 = vmul.f32 %v3998, %v3668
        %v4031 = vmul.f32 %v3999, %v3668
        %v4032 = vmul.f32 %v4000, %v3668
        %v4033 = vmul.f32 %v4001, %v3668
        %v4034 = vmul.f32 %v4002, %v3668
        %v4035 = vmul.f32 %v4003, %v3668
        %v4036 = vmul.f32 %v4004, %v3668
        %v4037 = vmul.f32 %v4005, %v3668
        %v4038 = vmul.f32 %v4006, %v3668
        %v4039 = vmul.f32 %v4007, %v3668
        %v4040 = vmul.f32 %v4008, %v3668
        %v4041 = vmul.f32 %v4009, %v3668
        %v4042 = vmul.f32 %v4010, %v3668
        %v4043 = vmul.f32 %v4011, %v3668
        %v4044 = vmul.f32 %v4012, %v3668
        %v4045 = vmul.f32 %v4013, %v3668
        %v4046 = vmul.f32 %v4014, %v3668
        %v4047 = vmul.f32 %v4015, %v3668
        %v4048 = vmul.f32 %v4016, %v3668
        %v4049 = vmul.f32 %v4017, %v3668
        %v4050 = vmul.f32 %v4018, %v3668
        %v4051 = vmul.f32 %v4019, %v3668
        %v4052 = vmul.f32 %v4020, %v3668
        %v4053 = vmax.f32 %v4021, 0.0
        %v4054 = vmax.f32 %v4022, 0.0
        %v4055 = vmax.f32 %v4023, 0.0
        %v4056 = vmax.f32 %v4024, 0.0
        %v4057 = vmax.f32 %v4025, 0.0
        %v4058 = vmax.f32 %v4026, 0.0
        %v4059 = vmax.f32 %v4027, 0.0
        %v4060 = vmax.f32 %v4028, 0.0
        %v4061 = vmax.f32 %v4029, 0.0
        %v4062 = vmax.f32 %v4030, 0.0
        %v4063 = vmax.f32 %v4031, 0.0
        %v4064 = vmax.f32 %v4032, 0.0
        %v4065 = vmax.f32 %v4033, 0.0
        %v4066 = vmax.f32 %v4034, 0.0
        %v4067 = vmax.f32 %v4035, 0.0
        %v4068 = vmax.f32 %v4036, 0.0
        %v4069 = vmax.f32 %v4037, 0.0
        %v4070 = vmax.f32 %v4038, 0.0
        %v4071 = vmax.f32 %v4039, 0.0
        %v4072 = vmax.f32 %v4040, 0.0
        %v4073 = vmax.f32 %v4041, 0.0
        %v4074 = vmax.f32 %v4042, 0.0
        %v4075 = vmax.f32 %v4043, 0.0
        %v4076 = vmax.f32 %v4044, 0.0
        %v4077 = vmax.f32 %v4045, 0.0
        %v4078 = vmax.f32 %v4046, 0.0
        %v4079 = vmax.f32 %v4047, 0.0
        %v4080 = vmax.f32 %v4048, 0.0
        %v4081 = vmax.f32 %v4049, 0.0
        %v4082 = vmax.f32 %v4050, 0.0
        %v4083 = vmax.f32 %v4051, 0.0
        %v4084 = vmax.f32 %v4052, 0.0
        %v4085 = vpack.c.bf16 %v4054, %v4053
        %v4086 = vpack.c.bf16 %v4056, %v4055
        %v4087 = vpack.c.bf16 %v4058, %v4057
        %v4088 = vpack.c.bf16 %v4060, %v4059
        %v4089 = vpack.c.bf16 %v4062, %v4061
        %v4090 = vpack.c.bf16 %v4064, %v4063
        %v4091 = vpack.c.bf16 %v4066, %v4065
        %v4092 = vpack.c.bf16 %v4068, %v4067
        %v4093 = vpack.c.bf16 %v4070, %v4069
        %v4094 = vpack.c.bf16 %v4072, %v4071
        %v4095 = vpack.c.bf16 %v4074, %v4073
        %v4096 = vpack.c.bf16 %v4076, %v4075
        %v4097 = vpack.c.bf16 %v4078, %v4077
        %v4098 = vpack.c.bf16 %v4080, %v4079
        %v4099 = vpack.c.bf16 %v4082, %v4081
        %v4100 = vpack.c.bf16 %v4084, %v4083
        %v4117 = vunpack.c.l.b16 %v4085
        %v4118 = vunpack.c.h.b16 %v4085
        %v4119 = vunpack.c.l.b16 %v4086
        %v4120 = vunpack.c.h.b16 %v4086
        %v4121 = vunpack.c.l.b16 %v4087
        %v4122 = vunpack.c.h.b16 %v4087
        %v4123 = vunpack.c.l.b16 %v4088
        %v4124 = vunpack.c.h.b16 %v4088
        %v4125 = vunpack.c.l.b16 %v4089
        %v4126 = vunpack.c.h.b16 %v4089
        %v4127 = vunpack.c.l.b16 %v4090
        %v4128 = vunpack.c.h.b16 %v4090
        %v4129 = vunpack.c.l.b16 %v4091
        %v4130 = vunpack.c.h.b16 %v4091
        %v4131 = vunpack.c.l.b16 %v4092
        %v4132 = vunpack.c.h.b16 %v4092
        %v4133 = vunpack.c.l.b16 %v4093
        %v4134 = vunpack.c.h.b16 %v4093
        %v4135 = vunpack.c.l.b16 %v4094
        %v4136 = vunpack.c.h.b16 %v4094
        %v4137 = vunpack.c.l.b16 %v4095
        %v4138 = vunpack.c.h.b16 %v4095
        %v4139 = vunpack.c.l.b16 %v4096
        %v4140 = vunpack.c.h.b16 %v4096
        %v4141 = vunpack.c.l.b16 %v4097
        %v4142 = vunpack.c.h.b16 %v4097
        %v4143 = vunpack.c.l.b16 %v4098
        %v4144 = vunpack.c.h.b16 %v4098
        %v4145 = vunpack.c.l.b16 %v4099
        %v4146 = vunpack.c.h.b16 %v4099
        %v4147 = vunpack.c.l.b16 %v4100
        %v4148 = vunpack.c.h.b16 %v4100
        %v4149 = vpack.c.b16 %v4117, %v4117
        %v4150 = vpack.c.b16 %v4118, %v4118
        %v4151 = vpack.c.b16 %v4119, %v4119
        %v4152 = vpack.c.b16 %v4120, %v4120
        %v4153 = vpack.c.b16 %v4121, %v4121
        %v4154 = vpack.c.b16 %v4122, %v4122
        %v4155 = vpack.c.b16 %v4123, %v4123
        %v4156 = vpack.c.b16 %v4124, %v4124
        %v4157 = vpack.c.b16 %v4125, %v4125
        %v4158 = vpack.c.b16 %v4126, %v4126
        %v4159 = vpack.c.b16 %v4127, %v4127
        %v4160 = vpack.c.b16 %v4128, %v4128
        %v4161 = vpack.c.b16 %v4129, %v4129
        %v4162 = vpack.c.b16 %v4130, %v4130
        %v4163 = vpack.c.b16 %v4131, %v4131
        %v4164 = vpack.c.b16 %v4132, %v4132
        %v4165 = vpack.c.b16 %v4133, %v4133
        %v4166 = vpack.c.b16 %v4134, %v4134
        %v4167 = vpack.c.b16 %v4135, %v4135
        %v4168 = vpack.c.b16 %v4136, %v4136
        %v4169 = vpack.c.b16 %v4137, %v4137
        %v4170 = vpack.c.b16 %v4138, %v4138
        %v4171 = vpack.c.b16 %v4139, %v4139
        %v4172 = vpack.c.b16 %v4140, %v4140
        %v4173 = vpack.c.b16 %v4141, %v4141
        %v4174 = vpack.c.b16 %v4142, %v4142
        %v4175 = vpack.c.b16 %v4143, %v4143
        %v4176 = vpack.c.b16 %v4144, %v4144
        %v4177 = vpack.c.b16 %v4145, %v4145
        %v4178 = vpack.c.b16 %v4146, %v4146
        %v4179 = vpack.c.b16 %v4147, %v4147
        %v4180 = vpack.c.b16 %v4148, %v4148
        %s4213 = scalar_lea.vmem %s263, 128 [#allocation9]
        %4214 = vst [vmem:[%s4213] sm:$0xf] %v4149
        %4215 = vst [vmem:[%s4213 + $0x4] sm:$0xf] %v4150
        %4216 = vst [vmem:[%s4213 + $0x8] sm:$0xf] %v4151
        %4217 = vst [vmem:[%s4213 + $0xc] sm:$0xf] %v4152
        %4218 = vst [vmem:[%s4213 + $0x10] sm:$0xf] %v4153
        %4219 = vst [vmem:[%s4213 + $0x14] sm:$0xf] %v4154
        %4220 = vst [vmem:[%s4213 + $0x18] sm:$0xf] %v4155
        %4221 = vst [vmem:[%s4213 + $0x1c] sm:$0xf] %v4156
        %4222 = vst [vmem:[%s4213 + $0x20] sm:$0xf] %v4157
        %4223 = vst [vmem:[%s4213 + $0x24] sm:$0xf] %v4158
        %4224 = vst [vmem:[%s4213 + $0x28] sm:$0xf] %v4159
        %4225 = vst [vmem:[%s4213 + $0x2c] sm:$0xf] %v4160
        %4226 = vst [vmem:[%s4213 + $0x30] sm:$0xf] %v4161
        %4227 = vst [vmem:[%s4213 + $0x34] sm:$0xf] %v4162
        %4228 = vst [vmem:[%s4213 + $0x38] sm:$0xf] %v4163
        %4229 = vst [vmem:[%s4213 + $0x3c] sm:$0xf] %v4164
        %4230 = vst [vmem:[%s4213 + $0x40] sm:$0xf] %v4165
        %4231 = vst [vmem:[%s4213 + $0x44] sm:$0xf] %v4166
        %4232 = vst [vmem:[%s4213 + $0x48] sm:$0xf] %v4167
        %4233 = vst [vmem:[%s4213 + $0x4c] sm:$0xf] %v4168
        %4234 = vst [vmem:[%s4213 + $0x50] sm:$0xf] %v4169
        %4235 = vst [vmem:[%s4213 + $0x54] sm:$0xf] %v4170
        %4236 = vst [vmem:[%s4213 + $0x58] sm:$0xf] %v4171
        %4237 = vst [vmem:[%s4213 + $0x5c] sm:$0xf] %v4172
        %4238 = vst [vmem:[%s4213 + $0x60] sm:$0xf] %v4173
        %4239 = vst [vmem:[%s4213 + $0x64] sm:$0xf] %v4174
        %4240 = vst [vmem:[%s4213 + $0x68] sm:$0xf] %v4175
        %4241 = vst [vmem:[%s4213 + $0x6c] sm:$0xf] %v4176
        %4242 = vst [vmem:[%s4213 + $0x70] sm:$0xf] %v4177
        %4243 = vst [vmem:[%s4213 + $0x74] sm:$0xf] %v4178
        %4244 = vst [vmem:[%s4213 + $0x78] sm:$0xf] %v4179
        %4245 = vst [vmem:[%s4213 + $0x7c] sm:$0xf] %v4180
        %v4246 = vld [vmem:[%s2672] sm:$0xff]
        %v4247 = vld [vmem:[%s2672 + $0x8] sm:$0xff]
        %v4248 = vld [vmem:[%s2672 + $0x10] sm:$0xff]
        %v4249 = vld [vmem:[%s2672 + $0x18] sm:$0xff]
        %v4250 = vld [vmem:[%s2672 + $0x20] sm:$0xff]
        %v4251 = vld [vmem:[%s2672 + $0x28] sm:$0xff]
        %v4252 = vld [vmem:[%s2672 + $0x30] sm:$0xff]
        %v4253 = vld [vmem:[%s2672 + $0x38] sm:$0xff]
        %v4254 = vld [vmem:[%s2672 + $0x40] sm:$0xff]
        %v4255 = vld [vmem:[%s2672 + $0x48] sm:$0xff]
        %v4256 = vld [vmem:[%s2672 + $0x50] sm:$0xff]
        %v4257 = vld [vmem:[%s2672 + $0x58] sm:$0xff]
        %v4258 = vld [vmem:[%s2672 + $0x60] sm:$0xff]
        %v4259 = vld [vmem:[%s2672 + $0x68] sm:$0xff]
        %v4260 = vld [vmem:[%s2672 + $0x70] sm:$0xff]
        %v4261 = vld [vmem:[%s2672 + $0x78] sm:$0xff]
        %v4262 = vld [vmem:[%s2672 + $0x80] sm:$0xff]
        %v4263 = vld [vmem:[%s2672 + $0x88] sm:$0xff]
        %v4264 = vld [vmem:[%s2672 + $0x90] sm:$0xff]
        %v4265 = vld [vmem:[%s2672 + $0x98] sm:$0xff]
        %v4266 = vld [vmem:[%s2672 + $0xa0] sm:$0xff]
        %v4267 = vld [vmem:[%s2672 + $0xa8] sm:$0xff]
        %v4268 = vld [vmem:[%s2672 + $0xb0] sm:$0xff]
        %v4269 = vld [vmem:[%s2672 + $0xb8] sm:$0xff]
        %v4270 = vld [vmem:[%s2672 + $0xc0] sm:$0xff]
        %v4271 = vld [vmem:[%s2672 + $0xc8] sm:$0xff]
        %v4272 = vld [vmem:[%s2672 + $0xd0] sm:$0xff]
        %v4273 = vld [vmem:[%s2672 + $0xd8] sm:$0xff]
        %v4274 = vld [vmem:[%s2672 + $0xe0] sm:$0xff]
        %v4275 = vld [vmem:[%s2672 + $0xe8] sm:$0xff]
        %v4276 = vld [vmem:[%s2672 + $0xf0] sm:$0xff]
        %v4277 = vld [vmem:[%s2672 + $0xf8] sm:$0xff]
        %v4278 = vsub.f32 %v4246, %v3663
        %v4279 = vsub.f32 %v4247, %v3663
        %v4280 = vsub.f32 %v4248, %v3663
        %v4281 = vsub.f32 %v4249, %v3663
        %v4282 = vsub.f32 %v4250, %v3663
        %v4283 = vsub.f32 %v4251, %v3663
        %v4284 = vsub.f32 %v4252, %v3663
        %v4285 = vsub.f32 %v4253, %v3663
        %v4286 = vsub.f32 %v4254, %v3663
        %v4287 = vsub.f32 %v4255, %v3663
        %v4288 = vsub.f32 %v4256, %v3663
        %v4289 = vsub.f32 %v4257, %v3663
        %v4290 = vsub.f32 %v4258, %v3663
        %v4291 = vsub.f32 %v4259, %v3663
        %v4292 = vsub.f32 %v4260, %v3663
        %v4293 = vsub.f32 %v4261, %v3663
        %v4294 = vsub.f32 %v4262, %v3663
        %v4295 = vsub.f32 %v4263, %v3663
        %v4296 = vsub.f32 %v4264, %v3663
        %v4297 = vsub.f32 %v4265, %v3663
        %v4298 = vsub.f32 %v4266, %v3663
        %v4299 = vsub.f32 %v4267, %v3663
        %v4300 = vsub.f32 %v4268, %v3663
        %v4301 = vsub.f32 %v4269, %v3663
        %v4302 = vsub.f32 %v4270, %v3663
        %v4303 = vsub.f32 %v4271, %v3663
        %v4304 = vsub.f32 %v4272, %v3663
        %v4305 = vsub.f32 %v4273, %v3663
        %v4306 = vsub.f32 %v4274, %v3663
        %v4307 = vsub.f32 %v4275, %v3663
        %v4308 = vsub.f32 %v4276, %v3663
        %v4309 = vsub.f32 %v4277, %v3663
        %v4310 = vmul.f32 %v4278, %v3668
        %v4311 = vmul.f32 %v4279, %v3668
        %v4312 = vmul.f32 %v4280, %v3668
        %v4313 = vmul.f32 %v4281, %v3668
        %v4314 = vmul.f32 %v4282, %v3668
        %v4315 = vmul.f32 %v4283, %v3668
        %v4316 = vmul.f32 %v4284, %v3668
        %v4317 = vmul.f32 %v4285, %v3668
        %v4318 = vmul.f32 %v4286, %v3668
        %v4319 = vmul.f32 %v4287, %v3668
        %v4320 = vmul.f32 %v4288, %v3668
        %v4321 = vmul.f32 %v4289, %v3668
        %v4322 = vmul.f32 %v4290, %v3668
        %v4323 = vmul.f32 %v4291, %v3668
        %v4324 = vmul.f32 %v4292, %v3668
        %v4325 = vmul.f32 %v4293, %v3668
        %v4326 = vmul.f32 %v4294, %v3668
        %v4327 = vmul.f32 %v4295, %v3668
        %v4328 = vmul.f32 %v4296, %v3668
        %v4329 = vmul.f32 %v4297, %v3668
        %v4330 = vmul.f32 %v4298, %v3668
        %v4331 = vmul.f32 %v4299, %v3668
        %v4332 = vmul.f32 %v4300, %v3668
        %v4333 = vmul.f32 %v4301, %v3668
        %v4334 = vmul.f32 %v4302, %v3668
        %v4335 = vmul.f32 %v4303, %v3668
        %v4336 = vmul.f32 %v4304, %v3668
        %v4337 = vmul.f32 %v4305, %v3668
        %v4338 = vmul.f32 %v4306, %v3668
        %v4339 = vmul.f32 %v4307, %v3668
        %v4340 = vmul.f32 %v4308, %v3668
        %v4341 = vmul.f32 %v4309, %v3668
        %v4342 = vmax.f32 %v4310, 0.0
        %v4343 = vmax.f32 %v4311, 0.0
        %v4344 = vmax.f32 %v4312, 0.0
        %v4345 = vmax.f32 %v4313, 0.0
        %v4346 = vmax.f32 %v4314, 0.0
        %v4347 = vmax.f32 %v4315, 0.0
        %v4348 = vmax.f32 %v4316, 0.0
        %v4349 = vmax.f32 %v4317, 0.0
        %v4350 = vmax.f32 %v4318, 0.0
        %v4351 = vmax.f32 %v4319, 0.0
        %v4352 = vmax.f32 %v4320, 0.0
        %v4353 = vmax.f32 %v4321, 0.0
        %v4354 = vmax.f32 %v4322, 0.0
        %v4355 = vmax.f32 %v4323, 0.0
        %v4356 = vmax.f32 %v4324, 0.0
        %v4357 = vmax.f32 %v4325, 0.0
        %v4358 = vmax.f32 %v4326, 0.0
        %v4359 = vmax.f32 %v4327, 0.0
        %v4360 = vmax.f32 %v4328, 0.0
        %v4361 = vmax.f32 %v4329, 0.0
        %v4362 = vmax.f32 %v4330, 0.0
        %v4363 = vmax.f32 %v4331, 0.0
        %v4364 = vmax.f32 %v4332, 0.0
        %v4365 = vmax.f32 %v4333, 0.0
        %v4366 = vmax.f32 %v4334, 0.0
        %v4367 = vmax.f32 %v4335, 0.0
        %v4368 = vmax.f32 %v4336, 0.0
        %v4369 = vmax.f32 %v4337, 0.0
        %v4370 = vmax.f32 %v4338, 0.0
        %v4371 = vmax.f32 %v4339, 0.0
        %v4372 = vmax.f32 %v4340, 0.0
        %v4373 = vmax.f32 %v4341, 0.0
        %v4374 = vpack.c.bf16 %v4343, %v4342
        %v4375 = vpack.c.bf16 %v4345, %v4344
        %v4376 = vpack.c.bf16 %v4347, %v4346
        %v4377 = vpack.c.bf16 %v4349, %v4348
        %v4378 = vpack.c.bf16 %v4351, %v4350
        %v4379 = vpack.c.bf16 %v4353, %v4352
        %v4380 = vpack.c.bf16 %v4355, %v4354
        %v4381 = vpack.c.bf16 %v4357, %v4356
        %v4382 = vpack.c.bf16 %v4359, %v4358
        %v4383 = vpack.c.bf16 %v4361, %v4360
        %v4384 = vpack.c.bf16 %v4363, %v4362
        %v4385 = vpack.c.bf16 %v4365, %v4364
        %v4386 = vpack.c.bf16 %v4367, %v4366
        %v4387 = vpack.c.bf16 %v4369, %v4368
        %v4388 = vpack.c.bf16 %v4371, %v4370
        %v4389 = vpack.c.bf16 %v4373, %v4372
        %v4406 = vunpack.c.l.b16 %v4374
        %v4407 = vunpack.c.h.b16 %v4374
        %v4408 = vunpack.c.l.b16 %v4375
        %v4409 = vunpack.c.h.b16 %v4375
        %v4410 = vunpack.c.l.b16 %v4376
        %v4411 = vunpack.c.h.b16 %v4376
        %v4412 = vunpack.c.l.b16 %v4377
        %v4413 = vunpack.c.h.b16 %v4377
        %v4414 = vunpack.c.l.b16 %v4378
        %v4415 = vunpack.c.h.b16 %v4378
        %v4416 = vunpack.c.l.b16 %v4379
        %v4417 = vunpack.c.h.b16 %v4379
        %v4418 = vunpack.c.l.b16 %v4380
        %v4419 = vunpack.c.h.b16 %v4380
        %v4420 = vunpack.c.l.b16 %v4381
        %v4421 = vunpack.c.h.b16 %v4381
        %v4422 = vunpack.c.l.b16 %v4382
        %v4423 = vunpack.c.h.b16 %v4382
        %v4424 = vunpack.c.l.b16 %v4383
        %v4425 = vunpack.c.h.b16 %v4383
        %v4426 = vunpack.c.l.b16 %v4384
        %v4427 = vunpack.c.h.b16 %v4384
        %v4428 = vunpack.c.l.b16 %v4385
        %v4429 = vunpack.c.h.b16 %v4385
        %v4430 = vunpack.c.l.b16 %v4386
        %v4431 = vunpack.c.h.b16 %v4386
        %v4432 = vunpack.c.l.b16 %v4387
        %v4433 = vunpack.c.h.b16 %v4387
        %v4434 = vunpack.c.l.b16 %v4388
        %v4435 = vunpack.c.h.b16 %v4388
        %v4436 = vunpack.c.l.b16 %v4389
        %v4437 = vunpack.c.h.b16 %v4389
        %v4438 = vpack.c.b16 %v4406, %v4406
        %v4439 = vpack.c.b16 %v4407, %v4407
        %v4440 = vpack.c.b16 %v4408, %v4408
        %v4441 = vpack.c.b16 %v4409, %v4409
        %v4442 = vpack.c.b16 %v4410, %v4410
        %v4443 = vpack.c.b16 %v4411, %v4411
        %v4444 = vpack.c.b16 %v4412, %v4412
        %v4445 = vpack.c.b16 %v4413, %v4413
        %v4446 = vpack.c.b16 %v4414, %v4414
        %v4447 = vpack.c.b16 %v4415, %v4415
        %v4448 = vpack.c.b16 %v4416, %v4416
        %v4449 = vpack.c.b16 %v4417, %v4417
        %v4450 = vpack.c.b16 %v4418, %v4418
        %v4451 = vpack.c.b16 %v4419, %v4419
        %v4452 = vpack.c.b16 %v4420, %v4420
        %v4453 = vpack.c.b16 %v4421, %v4421
        %v4454 = vpack.c.b16 %v4422, %v4422
        %v4455 = vpack.c.b16 %v4423, %v4423
        %v4456 = vpack.c.b16 %v4424, %v4424
        %v4457 = vpack.c.b16 %v4425, %v4425
        %v4458 = vpack.c.b16 %v4426, %v4426
        %v4459 = vpack.c.b16 %v4427, %v4427
        %v4460 = vpack.c.b16 %v4428, %v4428
        %v4461 = vpack.c.b16 %v4429, %v4429
        %v4462 = vpack.c.b16 %v4430, %v4430
        %v4463 = vpack.c.b16 %v4431, %v4431
        %v4464 = vpack.c.b16 %v4432, %v4432
        %v4465 = vpack.c.b16 %v4433, %v4433
        %v4466 = vpack.c.b16 %v4434, %v4434
        %v4467 = vpack.c.b16 %v4435, %v4435
        %v4468 = vpack.c.b16 %v4436, %v4436
        %v4469 = vpack.c.b16 %v4437, %v4437
        %s4502 = scalar_lea.vmem %s263, 256 [#allocation9]
        %4503 = vst [vmem:[%s4502] sm:$0xf] %v4438
        %4504 = vst [vmem:[%s4502 + $0x4] sm:$0xf] %v4439
        %4505 = vst [vmem:[%s4502 + $0x8] sm:$0xf] %v4440
        %4506 = vst [vmem:[%s4502 + $0xc] sm:$0xf] %v4441
        %4507 = vst [vmem:[%s4502 + $0x10] sm:$0xf] %v4442
        %4508 = vst [vmem:[%s4502 + $0x14] sm:$0xf] %v4443
        %4509 = vst [vmem:[%s4502 + $0x18] sm:$0xf] %v4444
        %4510 = vst [vmem:[%s4502 + $0x1c] sm:$0xf] %v4445
        %4511 = vst [vmem:[%s4502 + $0x20] sm:$0xf] %v4446
        %4512 = vst [vmem:[%s4502 + $0x24] sm:$0xf] %v4447
        %4513 = vst [vmem:[%s4502 + $0x28] sm:$0xf] %v4448
        %4514 = vst [vmem:[%s4502 + $0x2c] sm:$0xf] %v4449
        %4515 = vst [vmem:[%s4502 + $0x30] sm:$0xf] %v4450
        %4516 = vst [vmem:[%s4502 + $0x34] sm:$0xf] %v4451
        %4517 = vst [vmem:[%s4502 + $0x38] sm:$0xf] %v4452
        %4518 = vst [vmem:[%s4502 + $0x3c] sm:$0xf] %v4453
        %4519 = vst [vmem:[%s4502 + $0x40] sm:$0xf] %v4454
        %4520 = vst [vmem:[%s4502 + $0x44] sm:$0xf] %v4455
        %4521 = vst [vmem:[%s4502 + $0x48] sm:$0xf] %v4456
        %4522 = vst [vmem:[%s4502 + $0x4c] sm:$0xf] %v4457
        %4523 = vst [vmem:[%s4502 + $0x50] sm:$0xf] %v4458
        %4524 = vst [vmem:[%s4502 + $0x54] sm:$0xf] %v4459
        %4525 = vst [vmem:[%s4502 + $0x58] sm:$0xf] %v4460
        %4526 = vst [vmem:[%s4502 + $0x5c] sm:$0xf] %v4461
        %4527 = vst [vmem:[%s4502 + $0x60] sm:$0xf] %v4462
        %4528 = vst [vmem:[%s4502 + $0x64] sm:$0xf] %v4463
        %4529 = vst [vmem:[%s4502 + $0x68] sm:$0xf] %v4464
        %4530 = vst [vmem:[%s4502 + $0x6c] sm:$0xf] %v4465
        %4531 = vst [vmem:[%s4502 + $0x70] sm:$0xf] %v4466
        %4532 = vst [vmem:[%s4502 + $0x74] sm:$0xf] %v4467
        %4533 = vst [vmem:[%s4502 + $0x78] sm:$0xf] %v4468
        %4534 = vst [vmem:[%s4502 + $0x7c] sm:$0xf] %v4469
        %v4535 = vld [vmem:[%s3522] sm:$0xff]
        %v4536 = vld [vmem:[%s3522 + $0x8] sm:$0xff]
        %v4537 = vld [vmem:[%s3522 + $0x10] sm:$0xff]
        %v4538 = vld [vmem:[%s3522 + $0x18] sm:$0xff]
        %v4539 = vld [vmem:[%s3522 + $0x20] sm:$0xff]
        %v4540 = vld [vmem:[%s3522 + $0x28] sm:$0xff]
        %v4541 = vld [vmem:[%s3522 + $0x30] sm:$0xff]
        %v4542 = vld [vmem:[%s3522 + $0x38] sm:$0xff]
        %v4543 = vld [vmem:[%s3522 + $0x40] sm:$0xff]
        %v4544 = vld [vmem:[%s3522 + $0x48] sm:$0xff]
        %v4545 = vld [vmem:[%s3522 + $0x50] sm:$0xff]
        %v4546 = vld [vmem:[%s3522 + $0x58] sm:$0xff]
        %v4547 = vld [vmem:[%s3522 + $0x60] sm:$0xff]
        %v4548 = vld [vmem:[%s3522 + $0x68] sm:$0xff]
        %v4549 = vld [vmem:[%s3522 + $0x70] sm:$0xff]
        %v4550 = vld [vmem:[%s3522 + $0x78] sm:$0xff]
        %v4551 = vld [vmem:[%s3522 + $0x80] sm:$0xff]
        %v4552 = vld [vmem:[%s3522 + $0x88] sm:$0xff]
        %v4553 = vld [vmem:[%s3522 + $0x90] sm:$0xff]
        %v4554 = vld [vmem:[%s3522 + $0x98] sm:$0xff]
        %v4555 = vld [vmem:[%s3522 + $0xa0] sm:$0xff]
        %v4556 = vld [vmem:[%s3522 + $0xa8] sm:$0xff]
        %v4557 = vld [vmem:[%s3522 + $0xb0] sm:$0xff]
        %v4558 = vld [vmem:[%s3522 + $0xb8] sm:$0xff]
        %v4559 = vld [vmem:[%s3522 + $0xc0] sm:$0xff]
        %v4560 = vld [vmem:[%s3522 + $0xc8] sm:$0xff]
        %v4561 = vld [vmem:[%s3522 + $0xd0] sm:$0xff]
        %v4562 = vld [vmem:[%s3522 + $0xd8] sm:$0xff]
        %v4563 = vld [vmem:[%s3522 + $0xe0] sm:$0xff]
        %v4564 = vld [vmem:[%s3522 + $0xe8] sm:$0xff]
        %v4565 = vld [vmem:[%s3522 + $0xf0] sm:$0xff]
        %v4566 = vld [vmem:[%s3522 + $0xf8] sm:$0xff]
        %v4567 = vsub.f32 %v4535, %v3663
        %v4568 = vsub.f32 %v4536, %v3663
        %v4569 = vsub.f32 %v4537, %v3663
        %v4570 = vsub.f32 %v4538, %v3663
        %v4571 = vsub.f32 %v4539, %v3663
        %v4572 = vsub.f32 %v4540, %v3663
        %v4573 = vsub.f32 %v4541, %v3663
        %v4574 = vsub.f32 %v4542, %v3663
        %v4575 = vsub.f32 %v4543, %v3663
        %v4576 = vsub.f32 %v4544, %v3663
        %v4577 = vsub.f32 %v4545, %v3663
        %v4578 = vsub.f32 %v4546, %v3663
        %v4579 = vsub.f32 %v4547, %v3663
        %v4580 = vsub.f32 %v4548, %v3663
        %v4581 = vsub.f32 %v4549, %v3663
        %v4582 = vsub.f32 %v4550, %v3663
        %v4583 = vsub.f32 %v4551, %v3663
        %v4584 = vsub.f32 %v4552, %v3663
        %v4585 = vsub.f32 %v4553, %v3663
        %v4586 = vsub.f32 %v4554, %v3663
        %v4587 = vsub.f32 %v4555, %v3663
        %v4588 = vsub.f32 %v4556, %v3663
        %v4589 = vsub.f32 %v4557, %v3663
        %v4590 = vsub.f32 %v4558, %v3663
        %v4591 = vsub.f32 %v4559, %v3663
        %v4592 = vsub.f32 %v4560, %v3663
        %v4593 = vsub.f32 %v4561, %v3663
        %v4594 = vsub.f32 %v4562, %v3663
        %v4595 = vsub.f32 %v4563, %v3663
        %v4596 = vsub.f32 %v4564, %v3663
        %v4597 = vsub.f32 %v4565, %v3663
        %v4598 = vsub.f32 %v4566, %v3663
        %v4599 = vmul.f32 %v4567, %v3668
        %v4600 = vmul.f32 %v4568, %v3668
        %v4601 = vmul.f32 %v4569, %v3668
        %v4602 = vmul.f32 %v4570, %v3668
        %v4603 = vmul.f32 %v4571, %v3668
        %v4604 = vmul.f32 %v4572, %v3668
        %v4605 = vmul.f32 %v4573, %v3668
        %v4606 = vmul.f32 %v4574, %v3668
        %v4607 = vmul.f32 %v4575, %v3668
        %v4608 = vmul.f32 %v4576, %v3668
        %v4609 = vmul.f32 %v4577, %v3668
        %v4610 = vmul.f32 %v4578, %v3668
        %v4611 = vmul.f32 %v4579, %v3668
        %v4612 = vmul.f32 %v4580, %v3668
        %v4613 = vmul.f32 %v4581, %v3668
        %v4614 = vmul.f32 %v4582, %v3668
        %v4615 = vmul.f32 %v4583, %v3668
        %v4616 = vmul.f32 %v4584, %v3668
        %v4617 = vmul.f32 %v4585, %v3668
        %v4618 = vmul.f32 %v4586, %v3668
        %v4619 = vmul.f32 %v4587, %v3668
        %v4620 = vmul.f32 %v4588, %v3668
        %v4621 = vmul.f32 %v4589, %v3668
        %v4622 = vmul.f32 %v4590, %v3668
        %v4623 = vmul.f32 %v4591, %v3668
        %v4624 = vmul.f32 %v4592, %v3668
        %v4625 = vmul.f32 %v4593, %v3668
        %v4626 = vmul.f32 %v4594, %v3668
        %v4627 = vmul.f32 %v4595, %v3668
        %v4628 = vmul.f32 %v4596, %v3668
        %v4629 = vmul.f32 %v4597, %v3668
        %v4630 = vmul.f32 %v4598, %v3668
        %v4631 = vmax.f32 %v4599, 0.0
        %v4632 = vmax.f32 %v4600, 0.0
        %v4633 = vmax.f32 %v4601, 0.0
        %v4634 = vmax.f32 %v4602, 0.0
        %v4635 = vmax.f32 %v4603, 0.0
        %v4636 = vmax.f32 %v4604, 0.0
        %v4637 = vmax.f32 %v4605, 0.0
        %v4638 = vmax.f32 %v4606, 0.0
        %v4639 = vmax.f32 %v4607, 0.0
        %v4640 = vmax.f32 %v4608, 0.0
        %v4641 = vmax.f32 %v4609, 0.0
        %v4642 = vmax.f32 %v4610, 0.0
        %v4643 = vmax.f32 %v4611, 0.0
        %v4644 = vmax.f32 %v4612, 0.0
        %v4645 = vmax.f32 %v4613, 0.0
        %v4646 = vmax.f32 %v4614, 0.0
        %v4647 = vmax.f32 %v4615, 0.0
        %v4648 = vmax.f32 %v4616, 0.0
        %v4649 = vmax.f32 %v4617, 0.0
        %v4650 = vmax.f32 %v4618, 0.0
        %v4651 = vmax.f32 %v4619, 0.0
        %v4652 = vmax.f32 %v4620, 0.0
        %v4653 = vmax.f32 %v4621, 0.0
        %v4654 = vmax.f32 %v4622, 0.0
        %v4655 = vmax.f32 %v4623, 0.0
        %v4656 = vmax.f32 %v4624, 0.0
        %v4657 = vmax.f32 %v4625, 0.0
        %v4658 = vmax.f32 %v4626, 0.0
        %v4659 = vmax.f32 %v4627, 0.0
        %v4660 = vmax.f32 %v4628, 0.0
        %v4661 = vmax.f32 %v4629, 0.0
        %v4662 = vmax.f32 %v4630, 0.0
        %v4663 = vpack.c.bf16 %v4632, %v4631
        %v4664 = vpack.c.bf16 %v4634, %v4633
        %v4665 = vpack.c.bf16 %v4636, %v4635
        %v4666 = vpack.c.bf16 %v4638, %v4637
        %v4667 = vpack.c.bf16 %v4640, %v4639
        %v4668 = vpack.c.bf16 %v4642, %v4641
        %v4669 = vpack.c.bf16 %v4644, %v4643
        %v4670 = vpack.c.bf16 %v4646, %v4645
        %v4671 = vpack.c.bf16 %v4648, %v4647
        %v4672 = vpack.c.bf16 %v4650, %v4649
        %v4673 = vpack.c.bf16 %v4652, %v4651
        %v4674 = vpack.c.bf16 %v4654, %v4653
        %v4675 = vpack.c.bf16 %v4656, %v4655
        %v4676 = vpack.c.bf16 %v4658, %v4657
        %v4677 = vpack.c.bf16 %v4660, %v4659
        %v4678 = vpack.c.bf16 %v4662, %v4661
        %v4695 = vunpack.c.l.b16 %v4663
        %v4696 = vunpack.c.h.b16 %v4663
        %v4697 = vunpack.c.l.b16 %v4664
        %v4698 = vunpack.c.h.b16 %v4664
        %v4699 = vunpack.c.l.b16 %v4665
        %v4700 = vunpack.c.h.b16 %v4665
        %v4701 = vunpack.c.l.b16 %v4666
        %v4702 = vunpack.c.h.b16 %v4666
        %v4703 = vunpack.c.l.b16 %v4667
        %v4704 = vunpack.c.h.b16 %v4667
        %v4705 = vunpack.c.l.b16 %v4668
        %v4706 = vunpack.c.h.b16 %v4668
        %v4707 = vunpack.c.l.b16 %v4669
        %v4708 = vunpack.c.h.b16 %v4669
        %v4709 = vunpack.c.l.b16 %v4670
        %v4710 = vunpack.c.h.b16 %v4670
        %v4711 = vunpack.c.l.b16 %v4671
        %v4712 = vunpack.c.h.b16 %v4671
        %v4713 = vunpack.c.l.b16 %v4672
        %v4714 = vunpack.c.h.b16 %v4672
        %v4715 = vunpack.c.l.b16 %v4673
        %v4716 = vunpack.c.h.b16 %v4673
        %v4717 = vunpack.c.l.b16 %v4674
        %v4718 = vunpack.c.h.b16 %v4674
        %v4719 = vunpack.c.l.b16 %v4675
        %v4720 = vunpack.c.h.b16 %v4675
        %v4721 = vunpack.c.l.b16 %v4676
        %v4722 = vunpack.c.h.b16 %v4676
        %v4723 = vunpack.c.l.b16 %v4677
        %v4724 = vunpack.c.h.b16 %v4677
        %v4725 = vunpack.c.l.b16 %v4678
        %v4726 = vunpack.c.h.b16 %v4678
        %v4727 = vpack.c.b16 %v4695, %v4695
        %v4728 = vpack.c.b16 %v4696, %v4696
        %v4729 = vpack.c.b16 %v4697, %v4697
        %v4730 = vpack.c.b16 %v4698, %v4698
        %v4731 = vpack.c.b16 %v4699, %v4699
        %v4732 = vpack.c.b16 %v4700, %v4700
        %v4733 = vpack.c.b16 %v4701, %v4701
        %v4734 = vpack.c.b16 %v4702, %v4702
        %v4735 = vpack.c.b16 %v4703, %v4703
        %v4736 = vpack.c.b16 %v4704, %v4704
        %v4737 = vpack.c.b16 %v4705, %v4705
        %v4738 = vpack.c.b16 %v4706, %v4706
        %v4739 = vpack.c.b16 %v4707, %v4707
        %v4740 = vpack.c.b16 %v4708, %v4708
        %v4741 = vpack.c.b16 %v4709, %v4709
        %v4742 = vpack.c.b16 %v4710, %v4710
        %v4743 = vpack.c.b16 %v4711, %v4711
        %v4744 = vpack.c.b16 %v4712, %v4712
        %v4745 = vpack.c.b16 %v4713, %v4713
        %v4746 = vpack.c.b16 %v4714, %v4714
        %v4747 = vpack.c.b16 %v4715, %v4715
        %v4748 = vpack.c.b16 %v4716, %v4716
        %v4749 = vpack.c.b16 %v4717, %v4717
        %v4750 = vpack.c.b16 %v4718, %v4718
        %v4751 = vpack.c.b16 %v4719, %v4719
        %v4752 = vpack.c.b16 %v4720, %v4720
        %v4753 = vpack.c.b16 %v4721, %v4721
        %v4754 = vpack.c.b16 %v4722, %v4722
        %v4755 = vpack.c.b16 %v4723, %v4723
        %v4756 = vpack.c.b16 %v4724, %v4724
        %v4757 = vpack.c.b16 %v4725, %v4725
        %v4758 = vpack.c.b16 %v4726, %v4726
        %s4791 = scalar_lea.vmem %s263, 384 [#allocation9]
        %4792 = vst [vmem:[%s4791] sm:$0xf] %v4727
        %4793 = vst [vmem:[%s4791 + $0x4] sm:$0xf] %v4728
        %4794 = vst [vmem:[%s4791 + $0x8] sm:$0xf] %v4729
        %4795 = vst [vmem:[%s4791 + $0xc] sm:$0xf] %v4730
        %4796 = vst [vmem:[%s4791 + $0x10] sm:$0xf] %v4731
        %4797 = vst [vmem:[%s4791 + $0x14] sm:$0xf] %v4732
        %4798 = vst [vmem:[%s4791 + $0x18] sm:$0xf] %v4733
        %4799 = vst [vmem:[%s4791 + $0x1c] sm:$0xf] %v4734
        %4800 = vst [vmem:[%s4791 + $0x20] sm:$0xf] %v4735
        %4801 = vst [vmem:[%s4791 + $0x24] sm:$0xf] %v4736
        %4802 = vst [vmem:[%s4791 + $0x28] sm:$0xf] %v4737
        %4803 = vst [vmem:[%s4791 + $0x2c] sm:$0xf] %v4738
        %4804 = vst [vmem:[%s4791 + $0x30] sm:$0xf] %v4739
        %4805 = vst [vmem:[%s4791 + $0x34] sm:$0xf] %v4740
        %4806 = vst [vmem:[%s4791 + $0x38] sm:$0xf] %v4741
        %4807 = vst [vmem:[%s4791 + $0x3c] sm:$0xf] %v4742
        %4808 = vst [vmem:[%s4791 + $0x40] sm:$0xf] %v4743
        %4809 = vst [vmem:[%s4791 + $0x44] sm:$0xf] %v4744
        %4810 = vst [vmem:[%s4791 + $0x48] sm:$0xf] %v4745
        %4811 = vst [vmem:[%s4791 + $0x4c] sm:$0xf] %v4746
        %4812 = vst [vmem:[%s4791 + $0x50] sm:$0xf] %v4747
        %4813 = vst [vmem:[%s4791 + $0x54] sm:$0xf] %v4748
        %4814 = vst [vmem:[%s4791 + $0x58] sm:$0xf] %v4749
        %4815 = vst [vmem:[%s4791 + $0x5c] sm:$0xf] %v4750
        %4816 = vst [vmem:[%s4791 + $0x60] sm:$0xf] %v4751
        %4817 = vst [vmem:[%s4791 + $0x64] sm:$0xf] %v4752
        %4818 = vst [vmem:[%s4791 + $0x68] sm:$0xf] %v4753
        %4819 = vst [vmem:[%s4791 + $0x6c] sm:$0xf] %v4754
        %4820 = vst [vmem:[%s4791 + $0x70] sm:$0xf] %v4755
        %4821 = vst [vmem:[%s4791 + $0x74] sm:$0xf] %v4756
        %4822 = vst [vmem:[%s4791 + $0x78] sm:$0xf] %v4757
        %4823 = vst [vmem:[%s4791 + $0x7c] sm:$0xf] %v4758
        %s4824 = sand.u32 %s123, 1
        %s4825 = scalar_lea.sflag [#allocation5], %s4824
        %s4826 = sand.u32 %s123, 1
        %s4827 = smul.addr %s4826, 512
        %s4828 = scalar_lea.vmem [#allocation9], %s4827
        // Predicated region
        $region45: #{tpu_custom_call.1} parent=31 // pred_check
          %p4829 = pneg %p133
        $region46: #{tpu_custom_call.1} parent=31 // pred_check_branch
          %4831 = sbr.rel (%p4829) target = $region48
        $region47: #{tpu_custom_call.1} parent=31 // pred_region
          #allocation11 [shape = 'u32[6]{0}', space=smem, size = 0x18, scoped, tag = 'DMA stride descriptor']
          %s4833 = ssub.s32 8192, 8192
          %4834 = vsyncadd %s4825, %s4833
          %s4835 = smul.addr %s28, 32
          %s4836 = sadd.s32 %s27, %s4835
          %s4837 = smul.addr %s4836, 64
          %s4838 = scalar_lea.hbm %s3, %s4837
          %s4840 = sshll.u32 1, 14
          %s4841 = sxor.u32 4294967295, %s4840
          %s4844 = sshll.u32 7, 18
          %s4845 = sxor.u32 4294967295, %s4844
          %s4846 = sand.u32 0, %s4845
          %s4848 = sor.u32 %s4846, 0
          %s4849 = sshll.u32 %s4828, 4
          %s4850 = int_to_ptr.vmem [resolvable:$true] %s4849
          %4856 = sst [smem:[#allocation11]] 2048
          %s4857 = scalar_lea.smem [#allocation11], 1
          %4858 = sst [smem:[%s4857]] 4096
          %s4859 = scalar_lea.smem [#allocation11], 2
          %4860 = sst [smem:[%s4859]] 32
          %s4861 = scalar_lea.smem [#allocation11], 3
          %4862 = sst [smem:[%s4861]] 64
          %s4863 = scalar_lea.smem [#allocation11], 4
          %4864 = sst [smem:[%s4863]] 64
          %s4865 = scalar_lea.smem [#allocation11], 5
          %4866 = sst [smem:[%s4865]] 4
          %4868 = dma.general %s4850, 8192, %s4838, %s4825, 131072, [#allocation11], %s4848, 0
        $region48: #{tpu_custom_call.1} parent=31 // pred_fallthru
          _
      $region32: #{tpu_custom_call.1} parent=5 // pred_fallthru
        _
      %p4869 = scmp.le.s32.totalorder 2, %s18
      // Predicated region
      $region49: #{tpu_custom_call.1} parent=5 // pred_check
        %p4870 = pneg %p4869
      $region50: #{tpu_custom_call.1} parent=5 // pred_check_branch
        %4872 = sbr.rel (%p4870) target = $region52
      $region51: #{tpu_custom_call.1} parent=5 // pred_region
        %s4873 = ssub.s32 %s18, 2
        // Predicated region
        $region53: #{tpu_custom_call.1} parent=51 // pred_check
          %p4874 = pneg %p139
        $region54: #{tpu_custom_call.1} parent=51 // pred_check_branch
          %4876 = sbr.rel (%p4874) target = $region56
        $region55: #{tpu_custom_call.1} parent=51 // pred_region
          %s4877 = sand.u32 %s124, 1
          %s4878 = scalar_lea.sflag [#allocation5], %s4877
          %s4879 = sand.u32 %s124, 1
          %s4880 = smul.addr %s4879, 512
          %s4881 = scalar_lea.vmem [#allocation9], %s4880
          %4882 = dma.done %s4878, 8192
        $region56: #{tpu_custom_call.1} parent=51 // pred_fallthru
          _
      $region52: #{tpu_custom_call.1} parent=5 // pred_fallthru
        _
    $region6: #{tpu_custom_call.1} parent=1 // loop_footer
      %s22 = sadd.s32 1, %s18
    $region7: #{tpu_custom_call.1} parent=1 // loop_footer_branch
      %17 = sbr.rel target = $region3
    $region8: #{tpu_custom_call.1} parent=1 // loop_exit
      _
    %4883 = vsyncpa [#allocation4], 1
    %s4884 = scalar_lea.sflag [#allocation4], 1
    %4885 = vsyncpa %s4884, 1
    %4886 = vsyncpa [#allocation7], 1
    %s4887 = scalar_lea.sflag [#allocation7], 1
    %4888 = vsyncpa %s4887, 1
    %4889 = vsyncpa [#allocation5], 1
    %s4890 = scalar_lea.sflag [#allocation5], 1
    %4891 = vsyncpa %s4890, 1

</llo_original>
